<compile_context>
chip_gen: v5e
topology: v5e:2x2
jax: 0.10.0
libtpu: 0.0.40
codegen_flags: <defaults>
</compile_context>

<pallas_src>
import jax
import jax.numpy as jnp
import numpy as np
from jax.experimental import pallas as pl
from jax.experimental.pallas import tpu as pltpu


# ------------------------------ fused kernel ---------------------------------

def make_encoder_kernel(L, T, BP, E, H):
    """Fused FC+ReLU + L-layer LSTM with a wavefront (layer, time) schedule.

    Ref order: x, fc_w, fc_b, w_ih0, w_hh0, b0, (wcat_l, bias_l) for l=1..L-1,
               h_out, c_out, xproj_scr.
    """
    G = 4 * H

    def kernel(*refs):
        x_ref, fcw_ref, fcb_ref = refs[0], refs[1], refs[2]
        wih0_ref, whh0_ref, b0_ref = refs[3], refs[4], refs[5]
        lw = refs[6:6 + 2 * (L - 1)]               # (wcat_l, bias_l) for l >= 1
        h_out = refs[6 + 2 * (L - 1)]
        c_out = refs[7 + 2 * (L - 1)]
        xproj_scr = refs[8 + 2 * (L - 1)]

        # ---- FC + ReLU (dropout = identity), one GEMM over all T*BP rows ----
        emb = jnp.dot(x_ref[...].astype(jnp.bfloat16), fcw_ref[...],
                      preferred_element_type=jnp.float32)
        emb = jnp.maximum(emb + fcb_ref[...], 0.0)               # (T*BP, E) f32

        # ---- layer-0 input projection hoisted off the serial chain ----------
        xproj_scr[...] = jnp.dot(emb.astype(jnp.bfloat16), wih0_ref[...],
                                 preferred_element_type=jnp.float32) + b0_ref[...]

        # Biases for layers >= 1 broadcast once (not per cell / per iteration).
        bias_b = [jnp.broadcast_to(lw[2 * i + 1][...], (BP, G))
                  for i in range(L - 1)]

        def sig(v):                      # 1 EUP push per gate (vs exp + recip)
            return 0.5 * jnp.tanh(0.5 * v) + 0.5

        def lstm_cell(gates, c_prev):
            # PyTorch gate order: i, f, g, o; each slice is 128-lane aligned.
            i_g = sig(gates[:, 0 * H:1 * H])
            f_g = sig(gates[:, 1 * H:2 * H])
            g_g = jnp.tanh(gates[:, 2 * H:3 * H])
            o_g = sig(gates[:, 3 * H:4 * H])
            c_new = f_g * c_prev + i_g * g_g
            h_new = o_g * jnp.tanh(c_new)
            return h_new, c_new

        zeros = jnp.zeros((BP, H), jnp.float32)
        h = [zeros] * L
        c = [zeros] * L

        # ---- wavefront: super-step s computes all cells (l, t = s - l) ------
        # Every input of super-step s comes from super-step s-1 (snapshotted).
        # TODO(synk): hold W_hh in MXU staging regs (pltpu.matmul_push_rhs) per
        # layer if the bundle dump shows weight re-staging dominating.
        for s in range(T + L - 1):
            h_old = list(h)
            c_old = list(c)
            for l in range(L):
                t = s - l
                if t < 0 or t >= T:
                    continue
                if l == 0:
                    # Hoisted input projection + K=128 recurrent matmul.
                    gates = (xproj_scr[pl.ds(t * BP, BP), :]
                             + jnp.dot(h_old[0].astype(jnp.bfloat16),
                                       whh0_ref[...],
                                       preferred_element_type=jnp.float32))
                else:
                    # Fused K = 2H contraction: [x_t ; h_{t-1}] @ [W_ih ; W_hh].
                    inp = jnp.concatenate([h_old[l - 1], h_old[l]],
                                          axis=1).astype(jnp.bfloat16)  # (BP,2H)
                    gates = (jnp.dot(inp, lw[2 * (l - 1)][...],
                                     preferred_element_type=jnp.float32)
                             + bias_b[l - 1])
                h[l], c[l] = lstm_cell(gates, c_old[l])

        # Final states (last computed t for layer l is T-1); full (8,128) stores.
        for l in range(L):
            h_out[l] = h[l]
            c_out[l] = c[l]

    return kernel


# --------------------------------- wrapper -----------------------------------

def encoder_forward(x, fc_w, fc_b, layers, hidden_size):
    """x: (B, T, Din) batch-first, like the PyTorch module.
    Returns (hidden, cell), each (L, B, H)."""
    B, T, Din = x.shape
    E = fc_w.shape[1]
    L = len(layers)
    H = hidden_size
    BP = 8          # sublane-pad batch so per-step tiles are full (8,128)
    assert B <= BP

    # Time-major, batch zero-padded to BP rows per timestep.  Pad rows never
    # contaminate real rows (all LSTM math is row-independent); outputs are
    # sliced back to B below.
    x_tm = jnp.zeros((T, BP, Din), x.dtype)
    x_tm = x_tm.at[:, :B, :].set(jnp.transpose(x, (1, 0, 2)))
    x_tm = x_tm.reshape(T * BP, Din)

    (w_ih0, w_hh0, b0) = layers[0]
    ins = [x_tm, fc_w, fc_b, w_ih0, w_hh0, b0]
    in_specs = [
        pl.BlockSpec((T * BP, Din), lambda: (0, 0)),
        pl.BlockSpec((Din, E), lambda: (0, 0)),
        pl.BlockSpec((1, E), lambda: (0, 0)),
        pl.BlockSpec(w_ih0.shape, lambda: (0, 0)),
        pl.BlockSpec(w_hh0.shape, lambda: (0, 0)),
        pl.BlockSpec(b0.shape, lambda: (0, 0)),
    ]
    # Layers >= 1: concatenate [W_ih ; W_hh] once in the wrapper (K = 2H fused).
    for (w_ih_t, w_hh_t, bias) in layers[1:]:
        wcat = jnp.concatenate([w_ih_t, w_hh_t], axis=0)        # (2H, 4H) bf16
        ins += [wcat, bias]
        in_specs += [
            pl.BlockSpec(wcat.shape, lambda: (0, 0)),
            pl.BlockSpec(bias.shape, lambda: (0, 0)),
        ]

    out_shape = (jax.ShapeDtypeStruct((L, BP, H), jnp.float32),
                 jax.ShapeDtypeStruct((L, BP, H), jnp.float32))
    out_specs = (pl.BlockSpec((L, BP, H), lambda: (0, 0, 0)),
                 pl.BlockSpec((L, BP, H), lambda: (0, 0, 0)))

    # TODO(synk): at realistic batch sizes add a leading 'parallel' batch grid
    # axis (v7x second TensorCore) and a layer grid axis to double-buffer
    # weights; re-derive vmem_limit_bytes for v7x's 64 MiB VMEM when scaling.
    h_pad, c_pad = pl.pallas_call(
        make_encoder_kernel(L, T, BP, E, H),
        out_shape=out_shape,
        in_specs=in_specs,
        out_specs=out_specs,
        scratch_shapes=[
            pltpu.VMEM((T * BP, 4 * H), jnp.float32),   # hoisted layer-0 proj
        ],
    )(*ins)
    return h_pad[:, :B, :], c_pad[:, :B, :]


# --------------------------- parameter construction --------------------------

def init_params(key, input_size, embedding_size, hidden_size, num_layers):
    """Matmul weights stored bf16 (MXU-native), biases f32.
    LSTM weights pre-transposed; b_ih + b_hh fused."""
    keys = jax.random.split(key, 2 + 4 * num_layers)
    kf = 1.0 / np.sqrt(input_size)
    fc_w = jax.random.uniform(keys[0], (input_size, embedding_size),
                              jnp.float32, -kf, kf).astype(jnp.bfloat16)
    fc_b = jax.random.uniform(keys[1], (1, embedding_size), jnp.float32, -kf, kf)

    kl = 1.0 / np.sqrt(hidden_size)
    layers = []
    for l in range(num_layers):
        in_dim = embedding_size if l == 0 else hidden_size
        k0, k1, k2, k3 = keys[2 + 4 * l: 6 + 4 * l]
        w_ih = jax.random.uniform(k0, (4 * hidden_size, in_dim), jnp.float32, -kl, kl)
        w_hh = jax.random.uniform(k1, (4 * hidden_size, hidden_size), jnp.float32, -kl, kl)
        b_ih = jax.random.uniform(k2, (4 * hidden_size,), jnp.float32, -kl, kl)
        b_hh = jax.random.uniform(k3, (4 * hidden_size,), jnp.float32, -kl, kl)
        layers.append((w_ih.T.astype(jnp.bfloat16),
                       w_hh.T.astype(jnp.bfloat16),
                       (b_ih + b_hh).reshape(1, 4 * hidden_size)))
    return fc_w, fc_b, layers


# ------------------------------ pure-JAX reference ----------------------------

def encoder_reference(x, fc_w, fc_b, layers, hidden_size):
    B, T, Din = x.shape
    fw = fc_w.astype(jnp.float32)
    emb = jax.nn.relu(x.reshape(B * T, Din) @ fw + fc_b).reshape(B, T, -1)
    H = hidden_size
    hs, cs = [], []
    inp = emb
    for (w_ih_t, w_hh_t, bias) in layers:
        wi = w_ih_t.astype(jnp.float32)
        wh = w_hh_t.astype(jnp.float32)
        h = jnp.zeros((B, H), jnp.float32)
        c = jnp.zeros((B, H), jnp.float32)
        outs = []
        for t in range(T):
            gates = inp[:, t, :] @ wi + h @ wh + bias
            i = jax.nn.sigmoid(gates[:, 0 * H:1 * H])
            f = jax.nn.sigmoid(gates[:, 1 * H:2 * H])
            g = jnp.tanh(gates[:, 2 * H:3 * H])
            o = jax.nn.sigmoid(gates[:, 3 * H:4 * H])
            c = f * c + i * g
            h = o * jnp.tanh(c)
            outs.append(h)
        inp = jnp.stack(outs, axis=1)
        hs.append(h)
        cs.append(c)
    return jnp.stack(hs, 0), jnp.stack(cs, 0)


if __name__ == "__main__":
    # Small shapes consistent with the module (input_size=6 default); H/E kept
    # lane-aligned at 128 so gate slices and stores are lane-dense.
    B, T = 2, 8
    INPUT_SIZE, EMB, HID, LAYERS = 6, 128, 128, 3

    key = jax.random.PRNGKey(0)
    kx, kp = jax.random.split(key)
    x = jax.random.normal(kx, (B, T, INPUT_SIZE), jnp.float32)

    fc_w, fc_b, layers = init_params(kp, INPUT_SIZE, EMB, HID, LAYERS)

    hidden, cell = encoder_forward(x, fc_w, fc_b, layers, HID)
    hidden, cell = jax.block_until_ready((hidden, cell))

    h_ref, c_ref = encoder_reference(x, fc_w, fc_b, layers, HID)
    np.testing.assert_allclose(np.asarray(hidden), np.asarray(h_ref),
                               atol=2e-2, rtol=2e-2)
    np.testing.assert_allclose(np.asarray(cell), np.asarray(c_ref),
                               atol=2e-2, rtol=2e-2)

    assert hidden.shape == (LAYERS, B, HID) and cell.shape == (LAYERS, B, HID)
    print("KERNEL_OK")
</pallas_src>

<mosaic_0001>
module attributes {stable_mosaic.version = 11 : i64} {
  func.func @kernel(%arg0: memref<64x6xf32, #tpu.memory_space<vmem>>, %arg1: memref<6x128xbf16, #tpu.memory_space<vmem>>, %arg2: memref<1x128xf32, #tpu.memory_space<vmem>>, %arg3: memref<128x512xbf16, #tpu.memory_space<vmem>>, %arg4: memref<128x512xbf16, #tpu.memory_space<vmem>>, %arg5: memref<1x512xf32, #tpu.memory_space<vmem>>, %arg6: memref<256x512xbf16, #tpu.memory_space<vmem>>, %arg7: memref<1x512xf32, #tpu.memory_space<vmem>>, %arg8: memref<256x512xbf16, #tpu.memory_space<vmem>>, %arg9: memref<1x512xf32, #tpu.memory_space<vmem>>, %arg10: memref<3x8x128xf32, #tpu.memory_space<vmem>>, %arg11: memref<3x8x128xf32, #tpu.memory_space<vmem>>, %arg12: memref<64x512xf32, #tpu.memory_space<vmem>>) attributes {dimension_semantics = [], scalar_prefetch = 0 : i64, scratch_operands = 1 : i64, tpu.core_type = #tpu.core_type<tc>} {
    %c0 = arith.constant 0 : index
    %c0_0 = arith.constant 0 : index
    %0 = vector.load %arg0[%c0, %c0_0] : memref<64x6xf32, #tpu.memory_space<vmem>>, vector<64x6xf32>
    %1 = arith.truncf %0 : vector<64x6xf32> to vector<64x6xbf16>
    %c0_1 = arith.constant 0 : index
    %c0_2 = arith.constant 0 : index
    %2 = vector.load %arg1[%c0_1, %c0_2] : memref<6x128xbf16, #tpu.memory_space<vmem>>, vector<6x128xbf16>
    %cst = arith.constant dense<0.000000e+00> : vector<64x128xf32>
    %3 = tpu.matmul %1, %2, %cst {dimension_numbers = #tpu.dot_dimension_numbers<[1], [0], [0], [1], [0, 0, 1, 1], [], []>} : vector<64x6xbf16>, vector<6x128xbf16>, vector<64x128xf32> -> vector<64x128xf32>
    %c0_3 = arith.constant 0 : index
    %c0_4 = arith.constant 0 : index
    %4 = vector.load %arg2[%c0_3, %c0_4] : memref<1x128xf32, #tpu.memory_space<vmem>>, vector<1x128xf32>
    %5 = vector.broadcast %4 : vector<1x128xf32> to vector<64x128xf32>
    %6 = arith.addf %3, %5 : vector<64x128xf32>
    %cst_5 = arith.constant 0.000000e+00 : f32
    %7 = vector.broadcast %cst_5 : f32 to vector<64x128xf32>
    %8 = arith.maximumf %6, %7 : vector<64x128xf32>
    %9 = arith.truncf %8 : vector<64x128xf32> to vector<64x128xbf16>
    %c0_6 = arith.constant 0 : index
    %c0_7 = arith.constant 0 : index
    %10 = vector.load %arg3[%c0_6, %c0_7] : memref<128x512xbf16, #tpu.memory_space<vmem>>, vector<128x512xbf16>
    %cst_8 = arith.constant dense<0.000000e+00> : vector<64x512xf32>
    %11 = tpu.matmul %9, %10, %cst_8 {dimension_numbers = #tpu.dot_dimension_numbers<[1], [0], [0], [1], [0, 0, 1, 1], [], []>} : vector<64x128xbf16>, vector<128x512xbf16>, vector<64x512xf32> -> vector<64x512xf32>
    %c0_9 = arith.constant 0 : index
    %c0_10 = arith.constant 0 : index
    %12 = vector.load %arg5[%c0_9, %c0_10] : memref<1x512xf32, #tpu.memory_space<vmem>>, vector<1x512xf32>
    %13 = vector.broadcast %12 : vector<1x512xf32> to vector<64x512xf32>
    %14 = arith.addf %11, %13 : vector<64x512xf32>
    %c0_11 = arith.constant 0 : index
    %c0_12 = arith.constant 0 : index
    %15 = vector.load %arg12[%c0_11, %c0_12] : memref<64x512xf32, #tpu.memory_space<vmem>>, vector<64x512xf32>
    tpu.vector_store %arg12[%c0_11, %c0_12], %14 {strides = array<i32>} : memref<64x512xf32, #tpu.memory_space<vmem>>, vector<64x512xf32>,
    %c0_13 = arith.constant 0 : index
    %c0_14 = arith.constant 0 : index
    %16 = vector.load %arg7[%c0_13, %c0_14] : memref<1x512xf32, #tpu.memory_space<vmem>>, vector<1x512xf32>
    %17 = vector.shape_cast %16 : vector<1x512xf32> to vector<1x512xf32>
    %18 = vector.broadcast %17 : vector<1x512xf32> to vector<8x512xf32>
    %c0_15 = arith.constant 0 : index
    %c0_16 = arith.constant 0 : index
    %19 = vector.load %arg9[%c0_15, %c0_16] : memref<1x512xf32, #tpu.memory_space<vmem>>, vector<1x512xf32>
    %20 = vector.shape_cast %19 : vector<1x512xf32> to vector<1x512xf32>
    %21 = vector.broadcast %20 : vector<1x512xf32> to vector<8x512xf32>
    %cst_17 = arith.constant 0.000000e+00 : f32
    %22 = vector.broadcast %cst_17 : f32 to vector<8x128xf32>
    %c0_18 = arith.constant 0 : index
    %c0_19 = arith.constant 0 : index
    %23 = vector.load %arg12[%c0_18, %c0_19] : memref<64x512xf32, #tpu.memory_space<vmem>>, vector<8x512xf32>
    %24 = arith.truncf %22 : vector<8x128xf32> to vector<8x128xbf16>
    %c0_20 = arith.constant 0 : index
    %c0_21 = arith.constant 0 : index
    %25 = vector.load %arg4[%c0_20, %c0_21] : memref<128x512xbf16, #tpu.memory_space<vmem>>, vector<128x512xbf16>
    %cst_22 = arith.constant dense<0.000000e+00> : vector<8x512xf32>
    %26 = tpu.matmul %24, %25, %cst_22 {dimension_numbers = #tpu.dot_dimension_numbers<[1], [0], [0], [1], [0, 0, 1, 1], [], []>} : vector<8x128xbf16>, vector<128x512xbf16>, vector<8x512xf32> -> vector<8x512xf32>
    %27 = arith.addf %23, %26 : vector<8x512xf32>
    %28 = vector.extract_strided_slice %27 {offsets = [0, 0], sizes = [8, 128], strides = [1, 1]} : vector<8x512xf32> to vector<8x128xf32>
    %cst_23 = arith.constant 5.000000e-01 : f32
    %29 = vector.broadcast %cst_23 : f32 to vector<8x128xf32>
    %30 = arith.mulf %29, %28 : vector<8x128xf32>
    %31 = math.tanh %30 : vector<8x128xf32>
    %cst_24 = arith.constant 5.000000e-01 : f32
    %32 = vector.broadcast %cst_24 : f32 to vector<8x128xf32>
    %33 = arith.mulf %32, %31 : vector<8x128xf32>
    %cst_25 = arith.constant 5.000000e-01 : f32
    %34 = vector.broadcast %cst_25 : f32 to vector<8x128xf32>
    %35 = arith.addf %33, %34 : vector<8x128xf32>
    %36 = vector.extract_strided_slice %27 {offsets = [0, 128], sizes = [8, 128], strides = [1, 1]} : vector<8x512xf32> to vector<8x128xf32>
    %cst_26 = arith.constant 5.000000e-01 : f32
    %37 = vector.broadcast %cst_26 : f32 to vector<8x128xf32>
    %38 = arith.mulf %37, %36 : vector<8x128xf32>
    %39 = math.tanh %38 : vector<8x128xf32>
    %cst_27 = arith.constant 5.000000e-01 : f32
    %40 = vector.broadcast %cst_27 : f32 to vector<8x128xf32>
    %41 = arith.mulf %40, %39 : vector<8x128xf32>
    %cst_28 = arith.constant 5.000000e-01 : f32
    %42 = vector.broadcast %cst_28 : f32 to vector<8x128xf32>
    %43 = arith.addf %41, %42 : vector<8x128xf32>
    %44 = vector.extract_strided_slice %27 {offsets = [0, 256], sizes = [8, 128], strides = [1, 1]} : vector<8x512xf32> to vector<8x128xf32>
    %45 = math.tanh %44 : vector<8x128xf32>
    %46 = vector.extract_strided_slice %27 {offsets = [0, 384], sizes = [8, 128], strides = [1, 1]} : vector<8x512xf32> to vector<8x128xf32>
    %cst_29 = arith.constant 5.000000e-01 : f32
    %47 = vector.broadcast %cst_29 : f32 to vector<8x128xf32>
    %48 = arith.mulf %47, %46 : vector<8x128xf32>
    %49 = math.tanh %48 : vector<8x128xf32>
    %cst_30 = arith.constant 5.000000e-01 : f32
    %50 = vector.broadcast %cst_30 : f32 to vector<8x128xf32>
    %51 = arith.mulf %50, %49 : vector<8x128xf32>
    %cst_31 = arith.constant 5.000000e-01 : f32
    %52 = vector.broadcast %cst_31 : f32 to vector<8x128xf32>
    %53 = arith.addf %51, %52 : vector<8x128xf32>
    %54 = arith.mulf %43, %22 : vector<8x128xf32>
    %55 = arith.mulf %35, %45 : vector<8x128xf32>
    %56 = arith.addf %54, %55 : vector<8x128xf32>
    %57 = math.tanh %56 : vector<8x128xf32>
    %58 = arith.mulf %53, %57 : vector<8x128xf32>
    %c8 = arith.constant 8 : index
    %c0_32 = arith.constant 0 : index
    %59 = vector.load %arg12[%c8, %c0_32] : memref<64x512xf32, #tpu.memory_space<vmem>>, vector<8x512xf32>
    %60 = arith.truncf %58 : vector<8x128xf32> to vector<8x128xbf16>
    %c0_33 = arith.constant 0 : index
    %c0_34 = arith.constant 0 : index
    %61 = vector.load %arg4[%c0_33, %c0_34] : memref<128x512xbf16, #tpu.memory_space<vmem>>, vector<128x512xbf16>
    %cst_35 = arith.constant dense<0.000000e+00> : vector<8x512xf32>
    %62 = tpu.matmul %60, %61, %cst_35 {dimension_numbers = #tpu.dot_dimension_numbers<[1], [0], [0], [1], [0, 0, 1, 1], [], []>} : vector<8x128xbf16>, vector<128x512xbf16>, vector<8x512xf32> -> vector<8x512xf32>
    %63 = arith.addf %59, %62 : vector<8x512xf32>
    %64 = vector.extract_strided_slice %63 {offsets = [0, 0], sizes = [8, 128], strides = [1, 1]} : vector<8x512xf32> to vector<8x128xf32>
    %cst_36 = arith.constant 5.000000e-01 : f32
    %65 = vector.broadcast %cst_36 : f32 to vector<8x128xf32>
    %66 = arith.mulf %65, %64 : vector<8x128xf32>
    %67 = math.tanh %66 : vector<8x128xf32>
    %cst_37 = arith.constant 5.000000e-01 : f32
    %68 = vector.broadcast %cst_37 : f32 to vector<8x128xf32>
    %69 = arith.mulf %68, %67 : vector<8x128xf32>
    %cst_38 = arith.constant 5.000000e-01 : f32
    %70 = vector.broadcast %cst_38 : f32 to vector<8x128xf32>
    %71 = arith.addf %69, %70 : vector<8x128xf32>
    %72 = vector.extract_strided_slice %63 {offsets = [0, 128], sizes = [8, 128], strides = [1, 1]} : vector<8x512xf32> to vector<8x128xf32>
    %cst_39 = arith.constant 5.000000e-01 : f32
    %73 = vector.broadcast %cst_39 : f32 to vector<8x128xf32>
    %74 = arith.mulf %73, %72 : vector<8x128xf32>
    %75 = math.tanh %74 : vector<8x128xf32>
    %cst_40 = arith.constant 5.000000e-01 : f32
    %76 = vector.broadcast %cst_40 : f32 to vector<8x128xf32>
    %77 = arith.mulf %76, %75 : vector<8x128xf32>
    %cst_41 = arith.constant 5.000000e-01 : f32
    %78 = vector.broadcast %cst_41 : f32 to vector<8x128xf32>
    %79 = arith.addf %77, %78 : vector<8x128xf32>
    %80 = vector.extract_strided_slice %63 {offsets = [0, 256], sizes = [8, 128], strides = [1, 1]} : vector<8x512xf32> to vector<8x128xf32>
    %81 = math.tanh %80 : vector<8x128xf32>
    %82 = vector.extract_strided_slice %63 {offsets = [0, 384], sizes = [8, 128], strides = [1, 1]} : vector<8x512xf32> to vector<8x128xf32>
    %cst_42 = arith.constant 5.000000e-01 : f32
    %83 = vector.broadcast %cst_42 : f32 to vector<8x128xf32>
    %84 = arith.mulf %83, %82 : vector<8x128xf32>
    %85 = math.tanh %84 : vector<8x128xf32>
    %cst_43 = arith.constant 5.000000e-01 : f32
    %86 = vector.broadcast %cst_43 : f32 to vector<8x128xf32>
    %87 = arith.mulf %86, %85 : vector<8x128xf32>
    %cst_44 = arith.constant 5.000000e-01 : f32
    %88 = vector.broadcast %cst_44 : f32 to vector<8x128xf32>
    %89 = arith.addf %87, %88 : vector<8x128xf32>
    %90 = arith.mulf %79, %56 : vector<8x128xf32>
    %91 = arith.mulf %71, %81 : vector<8x128xf32>
    %92 = arith.addf %90, %91 : vector<8x128xf32>
    %93 = math.tanh %92 : vector<8x128xf32>
    %94 = arith.mulf %89, %93 : vector<8x128xf32>
    %95 = tpu.concatenate %58, %22 in 1 : vector<8x128xf32>, vector<8x128xf32> -> vector<8x256xf32>
    %96 = arith.truncf %95 : vector<8x256xf32> to vector<8x256xbf16>
    %c0_45 = arith.constant 0 : index
    %c0_46 = arith.constant 0 : index
    %97 = vector.load %arg6[%c0_45, %c0_46] : memref<256x512xbf16, #tpu.memory_space<vmem>>, vector<256x512xbf16>
    %cst_47 = arith.constant dense<0.000000e+00> : vector<8x512xf32>
    %98 = tpu.matmul %96, %97, %cst_47 {dimension_numbers = #tpu.dot_dimension_numbers<[1], [0], [0], [1], [0, 0, 1, 1], [], []>} : vector<8x256xbf16>, vector<256x512xbf16>, vector<8x512xf32> -> vector<8x512xf32>
    %99 = arith.addf %98, %18 : vector<8x512xf32>
    %100 = vector.extract_strided_slice %99 {offsets = [0, 0], sizes = [8, 128], strides = [1, 1]} : vector<8x512xf32> to vector<8x128xf32>
    %cst_48 = arith.constant 5.000000e-01 : f32
    %101 = vector.broadcast %cst_48 : f32 to vector<8x128xf32>
    %102 = arith.mulf %101, %100 : vector<8x128xf32>
    %103 = math.tanh %102 : vector<8x128xf32>
    %cst_49 = arith.constant 5.000000e-01 : f32
    %104 = vector.broadcast %cst_49 : f32 to vector<8x128xf32>
    %105 = arith.mulf %104, %103 : vector<8x128xf32>
    %cst_50 = arith.constant 5.000000e-01 : f32
    %106 = vector.broadcast %cst_50 : f32 to vector<8x128xf32>
    %107 = arith.addf %105, %106 : vector<8x128xf32>
    %108 = vector.extract_strided_slice %99 {offsets = [0, 128], sizes = [8, 128], strides = [1, 1]} : vector<8x512xf32> to vector<8x128xf32>
    %cst_51 = arith.constant 5.000000e-01 : f32
    %109 = vector.broadcast %cst_51 : f32 to vector<8x128xf32>
    %110 = arith.mulf %109, %108 : vector<8x128xf32>
    %111 = math.tanh %110 : vector<8x128xf32>
    %cst_52 = arith.constant 5.000000e-01 : f32
    %112 = vector.broadcast %cst_52 : f32 to vector<8x128xf32>
    %113 = arith.mulf %112, %111 : vector<8x128xf32>
    %cst_53 = arith.constant 5.000000e-01 : f32
    %114 = vector.broadcast %cst_53 : f32 to vector<8x128xf32>
    %115 = arith.addf %113, %114 : vector<8x128xf32>
    %116 = vector.extract_strided_slice %99 {offsets = [0, 256], sizes = [8, 128], strides = [1, 1]} : vector<8x512xf32> to vector<8x128xf32>
    %117 = math.tanh %116 : vector<8x128xf32>
    %118 = vector.extract_strided_slice %99 {offsets = [0, 384], sizes = [8, 128], strides = [1, 1]} : vector<8x512xf32> to vector<8x128xf32>
    %cst_54 = arith.constant 5.000000e-01 : f32
    %119 = vector.broadcast %cst_54 : f32 to vector<8x128xf32>
    %120 = arith.mulf %119, %118 : vector<8x128xf32>
    %121 = math.tanh %120 : vector<8x128xf32>
    %cst_55 = arith.constant 5.000000e-01 : f32
    %122 = vector.broadcast %cst_55 : f32 to vector<8x128xf32>
    %123 = arith.mulf %122, %121 : vector<8x128xf32>
    %cst_56 = arith.constant 5.000000e-01 : f32
    %124 = vector.broadcast %cst_56 : f32 to vector<8x128xf32>
    %125 = arith.addf %123, %124 : vector<8x128xf32>
    %126 = arith.mulf %115, %22 : vector<8x128xf32>
    %127 = arith.mulf %107, %117 : vector<8x128xf32>
    %128 = arith.addf %126, %127 : vector<8x128xf32>
    %129 = math.tanh %128 : vector<8x128xf32>
    %130 = arith.mulf %125, %129 : vector<8x128xf32>
    %c16 = arith.constant 16 : index
    %c0_57 = arith.constant 0 : index
    %131 = vector.load %arg12[%c16, %c0_57] : memref<64x512xf32, #tpu.memory_space<vmem>>, vector<8x512xf32>
    %132 = arith.truncf %94 : vector<8x128xf32> to vector<8x128xbf16>
    %c0_58 = arith.constant 0 : index
    %c0_59 = arith.constant 0 : index
    %133 = vector.load %arg4[%c0_58, %c0_59] : memref<128x512xbf16, #tpu.memory_space<vmem>>, vector<128x512xbf16>
    %cst_60 = arith.constant dense<0.000000e+00> : vector<8x512xf32>
    %134 = tpu.matmul %132, %133, %cst_60 {dimension_numbers = #tpu.dot_dimension_numbers<[1], [0], [0], [1], [0, 0, 1, 1], [], []>} : vector<8x128xbf16>, vector<128x512xbf16>, vector<8x512xf32> -> vector<8x512xf32>
    %135 = arith.addf %131, %134 : vector<8x512xf32>
    %136 = vector.extract_strided_slice %135 {offsets = [0, 0], sizes = [8, 128], strides = [1, 1]} : vector<8x512xf32> to vector<8x128xf32>
    %cst_61 = arith.constant 5.000000e-01 : f32
    %137 = vector.broadcast %cst_61 : f32 to vector<8x128xf32>
    %138 = arith.mulf %137, %136 : vector<8x128xf32>
    %139 = math.tanh %138 : vector<8x128xf32>
    %cst_62 = arith.constant 5.000000e-01 : f32
    %140 = vector.broadcast %cst_62 : f32 to vector<8x128xf32>
    %141 = arith.mulf %140, %139 : vector<8x128xf32>
    %cst_63 = arith.constant 5.000000e-01 : f32
    %142 = vector.broadcast %cst_63 : f32 to vector<8x128xf32>
    %143 = arith.addf %141, %142 : vector<8x128xf32>
    %144 = vector.extract_strided_slice %135 {offsets = [0, 128], sizes = [8, 128], strides = [1, 1]} : vector<8x512xf32> to vector<8x128xf32>
    %cst_64 = arith.constant 5.000000e-01 : f32
    %145 = vector.broadcast %cst_64 : f32 to vector<8x128xf32>
    %146 = arith.mulf %145, %144 : vector<8x128xf32>
    %147 = math.tanh %146 : vector<8x128xf32>
    %cst_65 = arith.constant 5.000000e-01 : f32
    %148 = vector.broadcast %cst_65 : f32 to vector<8x128xf32>
    %149 = arith.mulf %148, %147 : vector<8x128xf32>
    %cst_66 = arith.constant 5.000000e-01 : f32
    %150 = vector.broadcast %cst_66 : f32 to vector<8x128xf32>
    %151 = arith.addf %149, %150 : vector<8x128xf32>
    %152 = vector.extract_strided_slice %135 {offsets = [0, 256], sizes = [8, 128], strides = [1, 1]} : vector<8x512xf32> to vector<8x128xf32>
    %153 = math.tanh %152 : vector<8x128xf32>
    %154 = vector.extract_strided_slice %135 {offsets = [0, 384], sizes = [8, 128], strides = [1, 1]} : vector<8x512xf32> to vector<8x128xf32>
    %cst_67 = arith.constant 5.000000e-01 : f32
    %155 = vector.broadcast %cst_67 : f32 to vector<8x128xf32>
    %156 = arith.mulf %155, %154 : vector<8x128xf32>
    %157 = math.tanh %156 : vector<8x128xf32>
    %cst_68 = arith.constant 5.000000e-01 : f32
    %158 = vector.broadcast %cst_68 : f32 to vector<8x128xf32>
    %159 = arith.mulf %158, %157 : vector<8x128xf32>
    %cst_69 = arith.constant 5.000000e-01 : f32
    %160 = vector.broadcast %cst_69 : f32 to vector<8x128xf32>
    %161 = arith.addf %159, %160 : vector<8x128xf32>
    %162 = arith.mulf %151, %92 : vector<8x128xf32>
    %163 = arith.mulf %143, %153 : vector<8x128xf32>
    %164 = arith.addf %162, %163 : vector<8x128xf32>
    %165 = math.tanh %164 : vector<8x128xf32>
    %166 = arith.mulf %161, %165 : vector<8x128xf32>
    %167 = tpu.concatenate %94, %130 in 1 : vector<8x128xf32>, vector<8x128xf32> -> vector<8x256xf32>
    %168 = arith.truncf %167 : vector<8x256xf32> to vector<8x256xbf16>
    %c0_70 = arith.constant 0 : index
    %c0_71 = arith.constant 0 : index
    %169 = vector.load %arg6[%c0_70, %c0_71] : memref<256x512xbf16, #tpu.memory_space<vmem>>, vector<256x512xbf16>
    %cst_72 = arith.constant dense<0.000000e+00> : vector<8x512xf32>
    %170 = tpu.matmul %168, %169, %cst_72 {dimension_numbers = #tpu.dot_dimension_numbers<[1], [0], [0], [1], [0, 0, 1, 1], [], []>} : vector<8x256xbf16>, vector<256x512xbf16>, vector<8x512xf32> -> vector<8x512xf32>
    %171 = arith.addf %170, %18 : vector<8x512xf32>
    %172 = vector.extract_strided_slice %171 {offsets = [0, 0], sizes = [8, 128], strides = [1, 1]} : vector<8x512xf32> to vector<8x128xf32>
    %cst_73 = arith.constant 5.000000e-01 : f32
    %173 = vector.broadcast %cst_73 : f32 to vector<8x128xf32>
    %174 = arith.mulf %173, %172 : vector<8x128xf32>
    %175 = math.tanh %174 : vector<8x128xf32>
    %cst_74 = arith.constant 5.000000e-01 : f32
    %176 = vector.broadcast %cst_74 : f32 to vector<8x128xf32>
    %177 = arith.mulf %176, %175 : vector<8x128xf32>
    %cst_75 = arith.constant 5.000000e-01 : f32
    %178 = vector.broadcast %cst_75 : f32 to vector<8x128xf32>
    %179 = arith.addf %177, %178 : vector<8x128xf32>
    %180 = vector.extract_strided_slice %171 {offsets = [0, 128], sizes = [8, 128], strides = [1, 1]} : vector<8x512xf32> to vector<8x128xf32>
    %cst_76 = arith.constant 5.000000e-01 : f32
    %181 = vector.broadcast %cst_76 : f32 to vector<8x128xf32>
    %182 = arith.mulf %181, %180 : vector<8x128xf32>
    %183 = math.tanh %182 : vector<8x128xf32>
    %cst_77 = arith.constant 5.000000e-01 : f32
    %184 = vector.broadcast %cst_77 : f32 to vector<8x128xf32>
    %185 = arith.mulf %184, %183 : vector<8x128xf32>
    %cst_78 = arith.constant 5.000000e-01 : f32
    %186 = vector.broadcast %cst_78 : f32 to vector<8x128xf32>
    %187 = arith.addf %185, %186 : vector<8x128xf32>
    %188 = vector.extract_strided_slice %171 {offsets = [0, 256], sizes = [8, 128], strides = [1, 1]} : vector<8x512xf32> to vector<8x128xf32>
    %189 = math.tanh %188 : vector<8x128xf32>
    %190 = vector.extract_strided_slice %171 {offsets = [0, 384], sizes = [8, 128], strides = [1, 1]} : vector<8x512xf32> to vector<8x128xf32>
    %cst_79 = arith.constant 5.000000e-01 : f32
    %191 = vector.broadcast %cst_79 : f32 to vector<8x128xf32>
    %192 = arith.mulf %191, %190 : vector<8x128xf32>
    %193 = math.tanh %192 : vector<8x128xf32>
    %cst_80 = arith.constant 5.000000e-01 : f32
    %194 = vector.broadcast %cst_80 : f32 to vector<8x128xf32>
    %195 = arith.mulf %194, %193 : vector<8x128xf32>
    %cst_81 = arith.constant 5.000000e-01 : f32
    %196 = vector.broadcast %cst_81 : f32 to vector<8x128xf32>
    %197 = arith.addf %195, %196 : vector<8x128xf32>
    %198 = arith.mulf %187, %128 : vector<8x128xf32>
    %199 = arith.mulf %179, %189 : vector<8x128xf32>
    %200 = arith.addf %198, %199 : vector<8x128xf32>
    %201 = math.tanh %200 : vector<8x128xf32>
    %202 = arith.mulf %197, %201 : vector<8x128xf32>
    %203 = tpu.concatenate %130, %22 in 1 : vector<8x128xf32>, vector<8x128xf32> -> vector<8x256xf32>
    %204 = arith.truncf %203 : vector<8x256xf32> to vector<8x256xbf16>
    %c0_82 = arith.constant 0 : index
    %c0_83 = arith.constant 0 : index
    %205 = vector.load %arg8[%c0_82, %c0_83] : memref<256x512xbf16, #tpu.memory_space<vmem>>, vector<256x512xbf16>
    %cst_84 = arith.constant dense<0.000000e+00> : vector<8x512xf32>
    %206 = tpu.matmul %204, %205, %cst_84 {dimension_numbers = #tpu.dot_dimension_numbers<[1], [0], [0], [1], [0, 0, 1, 1], [], []>} : vector<8x256xbf16>, vector<256x512xbf16>, vector<8x512xf32> -> vector<8x512xf32>
    %207 = arith.addf %206, %21 : vector<8x512xf32>
    %208 = vector.extract_strided_slice %207 {offsets = [0, 0], sizes = [8, 128], strides = [1, 1]} : vector<8x512xf32> to vector<8x128xf32>
    %cst_85 = arith.constant 5.000000e-01 : f32
    %209 = vector.broadcast %cst_85 : f32 to vector<8x128xf32>
    %210 = arith.mulf %209, %208 : vector<8x128xf32>
    %211 = math.tanh %210 : vector<8x128xf32>
    %cst_86 = arith.constant 5.000000e-01 : f32
    %212 = vector.broadcast %cst_86 : f32 to vector<8x128xf32>
    %213 = arith.mulf %212, %211 : vector<8x128xf32>
    %cst_87 = arith.constant 5.000000e-01 : f32
    %214 = vector.broadcast %cst_87 : f32 to vector<8x128xf32>
    %215 = arith.addf %213, %214 : vector<8x128xf32>
    %216 = vector.extract_strided_slice %207 {offsets = [0, 128], sizes = [8, 128], strides = [1, 1]} : vector<8x512xf32> to vector<8x128xf32>
    %cst_88 = arith.constant 5.000000e-01 : f32
    %217 = vector.broadcast %cst_88 : f32 to vector<8x128xf32>
    %218 = arith.mulf %217, %216 : vector<8x128xf32>
    %219 = math.tanh %218 : vector<8x128xf32>
    %cst_89 = arith.constant 5.000000e-01 : f32
    %220 = vector.broadcast %cst_89 : f32 to vector<8x128xf32>
    %221 = arith.mulf %220, %219 : vector<8x128xf32>
    %cst_90 = arith.constant 5.000000e-01 : f32
    %222 = vector.broadcast %cst_90 : f32 to vector<8x128xf32>
    %223 = arith.addf %221, %222 : vector<8x128xf32>
    %224 = vector.extract_strided_slice %207 {offsets = [0, 256], sizes = [8, 128], strides = [1, 1]} : vector<8x512xf32> to vector<8x128xf32>
    %225 = math.tanh %224 : vector<8x128xf32>
    %226 = vector.extract_strided_slice %207 {offsets = [0, 384], sizes = [8, 128], strides = [1, 1]} : vector<8x512xf32> to vector<8x128xf32>
    %cst_91 = arith.constant 5.000000e-01 : f32
    %227 = vector.broadcast %cst_91 : f32 to vector<8x128xf32>
    %228 = arith.mulf %227, %226 : vector<8x128xf32>
    %229 = math.tanh %228 : vector<8x128xf32>
    %cst_92 = arith.constant 5.000000e-01 : f32
    %230 = vector.broadcast %cst_92 : f32 to vector<8x128xf32>
    %231 = arith.mulf %230, %229 : vector<8x128xf32>
    %cst_93 = arith.constant 5.000000e-01 : f32
    %232 = vector.broadcast %cst_93 : f32 to vector<8x128xf32>
    %233 = arith.addf %231, %232 : vector<8x128xf32>
    %234 = arith.mulf %223, %22 : vector<8x128xf32>
    %235 = arith.mulf %215, %225 : vector<8x128xf32>
    %236 = arith.addf %234, %235 : vector<8x128xf32>
    %237 = math.tanh %236 : vector<8x128xf32>
    %238 = arith.mulf %233, %237 : vector<8x128xf32>
    %c24 = arith.constant 24 : index
    %c0_94 = arith.constant 0 : index
    %239 = vector.load %arg12[%c24, %c0_94] : memref<64x512xf32, #tpu.memory_space<vmem>>, vector<8x512xf32>
    %240 = arith.truncf %166 : vector<8x128xf32> to vector<8x128xbf16>
    %c0_95 = arith.constant 0 : index
    %c0_96 = arith.constant 0 : index
    %241 = vector.load %arg4[%c0_95, %c0_96] : memref<128x512xbf16, #tpu.memory_space<vmem>>, vector<128x512xbf16>
    %cst_97 = arith.constant dense<0.000000e+00> : vector<8x512xf32>
    %242 = tpu.matmul %240, %241, %cst_97 {dimension_numbers = #tpu.dot_dimension_numbers<[1], [0], [0], [1], [0, 0, 1, 1], [], []>} : vector<8x128xbf16>, vector<128x512xbf16>, vector<8x512xf32> -> vector<8x512xf32>
    %243 = arith.addf %239, %242 : vector<8x512xf32>
    %244 = vector.extract_strided_slice %243 {offsets = [0, 0], sizes = [8, 128], strides = [1, 1]} : vector<8x512xf32> to vector<8x128xf32>
    %cst_98 = arith.constant 5.000000e-01 : f32
    %245 = vector.broadcast %cst_98 : f32 to vector<8x128xf32>
    %246 = arith.mulf %245, %244 : vector<8x128xf32>
    %247 = math.tanh %246 : vector<8x128xf32>
    %cst_99 = arith.constant 5.000000e-01 : f32
    %248 = vector.broadcast %cst_99 : f32 to vector<8x128xf32>
    %249 = arith.mulf %248, %247 : vector<8x128xf32>
    %cst_100 = arith.constant 5.000000e-01 : f32
    %250 = vector.broadcast %cst_100 : f32 to vector<8x128xf32>
    %251 = arith.addf %249, %250 : vector<8x128xf32>
    %252 = vector.extract_strided_slice %243 {offsets = [0, 128], sizes = [8, 128], strides = [1, 1]} : vector<8x512xf32> to vector<8x128xf32>
    %cst_101 = arith.constant 5.000000e-01 : f32
    %253 = vector.broadcast %cst_101 : f32 to vector<8x128xf32>
    %254 = arith.mulf %253, %252 : vector<8x128xf32>
    %255 = math.tanh %254 : vector<8x128xf32>
    %cst_102 = arith.constant 5.000000e-01 : f32
    %256 = vector.broadcast %cst_102 : f32 to vector<8x128xf32>
    %257 = arith.mulf %256, %255 : vector<8x128xf32>
    %cst_103 = arith.constant 5.000000e-01 : f32
    %258 = vector.broadcast %cst_103 : f32 to vector<8x128xf32>
    %259 = arith.addf %257, %258 : vector<8x128xf32>
    %260 = vector.extract_strided_slice %243 {offsets = [0, 256], sizes = [8, 128], strides = [1, 1]} : vector<8x512xf32> to vector<8x128xf32>
    %261 = math.tanh %260 : vector<8x128xf32>
    %262 = vector.extract_strided_slice %243 {offsets = [0, 384], sizes = [8, 128], strides = [1, 1]} : vector<8x512xf32> to vector<8x128xf32>
    %cst_104 = arith.constant 5.000000e-01 : f32
    %263 = vector.broadcast %cst_104 : f32 to vector<8x128xf32>
    %264 = arith.mulf %263, %262 : vector<8x128xf32>
    %265 = math.tanh %264 : vector<8x128xf32>
    %cst_105 = arith.constant 5.000000e-01 : f32
    %266 = vector.broadcast %cst_105 : f32 to vector<8x128xf32>
    %267 = arith.mulf %266, %265 : vector<8x128xf32>
    %cst_106 = arith.constant 5.000000e-01 : f32
    %268 = vector.broadcast %cst_106 : f32 to vector<8x128xf32>
    %269 = arith.addf %267, %268 : vector<8x128xf32>
    %270 = arith.mulf %259, %164 : vector<8x128xf32>
    %271 = arith.mulf %251, %261 : vector<8x128xf32>
    %272 = arith.addf %270, %271 : vector<8x128xf32>
    %273 = math.tanh %272 : vector<8x128xf32>
    %274 = arith.mulf %269, %273 : vector<8x128xf32>
    %275 = tpu.concatenate %166, %202 in 1 : vector<8x128xf32>, vector<8x128xf32> -> vector<8x256xf32>
    %276 = arith.truncf %275 : vector<8x256xf32> to vector<8x256xbf16>
    %c0_107 = arith.constant 0 : index
    %c0_108 = arith.constant 0 : index
    %277 = vector.load %arg6[%c0_107, %c0_108] : memref<256x512xbf16, #tpu.memory_space<vmem>>, vector<256x512xbf16>
    %cst_109 = arith.constant dense<0.000000e+00> : vector<8x512xf32>
    %278 = tpu.matmul %276, %277, %cst_109 {dimension_numbers = #tpu.dot_dimension_numbers<[1], [0], [0], [1], [0, 0, 1, 1], [], []>} : vector<8x256xbf16>, vector<256x512xbf16>, vector<8x512xf32> -> vector<8x512xf32>
    %279 = arith.addf %278, %18 : vector<8x512xf32>
    %280 = vector.extract_strided_slice %279 {offsets = [0, 0], sizes = [8, 128], strides = [1, 1]} : vector<8x512xf32> to vector<8x128xf32>
    %cst_110 = arith.constant 5.000000e-01 : f32
    %281 = vector.broadcast %cst_110 : f32 to vector<8x128xf32>
    %282 = arith.mulf %281, %280 : vector<8x128xf32>
    %283 = math.tanh %282 : vector<8x128xf32>
    %cst_111 = arith.constant 5.000000e-01 : f32
    %284 = vector.broadcast %cst_111 : f32 to vector<8x128xf32>
    %285 = arith.mulf %284, %283 : vector<8x128xf32>
    %cst_112 = arith.constant 5.000000e-01 : f32
    %286 = vector.broadcast %cst_112 : f32 to vector<8x128xf32>
    %287 = arith.addf %285, %286 : vector<8x128xf32>
    %288 = vector.extract_strided_slice %279 {offsets = [0, 128], sizes = [8, 128], strides = [1, 1]} : vector<8x512xf32> to vector<8x128xf32>
    %cst_113 = arith.constant 5.000000e-01 : f32
    %289 = vector.broadcast %cst_113 : f32 to vector<8x128xf32>
    %290 = arith.mulf %289, %288 : vector<8x128xf32>
    %291 = math.tanh %290 : vector<8x128xf32>
    %cst_114 = arith.constant 5.000000e-01 : f32
    %292 = vector.broadcast %cst_114 : f32 to vector<8x128xf32>
    %293 = arith.mulf %292, %291 : vector<8x128xf32>
    %cst_115 = arith.constant 5.000000e-01 : f32
    %294 = vector.broadcast %cst_115 : f32 to vector<8x128xf32>
    %295 = arith.addf %293, %294 : vector<8x128xf32>
    %296 = vector.extract_strided_slice %279 {offsets = [0, 256], sizes = [8, 128], strides = [1, 1]} : vector<8x512xf32> to vector<8x128xf32>
    %297 = math.tanh %296 : vector<8x128xf32>
    %298 = vector.extract_strided_slice %279 {offsets = [0, 384], sizes = [8, 128], strides = [1, 1]} : vector<8x512xf32> to vector<8x128xf32>
    %cst_116 = arith.constant 5.000000e-01 : f32
    %299 = vector.broadcast %cst_116 : f32 to vector<8x128xf32>
    %300 = arith.mulf %299, %298 : vector<8x128xf32>
    %301 = math.tanh %300 : vector<8x128xf32>
    %cst_117 = arith.constant 5.000000e-01 : f32
    %302 = vector.broadcast %cst_117 : f32 to vector<8x128xf32>
    %303 = arith.mulf %302, %301 : vector<8x128xf32>
    %cst_118 = arith.constant 5.000000e-01 : f32
    %304 = vector.broadcast %cst_118 : f32 to vector<8x128xf32>
    %305 = arith.addf %303, %304 : vector<8x128xf32>
    %306 = arith.mulf %295, %200 : vector<8x128xf32>
    %307 = arith.mulf %287, %297 : vector<8x128xf32>
    %308 = arith.addf %306, %307 : vector<8x128xf32>
    %309 = math.tanh %308 : vector<8x128xf32>
    %310 = arith.mulf %305, %309 : vector<8x128xf32>
    %311 = tpu.concatenate %202, %238 in 1 : vector<8x128xf32>, vector<8x128xf32> -> vector<8x256xf32>
    %312 = arith.truncf %311 : vector<8x256xf32> to vector<8x256xbf16>
    %c0_119 = arith.constant 0 : index
    %c0_120 = arith.constant 0 : index
    %313 = vector.load %arg8[%c0_119, %c0_120] : memref<256x512xbf16, #tpu.memory_space<vmem>>, vector<256x512xbf16>
    %cst_121 = arith.constant dense<0.000000e+00> : vector<8x512xf32>
    %314 = tpu.matmul %312, %313, %cst_121 {dimension_numbers = #tpu.dot_dimension_numbers<[1], [0], [0], [1], [0, 0, 1, 1], [], []>} : vector<8x256xbf16>, vector<256x512xbf16>, vector<8x512xf32> -> vector<8x512xf32>
    %315 = arith.addf %314, %21 : vector<8x512xf32>
    %316 = vector.extract_strided_slice %315 {offsets = [0, 0], sizes = [8, 128], strides = [1, 1]} : vector<8x512xf32> to vector<8x128xf32>
    %cst_122 = arith.constant 5.000000e-01 : f32
    %317 = vector.broadcast %cst_122 : f32 to vector<8x128xf32>
    %318 = arith.mulf %317, %316 : vector<8x128xf32>
    %319 = math.tanh %318 : vector<8x128xf32>
    %cst_123 = arith.constant 5.000000e-01 : f32
    %320 = vector.broadcast %cst_123 : f32 to vector<8x128xf32>
    %321 = arith.mulf %320, %319 : vector<8x128xf32>
    %cst_124 = arith.constant 5.000000e-01 : f32
    %322 = vector.broadcast %cst_124 : f32 to vector<8x128xf32>
    %323 = arith.addf %321, %322 : vector<8x128xf32>
    %324 = vector.extract_strided_slice %315 {offsets = [0, 128], sizes = [8, 128], strides = [1, 1]} : vector<8x512xf32> to vector<8x128xf32>
    %cst_125 = arith.constant 5.000000e-01 : f32
    %325 = vector.broadcast %cst_125 : f32 to vector<8x128xf32>
    %326 = arith.mulf %325, %324 : vector<8x128xf32>
    %327 = math.tanh %326 : vector<8x128xf32>
    %cst_126 = arith.constant 5.000000e-01 : f32
    %328 = vector.broadcast %cst_126 : f32 to vector<8x128xf32>
    %329 = arith.mulf %328, %327 : vector<8x128xf32>
    %cst_127 = arith.constant 5.000000e-01 : f32
    %330 = vector.broadcast %cst_127 : f32 to vector<8x128xf32>
    %331 = arith.addf %329, %330 : vector<8x128xf32>
    %332 = vector.extract_strided_slice %315 {offsets = [0, 256], sizes = [8, 128], strides = [1, 1]} : vector<8x512xf32> to vector<8x128xf32>
    %333 = math.tanh %332 : vector<8x128xf32>
    %334 = vector.extract_strided_slice %315 {offsets = [0, 384], sizes = [8, 128], strides = [1, 1]} : vector<8x512xf32> to vector<8x128xf32>
    %cst_128 = arith.constant 5.000000e-01 : f32
    %335 = vector.broadcast %cst_128 : f32 to vector<8x128xf32>
    %336 = arith.mulf %335, %334 : vector<8x128xf32>
    %337 = math.tanh %336 : vector<8x128xf32>
    %cst_129 = arith.constant 5.000000e-01 : f32
    %338 = vector.broadcast %cst_129 : f32 to vector<8x128xf32>
    %339 = arith.mulf %338, %337 : vector<8x128xf32>
    %cst_130 = arith.constant 5.000000e-01 : f32
    %340 = vector.broadcast %cst_130 : f32 to vector<8x128xf32>
    %341 = arith.addf %339, %340 : vector<8x128xf32>
    %342 = arith.mulf %331, %236 : vector<8x128xf32>
    %343 = arith.mulf %323, %333 : vector<8x128xf32>
    %344 = arith.addf %342, %343 : vector<8x128xf32>
    %345 = math.tanh %344 : vector<8x128xf32>
    %346 = arith.mulf %341, %345 : vector<8x128xf32>
    %c32 = arith.constant 32 : index
    %c0_131 = arith.constant 0 : index
    %347 = vector.load %arg12[%c32, %c0_131] : memref<64x512xf32, #tpu.memory_space<vmem>>, vector<8x512xf32>
    %348 = arith.truncf %274 : vector<8x128xf32> to vector<8x128xbf16>
    %c0_132 = arith.constant 0 : index
    %c0_133 = arith.constant 0 : index
    %349 = vector.load %arg4[%c0_132, %c0_133] : memref<128x512xbf16, #tpu.memory_space<vmem>>, vector<128x512xbf16>
    %cst_134 = arith.constant dense<0.000000e+00> : vector<8x512xf32>
    %350 = tpu.matmul %348, %349, %cst_134 {dimension_numbers = #tpu.dot_dimension_numbers<[1], [0], [0], [1], [0, 0, 1, 1], [], []>} : vector<8x128xbf16>, vector<128x512xbf16>, vector<8x512xf32> -> vector<8x512xf32>
    %351 = arith.addf %347, %350 : vector<8x512xf32>
    %352 = vector.extract_strided_slice %351 {offsets = [0, 0], sizes = [8, 128], strides = [1, 1]} : vector<8x512xf32> to vector<8x128xf32>
    %cst_135 = arith.constant 5.000000e-01 : f32
    %353 = vector.broadcast %cst_135 : f32 to vector<8x128xf32>
    %354 = arith.mulf %353, %352 : vector<8x128xf32>
    %355 = math.tanh %354 : vector<8x128xf32>
    %cst_136 = arith.constant 5.000000e-01 : f32
    %356 = vector.broadcast %cst_136 : f32 to vector<8x128xf32>
    %357 = arith.mulf %356, %355 : vector<8x128xf32>
    %cst_137 = arith.constant 5.000000e-01 : f32
    %358 = vector.broadcast %cst_137 : f32 to vector<8x128xf32>
    %359 = arith.addf %357, %358 : vector<8x128xf32>
    %360 = vector.extract_strided_slice %351 {offsets = [0, 128], sizes = [8, 128], strides = [1, 1]} : vector<8x512xf32> to vector<8x128xf32>
    %cst_138 = arith.constant 5.000000e-01 : f32
    %361 = vector.broadcast %cst_138 : f32 to vector<8x128xf32>
    %362 = arith.mulf %361, %360 : vector<8x128xf32>
    %363 = math.tanh %362 : vector<8x128xf32>
    %cst_139 = arith.constant 5.000000e-01 : f32
    %364 = vector.broadcast %cst_139 : f32 to vector<8x128xf32>
    %365 = arith.mulf %364, %363 : vector<8x128xf32>
    %cst_140 = arith.constant 5.000000e-01 : f32
    %366 = vector.broadcast %cst_140 : f32 to vector<8x128xf32>
    %367 = arith.addf %365, %366 : vector<8x128xf32>
    %368 = vector.extract_strided_slice %351 {offsets = [0, 256], sizes = [8, 128], strides = [1, 1]} : vector<8x512xf32> to vector<8x128xf32>
    %369 = math.tanh %368 : vector<8x128xf32>
    %370 = vector.extract_strided_slice %351 {offsets = [0, 384], sizes = [8, 128], strides = [1, 1]} : vector<8x512xf32> to vector<8x128xf32>
    %cst_141 = arith.constant 5.000000e-01 : f32
    %371 = vector.broadcast %cst_141 : f32 to vector<8x128xf32>
    %372 = arith.mulf %371, %370 : vector<8x128xf32>
    %373 = math.tanh %372 : vector<8x128xf32>
    %cst_142 = arith.constant 5.000000e-01 : f32
    %374 = vector.broadcast %cst_142 : f32 to vector<8x128xf32>
    %375 = arith.mulf %374, %373 : vector<8x128xf32>
    %cst_143 = arith.constant 5.000000e-01 : f32
    %376 = vector.broadcast %cst_143 : f32 to vector<8x128xf32>
    %377 = arith.addf %375, %376 : vector<8x128xf32>
    %378 = arith.mulf %367, %272 : vector<8x128xf32>
    %379 = arith.mulf %359, %369 : vector<8x128xf32>
    %380 = arith.addf %378, %379 : vector<8x128xf32>
    %381 = math.tanh %380 : vector<8x128xf32>
    %382 = arith.mulf %377, %381 : vector<8x128xf32>
    %383 = tpu.concatenate %274, %310 in 1 : vector<8x128xf32>, vector<8x128xf32> -> vector<8x256xf32>
    %384 = arith.truncf %383 : vector<8x256xf32> to vector<8x256xbf16>
    %c0_144 = arith.constant 0 : index
    %c0_145 = arith.constant 0 : index
    %385 = vector.load %arg6[%c0_144, %c0_145] : memref<256x512xbf16, #tpu.memory_space<vmem>>, vector<256x512xbf16>
    %cst_146 = arith.constant dense<0.000000e+00> : vector<8x512xf32>
    %386 = tpu.matmul %384, %385, %cst_146 {dimension_numbers = #tpu.dot_dimension_numbers<[1], [0], [0], [1], [0, 0, 1, 1], [], []>} : vector<8x256xbf16>, vector<256x512xbf16>, vector<8x512xf32> -> vector<8x512xf32>
    %387 = arith.addf %386, %18 : vector<8x512xf32>
    %388 = vector.extract_strided_slice %387 {offsets = [0, 0], sizes = [8, 128], strides = [1, 1]} : vector<8x512xf32> to vector<8x128xf32>
    %cst_147 = arith.constant 5.000000e-01 : f32
    %389 = vector.broadcast %cst_147 : f32 to vector<8x128xf32>
    %390 = arith.mulf %389, %388 : vector<8x128xf32>
    %391 = math.tanh %390 : vector<8x128xf32>
    %cst_148 = arith.constant 5.000000e-01 : f32
    %392 = vector.broadcast %cst_148 : f32 to vector<8x128xf32>
    %393 = arith.mulf %392, %391 : vector<8x128xf32>
    %cst_149 = arith.constant 5.000000e-01 : f32
    %394 = vector.broadcast %cst_149 : f32 to vector<8x128xf32>
    %395 = arith.addf %393, %394 : vector<8x128xf32>
    %396 = vector.extract_strided_slice %387 {offsets = [0, 128], sizes = [8, 128], strides = [1, 1]} : vector<8x512xf32> to vector<8x128xf32>
    %cst_150 = arith.constant 5.000000e-01 : f32
    %397 = vector.broadcast %cst_150 : f32 to vector<8x128xf32>
    %398 = arith.mulf %397, %396 : vector<8x128xf32>
    %399 = math.tanh %398 : vector<8x128xf32>
    %cst_151 = arith.constant 5.000000e-01 : f32
    %400 = vector.broadcast %cst_151 : f32 to vector<8x128xf32>
    %401 = arith.mulf %400, %399 : vector<8x128xf32>
    %cst_152 = arith.constant 5.000000e-01 : f32
    %402 = vector.broadcast %cst_152 : f32 to vector<8x128xf32>
    %403 = arith.addf %401, %402 : vector<8x128xf32>
    %404 = vector.extract_strided_slice %387 {offsets = [0, 256], sizes = [8, 128], strides = [1, 1]} : vector<8x512xf32> to vector<8x128xf32>
    %405 = math.tanh %404 : vector<8x128xf32>
    %406 = vector.extract_strided_slice %387 {offsets = [0, 384], sizes = [8, 128], strides = [1, 1]} : vector<8x512xf32> to vector<8x128xf32>
    %cst_153 = arith.constant 5.000000e-01 : f32
    %407 = vector.broadcast %cst_153 : f32 to vector<8x128xf32>
    %408 = arith.mulf %407, %406 : vector<8x128xf32>
    %409 = math.tanh %408 : vector<8x128xf32>
    %cst_154 = arith.constant 5.000000e-01 : f32
    %410 = vector.broadcast %cst_154 : f32 to vector<8x128xf32>
    %411 = arith.mulf %410, %409 : vector<8x128xf32>
    %cst_155 = arith.constant 5.000000e-01 : f32
    %412 = vector.broadcast %cst_155 : f32 to vector<8x128xf32>
    %413 = arith.addf %411, %412 : vector<8x128xf32>
    %414 = arith.mulf %403, %308 : vector<8x128xf32>
    %415 = arith.mulf %395, %405 : vector<8x128xf32>
    %416 = arith.addf %414, %415 : vector<8x128xf32>
    %417 = math.tanh %416 : vector<8x128xf32>
    %418 = arith.mulf %413, %417 : vector<8x128xf32>
    %419 = tpu.concatenate %310, %346 in 1 : vector<8x128xf32>, vector<8x128xf32> -> vector<8x256xf32>
    %420 = arith.truncf %419 : vector<8x256xf32> to vector<8x256xbf16>
    %c0_156 = arith.constant 0 : index
    %c0_157 = arith.constant 0 : index
    %421 = vector.load %arg8[%c0_156, %c0_157] : memref<256x512xbf16, #tpu.memory_space<vmem>>, vector<256x512xbf16>
    %cst_158 = arith.constant dense<0.000000e+00> : vector<8x512xf32>
    %422 = tpu.matmul %420, %421, %cst_158 {dimension_numbers = #tpu.dot_dimension_numbers<[1], [0], [0], [1], [0, 0, 1, 1], [], []>} : vector<8x256xbf16>, vector<256x512xbf16>, vector<8x512xf32> -> vector<8x512xf32>
    %423 = arith.addf %422, %21 : vector<8x512xf32>
    %424 = vector.extract_strided_slice %423 {offsets = [0, 0], sizes = [8, 128], strides = [1, 1]} : vector<8x512xf32> to vector<8x128xf32>
    %cst_159 = arith.constant 5.000000e-01 : f32
    %425 = vector.broadcast %cst_159 : f32 to vector<8x128xf32>
    %426 = arith.mulf %425, %424 : vector<8x128xf32>
    %427 = math.tanh %426 : vector<8x128xf32>
    %cst_160 = arith.constant 5.000000e-01 : f32
    %428 = vector.broadcast %cst_160 : f32 to vector<8x128xf32>
    %429 = arith.mulf %428, %427 : vector<8x128xf32>
    %cst_161 = arith.constant 5.000000e-01 : f32
    %430 = vector.broadcast %cst_161 : f32 to vector<8x128xf32>
    %431 = arith.addf %429, %430 : vector<8x128xf32>
    %432 = vector.extract_strided_slice %423 {offsets = [0, 128], sizes = [8, 128], strides = [1, 1]} : vector<8x512xf32> to vector<8x128xf32>
    %cst_162 = arith.constant 5.000000e-01 : f32
    %433 = vector.broadcast %cst_162 : f32 to vector<8x128xf32>
    %434 = arith.mulf %433, %432 : vector<8x128xf32>
    %435 = math.tanh %434 : vector<8x128xf32>
    %cst_163 = arith.constant 5.000000e-01 : f32
    %436 = vector.broadcast %cst_163 : f32 to vector<8x128xf32>
    %437 = arith.mulf %436, %435 : vector<8x128xf32>
    %cst_164 = arith.constant 5.000000e-01 : f32
    %438 = vector.broadcast %cst_164 : f32 to vector<8x128xf32>
    %439 = arith.addf %437, %438 : vector<8x128xf32>
    %440 = vector.extract_strided_slice %423 {offsets = [0, 256], sizes = [8, 128], strides = [1, 1]} : vector<8x512xf32> to vector<8x128xf32>
    %441 = math.tanh %440 : vector<8x128xf32>
    %442 = vector.extract_strided_slice %423 {offsets = [0, 384], sizes = [8, 128], strides = [1, 1]} : vector<8x512xf32> to vector<8x128xf32>
    %cst_165 = arith.constant 5.000000e-01 : f32
    %443 = vector.broadcast %cst_165 : f32 to vector<8x128xf32>
    %444 = arith.mulf %443, %442 : vector<8x128xf32>
    %445 = math.tanh %444 : vector<8x128xf32>
    %cst_166 = arith.constant 5.000000e-01 : f32
    %446 = vector.broadcast %cst_166 : f32 to vector<8x128xf32>
    %447 = arith.mulf %446, %445 : vector<8x128xf32>
    %cst_167 = arith.constant 5.000000e-01 : f32
    %448 = vector.broadcast %cst_167 : f32 to vector<8x128xf32>
    %449 = arith.addf %447, %448 : vector<8x128xf32>
    %450 = arith.mulf %439, %344 : vector<8x128xf32>
    %451 = arith.mulf %431, %441 : vector<8x128xf32>
    %452 = arith.addf %450, %451 : vector<8x128xf32>
    %453 = math.tanh %452 : vector<8x128xf32>
    %454 = arith.mulf %449, %453 : vector<8x128xf32>
    %c40 = arith.constant 40 : index
    %c0_168 = arith.constant 0 : index
    %455 = vector.load %arg12[%c40, %c0_168] : memref<64x512xf32, #tpu.memory_space<vmem>>, vector<8x512xf32>
    %456 = arith.truncf %382 : vector<8x128xf32> to vector<8x128xbf16>
    %c0_169 = arith.constant 0 : index
    %c0_170 = arith.constant 0 : index
    %457 = vector.load %arg4[%c0_169, %c0_170] : memref<128x512xbf16, #tpu.memory_space<vmem>>, vector<128x512xbf16>
    %cst_171 = arith.constant dense<0.000000e+00> : vector<8x512xf32>
    %458 = tpu.matmul %456, %457, %cst_171 {dimension_numbers = #tpu.dot_dimension_numbers<[1], [0], [0], [1], [0, 0, 1, 1], [], []>} : vector<8x128xbf16>, vector<128x512xbf16>, vector<8x512xf32> -> vector<8x512xf32>
    %459 = arith.addf %455, %458 : vector<8x512xf32>
    %460 = vector.extract_strided_slice %459 {offsets = [0, 0], sizes = [8, 128], strides = [1, 1]} : vector<8x512xf32> to vector<8x128xf32>
    %cst_172 = arith.constant 5.000000e-01 : f32
    %461 = vector.broadcast %cst_172 : f32 to vector<8x128xf32>
    %462 = arith.mulf %461, %460 : vector<8x128xf32>
    %463 = math.tanh %462 : vector<8x128xf32>
    %cst_173 = arith.constant 5.000000e-01 : f32
    %464 = vector.broadcast %cst_173 : f32 to vector<8x128xf32>
    %465 = arith.mulf %464, %463 : vector<8x128xf32>
    %cst_174 = arith.constant 5.000000e-01 : f32
    %466 = vector.broadcast %cst_174 : f32 to vector<8x128xf32>
    %467 = arith.addf %465, %466 : vector<8x128xf32>
    %468 = vector.extract_strided_slice %459 {offsets = [0, 128], sizes = [8, 128], strides = [1, 1]} : vector<8x512xf32> to vector<8x128xf32>
    %cst_175 = arith.constant 5.000000e-01 : f32
    %469 = vector.broadcast %cst_175 : f32 to vector<8x128xf32>
    %470 = arith.mulf %469, %468 : vector<8x128xf32>
    %471 = math.tanh %470 : vector<8x128xf32>
    %cst_176 = arith.constant 5.000000e-01 : f32
    %472 = vector.broadcast %cst_176 : f32 to vector<8x128xf32>
    %473 = arith.mulf %472, %471 : vector<8x128xf32>
    %cst_177 = arith.constant 5.000000e-01 : f32
    %474 = vector.broadcast %cst_177 : f32 to vector<8x128xf32>
    %475 = arith.addf %473, %474 : vector<8x128xf32>
    %476 = vector.extract_strided_slice %459 {offsets = [0, 256], sizes = [8, 128], strides = [1, 1]} : vector<8x512xf32> to vector<8x128xf32>
    %477 = math.tanh %476 : vector<8x128xf32>
    %478 = vector.extract_strided_slice %459 {offsets = [0, 384], sizes = [8, 128], strides = [1, 1]} : vector<8x512xf32> to vector<8x128xf32>
    %cst_178 = arith.constant 5.000000e-01 : f32
    %479 = vector.broadcast %cst_178 : f32 to vector<8x128xf32>
    %480 = arith.mulf %479, %478 : vector<8x128xf32>
    %481 = math.tanh %480 : vector<8x128xf32>
    %cst_179 = arith.constant 5.000000e-01 : f32
    %482 = vector.broadcast %cst_179 : f32 to vector<8x128xf32>
    %483 = arith.mulf %482, %481 : vector<8x128xf32>
    %cst_180 = arith.constant 5.000000e-01 : f32
    %484 = vector.broadcast %cst_180 : f32 to vector<8x128xf32>
    %485 = arith.addf %483, %484 : vector<8x128xf32>
    %486 = arith.mulf %475, %380 : vector<8x128xf32>
    %487 = arith.mulf %467, %477 : vector<8x128xf32>
    %488 = arith.addf %486, %487 : vector<8x128xf32>
    %489 = math.tanh %488 : vector<8x128xf32>
    %490 = arith.mulf %485, %489 : vector<8x128xf32>
    %491 = tpu.concatenate %382, %418 in 1 : vector<8x128xf32>, vector<8x128xf32> -> vector<8x256xf32>
    %492 = arith.truncf %491 : vector<8x256xf32> to vector<8x256xbf16>
    %c0_181 = arith.constant 0 : index
    %c0_182 = arith.constant 0 : index
    %493 = vector.load %arg6[%c0_181, %c0_182] : memref<256x512xbf16, #tpu.memory_space<vmem>>, vector<256x512xbf16>
    %cst_183 = arith.constant dense<0.000000e+00> : vector<8x512xf32>
    %494 = tpu.matmul %492, %493, %cst_183 {dimension_numbers = #tpu.dot_dimension_numbers<[1], [0], [0], [1], [0, 0, 1, 1], [], []>} : vector<8x256xbf16>, vector<256x512xbf16>, vector<8x512xf32> -> vector<8x512xf32>
    %495 = arith.addf %494, %18 : vector<8x512xf32>
    %496 = vector.extract_strided_slice %495 {offsets = [0, 0], sizes = [8, 128], strides = [1, 1]} : vector<8x512xf32> to vector<8x128xf32>
    %cst_184 = arith.constant 5.000000e-01 : f32
    %497 = vector.broadcast %cst_184 : f32 to vector<8x128xf32>
    %498 = arith.mulf %497, %496 : vector<8x128xf32>
    %499 = math.tanh %498 : vector<8x128xf32>
    %cst_185 = arith.constant 5.000000e-01 : f32
    %500 = vector.broadcast %cst_185 : f32 to vector<8x128xf32>
    %501 = arith.mulf %500, %499 : vector<8x128xf32>
    %cst_186 = arith.constant 5.000000e-01 : f32
    %502 = vector.broadcast %cst_186 : f32 to vector<8x128xf32>
    %503 = arith.addf %501, %502 : vector<8x128xf32>
    %504 = vector.extract_strided_slice %495 {offsets = [0, 128], sizes = [8, 128], strides = [1, 1]} : vector<8x512xf32> to vector<8x128xf32>
    %cst_187 = arith.constant 5.000000e-01 : f32
    %505 = vector.broadcast %cst_187 : f32 to vector<8x128xf32>
    %506 = arith.mulf %505, %504 : vector<8x128xf32>
    %507 = math.tanh %506 : vector<8x128xf32>
    %cst_188 = arith.constant 5.000000e-01 : f32
    %508 = vector.broadcast %cst_188 : f32 to vector<8x128xf32>
    %509 = arith.mulf %508, %507 : vector<8x128xf32>
    %cst_189 = arith.constant 5.000000e-01 : f32
    %510 = vector.broadcast %cst_189 : f32 to vector<8x128xf32>
    %511 = arith.addf %509, %510 : vector<8x128xf32>
    %512 = vector.extract_strided_slice %495 {offsets = [0, 256], sizes = [8, 128], strides = [1, 1]} : vector<8x512xf32> to vector<8x128xf32>
    %513 = math.tanh %512 : vector<8x128xf32>
    %514 = vector.extract_strided_slice %495 {offsets = [0, 384], sizes = [8, 128], strides = [1, 1]} : vector<8x512xf32> to vector<8x128xf32>
    %cst_190 = arith.constant 5.000000e-01 : f32
    %515 = vector.broadcast %cst_190 : f32 to vector<8x128xf32>
    %516 = arith.mulf %515, %514 : vector<8x128xf32>
    %517 = math.tanh %516 : vector<8x128xf32>
    %cst_191 = arith.constant 5.000000e-01 : f32
    %518 = vector.broadcast %cst_191 : f32 to vector<8x128xf32>
    %519 = arith.mulf %518, %517 : vector<8x128xf32>
    %cst_192 = arith.constant 5.000000e-01 : f32
    %520 = vector.broadcast %cst_192 : f32 to vector<8x128xf32>
    %521 = arith.addf %519, %520 : vector<8x128xf32>
    %522 = arith.mulf %511, %416 : vector<8x128xf32>
    %523 = arith.mulf %503, %513 : vector<8x128xf32>
    %524 = arith.addf %522, %523 : vector<8x128xf32>
    %525 = math.tanh %524 : vector<8x128xf32>
    %526 = arith.mulf %521, %525 : vector<8x128xf32>
    %527 = tpu.concatenate %418, %454 in 1 : vector<8x128xf32>, vector<8x128xf32> -> vector<8x256xf32>
    %528 = arith.truncf %527 : vector<8x256xf32> to vector<8x256xbf16>
    %c0_193 = arith.constant 0 : index
    %c0_194 = arith.constant 0 : index
    %529 = vector.load %arg8[%c0_193, %c0_194] : memref<256x512xbf16, #tpu.memory_space<vmem>>, vector<256x512xbf16>
    %cst_195 = arith.constant dense<0.000000e+00> : vector<8x512xf32>
    %530 = tpu.matmul %528, %529, %cst_195 {dimension_numbers = #tpu.dot_dimension_numbers<[1], [0], [0], [1], [0, 0, 1, 1], [], []>} : vector<8x256xbf16>, vector<256x512xbf16>, vector<8x512xf32> -> vector<8x512xf32>
    %531 = arith.addf %530, %21 : vector<8x512xf32>
    %532 = vector.extract_strided_slice %531 {offsets = [0, 0], sizes = [8, 128], strides = [1, 1]} : vector<8x512xf32> to vector<8x128xf32>
    %cst_196 = arith.constant 5.000000e-01 : f32
    %533 = vector.broadcast %cst_196 : f32 to vector<8x128xf32>
    %534 = arith.mulf %533, %532 : vector<8x128xf32>
    %535 = math.tanh %534 : vector<8x128xf32>
    %cst_197 = arith.constant 5.000000e-01 : f32
    %536 = vector.broadcast %cst_197 : f32 to vector<8x128xf32>
    %537 = arith.mulf %536, %535 : vector<8x128xf32>
    %cst_198 = arith.constant 5.000000e-01 : f32
    %538 = vector.broadcast %cst_198 : f32 to vector<8x128xf32>
    %539 = arith.addf %537, %538 : vector<8x128xf32>
    %540 = vector.extract_strided_slice %531 {offsets = [0, 128], sizes = [8, 128], strides = [1, 1]} : vector<8x512xf32> to vector<8x128xf32>
    %cst_199 = arith.constant 5.000000e-01 : f32
    %541 = vector.broadcast %cst_199 : f32 to vector<8x128xf32>
    %542 = arith.mulf %541, %540 : vector<8x128xf32>
    %543 = math.tanh %542 : vector<8x128xf32>
    %cst_200 = arith.constant 5.000000e-01 : f32
    %544 = vector.broadcast %cst_200 : f32 to vector<8x128xf32>
    %545 = arith.mulf %544, %543 : vector<8x128xf32>
    %cst_201 = arith.constant 5.000000e-01 : f32
    %546 = vector.broadcast %cst_201 : f32 to vector<8x128xf32>
    %547 = arith.addf %545, %546 : vector<8x128xf32>
    %548 = vector.extract_strided_slice %531 {offsets = [0, 256], sizes = [8, 128], strides = [1, 1]} : vector<8x512xf32> to vector<8x128xf32>
    %549 = math.tanh %548 : vector<8x128xf32>
    %550 = vector.extract_strided_slice %531 {offsets = [0, 384], sizes = [8, 128], strides = [1, 1]} : vector<8x512xf32> to vector<8x128xf32>
    %cst_202 = arith.constant 5.000000e-01 : f32
    %551 = vector.broadcast %cst_202 : f32 to vector<8x128xf32>
    %552 = arith.mulf %551, %550 : vector<8x128xf32>
    %553 = math.tanh %552 : vector<8x128xf32>
    %cst_203 = arith.constant 5.000000e-01 : f32
    %554 = vector.broadcast %cst_203 : f32 to vector<8x128xf32>
    %555 = arith.mulf %554, %553 : vector<8x128xf32>
    %cst_204 = arith.constant 5.000000e-01 : f32
    %556 = vector.broadcast %cst_204 : f32 to vector<8x128xf32>
    %557 = arith.addf %555, %556 : vector<8x128xf32>
    %558 = arith.mulf %547, %452 : vector<8x128xf32>
    %559 = arith.mulf %539, %549 : vector<8x128xf32>
    %560 = arith.addf %558, %559 : vector<8x128xf32>
    %561 = math.tanh %560 : vector<8x128xf32>
    %562 = arith.mulf %557, %561 : vector<8x128xf32>
    %c48 = arith.constant 48 : index
    %c0_205 = arith.constant 0 : index
    %563 = vector.load %arg12[%c48, %c0_205] : memref<64x512xf32, #tpu.memory_space<vmem>>, vector<8x512xf32>
    %564 = arith.truncf %490 : vector<8x128xf32> to vector<8x128xbf16>
    %c0_206 = arith.constant 0 : index
    %c0_207 = arith.constant 0 : index
    %565 = vector.load %arg4[%c0_206, %c0_207] : memref<128x512xbf16, #tpu.memory_space<vmem>>, vector<128x512xbf16>
    %cst_208 = arith.constant dense<0.000000e+00> : vector<8x512xf32>
    %566 = tpu.matmul %564, %565, %cst_208 {dimension_numbers = #tpu.dot_dimension_numbers<[1], [0], [0], [1], [0, 0, 1, 1], [], []>} : vector<8x128xbf16>, vector<128x512xbf16>, vector<8x512xf32> -> vector<8x512xf32>
    %567 = arith.addf %563, %566 : vector<8x512xf32>
    %568 = vector.extract_strided_slice %567 {offsets = [0, 0], sizes = [8, 128], strides = [1, 1]} : vector<8x512xf32> to vector<8x128xf32>
    %cst_209 = arith.constant 5.000000e-01 : f32
    %569 = vector.broadcast %cst_209 : f32 to vector<8x128xf32>
    %570 = arith.mulf %569, %568 : vector<8x128xf32>
    %571 = math.tanh %570 : vector<8x128xf32>
    %cst_210 = arith.constant 5.000000e-01 : f32
    %572 = vector.broadcast %cst_210 : f32 to vector<8x128xf32>
    %573 = arith.mulf %572, %571 : vector<8x128xf32>
    %cst_211 = arith.constant 5.000000e-01 : f32
    %574 = vector.broadcast %cst_211 : f32 to vector<8x128xf32>
    %575 = arith.addf %573, %574 : vector<8x128xf32>
    %576 = vector.extract_strided_slice %567 {offsets = [0, 128], sizes = [8, 128], strides = [1, 1]} : vector<8x512xf32> to vector<8x128xf32>
    %cst_212 = arith.constant 5.000000e-01 : f32
    %577 = vector.broadcast %cst_212 : f32 to vector<8x128xf32>
    %578 = arith.mulf %577, %576 : vector<8x128xf32>
    %579 = math.tanh %578 : vector<8x128xf32>
    %cst_213 = arith.constant 5.000000e-01 : f32
    %580 = vector.broadcast %cst_213 : f32 to vector<8x128xf32>
    %581 = arith.mulf %580, %579 : vector<8x128xf32>
    %cst_214 = arith.constant 5.000000e-01 : f32
    %582 = vector.broadcast %cst_214 : f32 to vector<8x128xf32>
    %583 = arith.addf %581, %582 : vector<8x128xf32>
    %584 = vector.extract_strided_slice %567 {offsets = [0, 256], sizes = [8, 128], strides = [1, 1]} : vector<8x512xf32> to vector<8x128xf32>
    %585 = math.tanh %584 : vector<8x128xf32>
    %586 = vector.extract_strided_slice %567 {offsets = [0, 384], sizes = [8, 128], strides = [1, 1]} : vector<8x512xf32> to vector<8x128xf32>
    %cst_215 = arith.constant 5.000000e-01 : f32
    %587 = vector.broadcast %cst_215 : f32 to vector<8x128xf32>
    %588 = arith.mulf %587, %586 : vector<8x128xf32>
    %589 = math.tanh %588 : vector<8x128xf32>
    %cst_216 = arith.constant 5.000000e-01 : f32
    %590 = vector.broadcast %cst_216 : f32 to vector<8x128xf32>
    %591 = arith.mulf %590, %589 : vector<8x128xf32>
    %cst_217 = arith.constant 5.000000e-01 : f32
    %592 = vector.broadcast %cst_217 : f32 to vector<8x128xf32>
    %593 = arith.addf %591, %592 : vector<8x128xf32>
    %594 = arith.mulf %583, %488 : vector<8x128xf32>
    %595 = arith.mulf %575, %585 : vector<8x128xf32>
    %596 = arith.addf %594, %595 : vector<8x128xf32>
    %597 = math.tanh %596 : vector<8x128xf32>
    %598 = arith.mulf %593, %597 : vector<8x128xf32>
    %599 = tpu.concatenate %490, %526 in 1 : vector<8x128xf32>, vector<8x128xf32> -> vector<8x256xf32>
    %600 = arith.truncf %599 : vector<8x256xf32> to vector<8x256xbf16>
    %c0_218 = arith.constant 0 : index
    %c0_219 = arith.constant 0 : index
    %601 = vector.load %arg6[%c0_218, %c0_219] : memref<256x512xbf16, #tpu.memory_space<vmem>>, vector<256x512xbf16>
    %cst_220 = arith.constant dense<0.000000e+00> : vector<8x512xf32>
    %602 = tpu.matmul %600, %601, %cst_220 {dimension_numbers = #tpu.dot_dimension_numbers<[1], [0], [0], [1], [0, 0, 1, 1], [], []>} : vector<8x256xbf16>, vector<256x512xbf16>, vector<8x512xf32> -> vector<8x512xf32>
    %603 = arith.addf %602, %18 : vector<8x512xf32>
    %604 = vector.extract_strided_slice %603 {offsets = [0, 0], sizes = [8, 128], strides = [1, 1]} : vector<8x512xf32> to vector<8x128xf32>
    %cst_221 = arith.constant 5.000000e-01 : f32
    %605 = vector.broadcast %cst_221 : f32 to vector<8x128xf32>
    %606 = arith.mulf %605, %604 : vector<8x128xf32>
    %607 = math.tanh %606 : vector<8x128xf32>
    %cst_222 = arith.constant 5.000000e-01 : f32
    %608 = vector.broadcast %cst_222 : f32 to vector<8x128xf32>
    %609 = arith.mulf %608, %607 : vector<8x128xf32>
    %cst_223 = arith.constant 5.000000e-01 : f32
    %610 = vector.broadcast %cst_223 : f32 to vector<8x128xf32>
    %611 = arith.addf %609, %610 : vector<8x128xf32>
    %612 = vector.extract_strided_slice %603 {offsets = [0, 128], sizes = [8, 128], strides = [1, 1]} : vector<8x512xf32> to vector<8x128xf32>
    %cst_224 = arith.constant 5.000000e-01 : f32
    %613 = vector.broadcast %cst_224 : f32 to vector<8x128xf32>
    %614 = arith.mulf %613, %612 : vector<8x128xf32>
    %615 = math.tanh %614 : vector<8x128xf32>
    %cst_225 = arith.constant 5.000000e-01 : f32
    %616 = vector.broadcast %cst_225 : f32 to vector<8x128xf32>
    %617 = arith.mulf %616, %615 : vector<8x128xf32>
    %cst_226 = arith.constant 5.000000e-01 : f32
    %618 = vector.broadcast %cst_226 : f32 to vector<8x128xf32>
    %619 = arith.addf %617, %618 : vector<8x128xf32>
    %620 = vector.extract_strided_slice %603 {offsets = [0, 256], sizes = [8, 128], strides = [1, 1]} : vector<8x512xf32> to vector<8x128xf32>
    %621 = math.tanh %620 : vector<8x128xf32>
    %622 = vector.extract_strided_slice %603 {offsets = [0, 384], sizes = [8, 128], strides = [1, 1]} : vector<8x512xf32> to vector<8x128xf32>
    %cst_227 = arith.constant 5.000000e-01 : f32
    %623 = vector.broadcast %cst_227 : f32 to vector<8x128xf32>
    %624 = arith.mulf %623, %622 : vector<8x128xf32>
    %625 = math.tanh %624 : vector<8x128xf32>
    %cst_228 = arith.constant 5.000000e-01 : f32
    %626 = vector.broadcast %cst_228 : f32 to vector<8x128xf32>
    %627 = arith.mulf %626, %625 : vector<8x128xf32>
    %cst_229 = arith.constant 5.000000e-01 : f32
    %628 = vector.broadcast %cst_229 : f32 to vector<8x128xf32>
    %629 = arith.addf %627, %628 : vector<8x128xf32>
    %630 = arith.mulf %619, %524 : vector<8x128xf32>
    %631 = arith.mulf %611, %621 : vector<8x128xf32>
    %632 = arith.addf %630, %631 : vector<8x128xf32>
    %633 = math.tanh %632 : vector<8x128xf32>
    %634 = arith.mulf %629, %633 : vector<8x128xf32>
    %635 = tpu.concatenate %526, %562 in 1 : vector<8x128xf32>, vector<8x128xf32> -> vector<8x256xf32>
    %636 = arith.truncf %635 : vector<8x256xf32> to vector<8x256xbf16>
    %c0_230 = arith.constant 0 : index
    %c0_231 = arith.constant 0 : index
    %637 = vector.load %arg8[%c0_230, %c0_231] : memref<256x512xbf16, #tpu.memory_space<vmem>>, vector<256x512xbf16>
    %cst_232 = arith.constant dense<0.000000e+00> : vector<8x512xf32>
    %638 = tpu.matmul %636, %637, %cst_232 {dimension_numbers = #tpu.dot_dimension_numbers<[1], [0], [0], [1], [0, 0, 1, 1], [], []>} : vector<8x256xbf16>, vector<256x512xbf16>, vector<8x512xf32> -> vector<8x512xf32>
    %639 = arith.addf %638, %21 : vector<8x512xf32>
    %640 = vector.extract_strided_slice %639 {offsets = [0, 0], sizes = [8, 128], strides = [1, 1]} : vector<8x512xf32> to vector<8x128xf32>
    %cst_233 = arith.constant 5.000000e-01 : f32
    %641 = vector.broadcast %cst_233 : f32 to vector<8x128xf32>
    %642 = arith.mulf %641, %640 : vector<8x128xf32>
    %643 = math.tanh %642 : vector<8x128xf32>
    %cst_234 = arith.constant 5.000000e-01 : f32
    %644 = vector.broadcast %cst_234 : f32 to vector<8x128xf32>
    %645 = arith.mulf %644, %643 : vector<8x128xf32>
    %cst_235 = arith.constant 5.000000e-01 : f32
    %646 = vector.broadcast %cst_235 : f32 to vector<8x128xf32>
    %647 = arith.addf %645, %646 : vector<8x128xf32>
    %648 = vector.extract_strided_slice %639 {offsets = [0, 128], sizes = [8, 128], strides = [1, 1]} : vector<8x512xf32> to vector<8x128xf32>
    %cst_236 = arith.constant 5.000000e-01 : f32
    %649 = vector.broadcast %cst_236 : f32 to vector<8x128xf32>
    %650 = arith.mulf %649, %648 : vector<8x128xf32>
    %651 = math.tanh %650 : vector<8x128xf32>
    %cst_237 = arith.constant 5.000000e-01 : f32
    %652 = vector.broadcast %cst_237 : f32 to vector<8x128xf32>
    %653 = arith.mulf %652, %651 : vector<8x128xf32>
    %cst_238 = arith.constant 5.000000e-01 : f32
    %654 = vector.broadcast %cst_238 : f32 to vector<8x128xf32>
    %655 = arith.addf %653, %654 : vector<8x128xf32>
    %656 = vector.extract_strided_slice %639 {offsets = [0, 256], sizes = [8, 128], strides = [1, 1]} : vector<8x512xf32> to vector<8x128xf32>
    %657 = math.tanh %656 : vector<8x128xf32>
    %658 = vector.extract_strided_slice %639 {offsets = [0, 384], sizes = [8, 128], strides = [1, 1]} : vector<8x512xf32> to vector<8x128xf32>
    %cst_239 = arith.constant 5.000000e-01 : f32
    %659 = vector.broadcast %cst_239 : f32 to vector<8x128xf32>
    %660 = arith.mulf %659, %658 : vector<8x128xf32>
    %661 = math.tanh %660 : vector<8x128xf32>
    %cst_240 = arith.constant 5.000000e-01 : f32
    %662 = vector.broadcast %cst_240 : f32 to vector<8x128xf32>
    %663 = arith.mulf %662, %661 : vector<8x128xf32>
    %cst_241 = arith.constant 5.000000e-01 : f32
    %664 = vector.broadcast %cst_241 : f32 to vector<8x128xf32>
    %665 = arith.addf %663, %664 : vector<8x128xf32>
    %666 = arith.mulf %655, %560 : vector<8x128xf32>
    %667 = arith.mulf %647, %657 : vector<8x128xf32>
    %668 = arith.addf %666, %667 : vector<8x128xf32>
    %669 = math.tanh %668 : vector<8x128xf32>
    %670 = arith.mulf %665, %669 : vector<8x128xf32>
    %c56 = arith.constant 56 : index
    %c0_242 = arith.constant 0 : index
    %671 = vector.load %arg12[%c56, %c0_242] : memref<64x512xf32, #tpu.memory_space<vmem>>, vector<8x512xf32>
    %672 = arith.truncf %598 : vector<8x128xf32> to vector<8x128xbf16>
    %c0_243 = arith.constant 0 : index
    %c0_244 = arith.constant 0 : index
    %673 = vector.load %arg4[%c0_243, %c0_244] : memref<128x512xbf16, #tpu.memory_space<vmem>>, vector<128x512xbf16>
    %cst_245 = arith.constant dense<0.000000e+00> : vector<8x512xf32>
    %674 = tpu.matmul %672, %673, %cst_245 {dimension_numbers = #tpu.dot_dimension_numbers<[1], [0], [0], [1], [0, 0, 1, 1], [], []>} : vector<8x128xbf16>, vector<128x512xbf16>, vector<8x512xf32> -> vector<8x512xf32>
    %675 = arith.addf %671, %674 : vector<8x512xf32>
    %676 = vector.extract_strided_slice %675 {offsets = [0, 0], sizes = [8, 128], strides = [1, 1]} : vector<8x512xf32> to vector<8x128xf32>
    %cst_246 = arith.constant 5.000000e-01 : f32
    %677 = vector.broadcast %cst_246 : f32 to vector<8x128xf32>
    %678 = arith.mulf %677, %676 : vector<8x128xf32>
    %679 = math.tanh %678 : vector<8x128xf32>
    %cst_247 = arith.constant 5.000000e-01 : f32
    %680 = vector.broadcast %cst_247 : f32 to vector<8x128xf32>
    %681 = arith.mulf %680, %679 : vector<8x128xf32>
    %cst_248 = arith.constant 5.000000e-01 : f32
    %682 = vector.broadcast %cst_248 : f32 to vector<8x128xf32>
    %683 = arith.addf %681, %682 : vector<8x128xf32>
    %684 = vector.extract_strided_slice %675 {offsets = [0, 128], sizes = [8, 128], strides = [1, 1]} : vector<8x512xf32> to vector<8x128xf32>
    %cst_249 = arith.constant 5.000000e-01 : f32
    %685 = vector.broadcast %cst_249 : f32 to vector<8x128xf32>
    %686 = arith.mulf %685, %684 : vector<8x128xf32>
    %687 = math.tanh %686 : vector<8x128xf32>
    %cst_250 = arith.constant 5.000000e-01 : f32
    %688 = vector.broadcast %cst_250 : f32 to vector<8x128xf32>
    %689 = arith.mulf %688, %687 : vector<8x128xf32>
    %cst_251 = arith.constant 5.000000e-01 : f32
    %690 = vector.broadcast %cst_251 : f32 to vector<8x128xf32>
    %691 = arith.addf %689, %690 : vector<8x128xf32>
    %692 = vector.extract_strided_slice %675 {offsets = [0, 256], sizes = [8, 128], strides = [1, 1]} : vector<8x512xf32> to vector<8x128xf32>
    %693 = math.tanh %692 : vector<8x128xf32>
    %694 = vector.extract_strided_slice %675 {offsets = [0, 384], sizes = [8, 128], strides = [1, 1]} : vector<8x512xf32> to vector<8x128xf32>
    %cst_252 = arith.constant 5.000000e-01 : f32
    %695 = vector.broadcast %cst_252 : f32 to vector<8x128xf32>
    %696 = arith.mulf %695, %694 : vector<8x128xf32>
    %697 = math.tanh %696 : vector<8x128xf32>
    %cst_253 = arith.constant 5.000000e-01 : f32
    %698 = vector.broadcast %cst_253 : f32 to vector<8x128xf32>
    %699 = arith.mulf %698, %697 : vector<8x128xf32>
    %cst_254 = arith.constant 5.000000e-01 : f32
    %700 = vector.broadcast %cst_254 : f32 to vector<8x128xf32>
    %701 = arith.addf %699, %700 : vector<8x128xf32>
    %702 = arith.mulf %691, %596 : vector<8x128xf32>
    %703 = arith.mulf %683, %693 : vector<8x128xf32>
    %704 = arith.addf %702, %703 : vector<8x128xf32>
    %705 = math.tanh %704 : vector<8x128xf32>
    %706 = arith.mulf %701, %705 : vector<8x128xf32>
    %707 = tpu.concatenate %598, %634 in 1 : vector<8x128xf32>, vector<8x128xf32> -> vector<8x256xf32>
    %708 = arith.truncf %707 : vector<8x256xf32> to vector<8x256xbf16>
    %c0_255 = arith.constant 0 : index
    %c0_256 = arith.constant 0 : index
    %709 = vector.load %arg6[%c0_255, %c0_256] : memref<256x512xbf16, #tpu.memory_space<vmem>>, vector<256x512xbf16>
    %cst_257 = arith.constant dense<0.000000e+00> : vector<8x512xf32>
    %710 = tpu.matmul %708, %709, %cst_257 {dimension_numbers = #tpu.dot_dimension_numbers<[1], [0], [0], [1], [0, 0, 1, 1], [], []>} : vector<8x256xbf16>, vector<256x512xbf16>, vector<8x512xf32> -> vector<8x512xf32>
    %711 = arith.addf %710, %18 : vector<8x512xf32>
    %712 = vector.extract_strided_slice %711 {offsets = [0, 0], sizes = [8, 128], strides = [1, 1]} : vector<8x512xf32> to vector<8x128xf32>
    %cst_258 = arith.constant 5.000000e-01 : f32
    %713 = vector.broadcast %cst_258 : f32 to vector<8x128xf32>
    %714 = arith.mulf %713, %712 : vector<8x128xf32>
    %715 = math.tanh %714 : vector<8x128xf32>
    %cst_259 = arith.constant 5.000000e-01 : f32
    %716 = vector.broadcast %cst_259 : f32 to vector<8x128xf32>
    %717 = arith.mulf %716, %715 : vector<8x128xf32>
    %cst_260 = arith.constant 5.000000e-01 : f32
    %718 = vector.broadcast %cst_260 : f32 to vector<8x128xf32>
    %719 = arith.addf %717, %718 : vector<8x128xf32>
    %720 = vector.extract_strided_slice %711 {offsets = [0, 128], sizes = [8, 128], strides = [1, 1]} : vector<8x512xf32> to vector<8x128xf32>
    %cst_261 = arith.constant 5.000000e-01 : f32
    %721 = vector.broadcast %cst_261 : f32 to vector<8x128xf32>
    %722 = arith.mulf %721, %720 : vector<8x128xf32>
    %723 = math.tanh %722 : vector<8x128xf32>
    %cst_262 = arith.constant 5.000000e-01 : f32
    %724 = vector.broadcast %cst_262 : f32 to vector<8x128xf32>
    %725 = arith.mulf %724, %723 : vector<8x128xf32>
    %cst_263 = arith.constant 5.000000e-01 : f32
    %726 = vector.broadcast %cst_263 : f32 to vector<8x128xf32>
    %727 = arith.addf %725, %726 : vector<8x128xf32>
    %728 = vector.extract_strided_slice %711 {offsets = [0, 256], sizes = [8, 128], strides = [1, 1]} : vector<8x512xf32> to vector<8x128xf32>
    %729 = math.tanh %728 : vector<8x128xf32>
    %730 = vector.extract_strided_slice %711 {offsets = [0, 384], sizes = [8, 128], strides = [1, 1]} : vector<8x512xf32> to vector<8x128xf32>
    %cst_264 = arith.constant 5.000000e-01 : f32
    %731 = vector.broadcast %cst_264 : f32 to vector<8x128xf32>
    %732 = arith.mulf %731, %730 : vector<8x128xf32>
    %733 = math.tanh %732 : vector<8x128xf32>
    %cst_265 = arith.constant 5.000000e-01 : f32
    %734 = vector.broadcast %cst_265 : f32 to vector<8x128xf32>
    %735 = arith.mulf %734, %733 : vector<8x128xf32>
    %cst_266 = arith.constant 5.000000e-01 : f32
    %736 = vector.broadcast %cst_266 : f32 to vector<8x128xf32>
    %737 = arith.addf %735, %736 : vector<8x128xf32>
    %738 = arith.mulf %727, %632 : vector<8x128xf32>
    %739 = arith.mulf %719, %729 : vector<8x128xf32>
    %740 = arith.addf %738, %739 : vector<8x128xf32>
    %741 = math.tanh %740 : vector<8x128xf32>
    %742 = arith.mulf %737, %741 : vector<8x128xf32>
    %743 = tpu.concatenate %634, %670 in 1 : vector<8x128xf32>, vector<8x128xf32> -> vector<8x256xf32>
    %744 = arith.truncf %743 : vector<8x256xf32> to vector<8x256xbf16>
    %c0_267 = arith.constant 0 : index
    %c0_268 = arith.constant 0 : index
    %745 = vector.load %arg8[%c0_267, %c0_268] : memref<256x512xbf16, #tpu.memory_space<vmem>>, vector<256x512xbf16>
    %cst_269 = arith.constant dense<0.000000e+00> : vector<8x512xf32>
    %746 = tpu.matmul %744, %745, %cst_269 {dimension_numbers = #tpu.dot_dimension_numbers<[1], [0], [0], [1], [0, 0, 1, 1], [], []>} : vector<8x256xbf16>, vector<256x512xbf16>, vector<8x512xf32> -> vector<8x512xf32>
    %747 = arith.addf %746, %21 : vector<8x512xf32>
    %748 = vector.extract_strided_slice %747 {offsets = [0, 0], sizes = [8, 128], strides = [1, 1]} : vector<8x512xf32> to vector<8x128xf32>
    %cst_270 = arith.constant 5.000000e-01 : f32
    %749 = vector.broadcast %cst_270 : f32 to vector<8x128xf32>
    %750 = arith.mulf %749, %748 : vector<8x128xf32>
    %751 = math.tanh %750 : vector<8x128xf32>
    %cst_271 = arith.constant 5.000000e-01 : f32
    %752 = vector.broadcast %cst_271 : f32 to vector<8x128xf32>
    %753 = arith.mulf %752, %751 : vector<8x128xf32>
    %cst_272 = arith.constant 5.000000e-01 : f32
    %754 = vector.broadcast %cst_272 : f32 to vector<8x128xf32>
    %755 = arith.addf %753, %754 : vector<8x128xf32>
    %756 = vector.extract_strided_slice %747 {offsets = [0, 128], sizes = [8, 128], strides = [1, 1]} : vector<8x512xf32> to vector<8x128xf32>
    %cst_273 = arith.constant 5.000000e-01 : f32
    %757 = vector.broadcast %cst_273 : f32 to vector<8x128xf32>
    %758 = arith.mulf %757, %756 : vector<8x128xf32>
    %759 = math.tanh %758 : vector<8x128xf32>
    %cst_274 = arith.constant 5.000000e-01 : f32
    %760 = vector.broadcast %cst_274 : f32 to vector<8x128xf32>
    %761 = arith.mulf %760, %759 : vector<8x128xf32>
    %cst_275 = arith.constant 5.000000e-01 : f32
    %762 = vector.broadcast %cst_275 : f32 to vector<8x128xf32>
    %763 = arith.addf %761, %762 : vector<8x128xf32>
    %764 = vector.extract_strided_slice %747 {offsets = [0, 256], sizes = [8, 128], strides = [1, 1]} : vector<8x512xf32> to vector<8x128xf32>
    %765 = math.tanh %764 : vector<8x128xf32>
    %766 = vector.extract_strided_slice %747 {offsets = [0, 384], sizes = [8, 128], strides = [1, 1]} : vector<8x512xf32> to vector<8x128xf32>
    %cst_276 = arith.constant 5.000000e-01 : f32
    %767 = vector.broadcast %cst_276 : f32 to vector<8x128xf32>
    %768 = arith.mulf %767, %766 : vector<8x128xf32>
    %769 = math.tanh %768 : vector<8x128xf32>
    %cst_277 = arith.constant 5.000000e-01 : f32
    %770 = vector.broadcast %cst_277 : f32 to vector<8x128xf32>
    %771 = arith.mulf %770, %769 : vector<8x128xf32>
    %cst_278 = arith.constant 5.000000e-01 : f32
    %772 = vector.broadcast %cst_278 : f32 to vector<8x128xf32>
    %773 = arith.addf %771, %772 : vector<8x128xf32>
    %774 = arith.mulf %763, %668 : vector<8x128xf32>
    %775 = arith.mulf %755, %765 : vector<8x128xf32>
    %776 = arith.addf %774, %775 : vector<8x128xf32>
    %777 = math.tanh %776 : vector<8x128xf32>
    %778 = arith.mulf %773, %777 : vector<8x128xf32>
    %779 = tpu.concatenate %706, %742 in 1 : vector<8x128xf32>, vector<8x128xf32> -> vector<8x256xf32>
    %780 = arith.truncf %779 : vector<8x256xf32> to vector<8x256xbf16>
    %c0_279 = arith.constant 0 : index
    %c0_280 = arith.constant 0 : index
    %781 = vector.load %arg6[%c0_279, %c0_280] : memref<256x512xbf16, #tpu.memory_space<vmem>>, vector<256x512xbf16>
    %cst_281 = arith.constant dense<0.000000e+00> : vector<8x512xf32>
    %782 = tpu.matmul %780, %781, %cst_281 {dimension_numbers = #tpu.dot_dimension_numbers<[1], [0], [0], [1], [0, 0, 1, 1], [], []>} : vector<8x256xbf16>, vector<256x512xbf16>, vector<8x512xf32> -> vector<8x512xf32>
    %783 = arith.addf %782, %18 : vector<8x512xf32>
    %784 = vector.extract_strided_slice %783 {offsets = [0, 0], sizes = [8, 128], strides = [1, 1]} : vector<8x512xf32> to vector<8x128xf32>
    %cst_282 = arith.constant 5.000000e-01 : f32
    %785 = vector.broadcast %cst_282 : f32 to vector<8x128xf32>
    %786 = arith.mulf %785, %784 : vector<8x128xf32>
    %787 = math.tanh %786 : vector<8x128xf32>
    %cst_283 = arith.constant 5.000000e-01 : f32
    %788 = vector.broadcast %cst_283 : f32 to vector<8x128xf32>
    %789 = arith.mulf %788, %787 : vector<8x128xf32>
    %cst_284 = arith.constant 5.000000e-01 : f32
    %790 = vector.broadcast %cst_284 : f32 to vector<8x128xf32>
    %791 = arith.addf %789, %790 : vector<8x128xf32>
    %792 = vector.extract_strided_slice %783 {offsets = [0, 128], sizes = [8, 128], strides = [1, 1]} : vector<8x512xf32> to vector<8x128xf32>
    %cst_285 = arith.constant 5.000000e-01 : f32
    %793 = vector.broadcast %cst_285 : f32 to vector<8x128xf32>
    %794 = arith.mulf %793, %792 : vector<8x128xf32>
    %795 = math.tanh %794 : vector<8x128xf32>
    %cst_286 = arith.constant 5.000000e-01 : f32
    %796 = vector.broadcast %cst_286 : f32 to vector<8x128xf32>
    %797 = arith.mulf %796, %795 : vector<8x128xf32>
    %cst_287 = arith.constant 5.000000e-01 : f32
    %798 = vector.broadcast %cst_287 : f32 to vector<8x128xf32>
    %799 = arith.addf %797, %798 : vector<8x128xf32>
    %800 = vector.extract_strided_slice %783 {offsets = [0, 256], sizes = [8, 128], strides = [1, 1]} : vector<8x512xf32> to vector<8x128xf32>
    %801 = math.tanh %800 : vector<8x128xf32>
    %802 = vector.extract_strided_slice %783 {offsets = [0, 384], sizes = [8, 128], strides = [1, 1]} : vector<8x512xf32> to vector<8x128xf32>
    %cst_288 = arith.constant 5.000000e-01 : f32
    %803 = vector.broadcast %cst_288 : f32 to vector<8x128xf32>
    %804 = arith.mulf %803, %802 : vector<8x128xf32>
    %805 = math.tanh %804 : vector<8x128xf32>
    %cst_289 = arith.constant 5.000000e-01 : f32
    %806 = vector.broadcast %cst_289 : f32 to vector<8x128xf32>
    %807 = arith.mulf %806, %805 : vector<8x128xf32>
    %cst_290 = arith.constant 5.000000e-01 : f32
    %808 = vector.broadcast %cst_290 : f32 to vector<8x128xf32>
    %809 = arith.addf %807, %808 : vector<8x128xf32>
    %810 = arith.mulf %799, %740 : vector<8x128xf32>
    %811 = arith.mulf %791, %801 : vector<8x128xf32>
    %812 = arith.addf %810, %811 : vector<8x128xf32>
    %813 = math.tanh %812 : vector<8x128xf32>
    %814 = arith.mulf %809, %813 : vector<8x128xf32>
    %815 = tpu.concatenate %742, %778 in 1 : vector<8x128xf32>, vector<8x128xf32> -> vector<8x256xf32>
    %816 = arith.truncf %815 : vector<8x256xf32> to vector<8x256xbf16>
    %c0_291 = arith.constant 0 : index
    %c0_292 = arith.constant 0 : index
    %817 = vector.load %arg8[%c0_291, %c0_292] : memref<256x512xbf16, #tpu.memory_space<vmem>>, vector<256x512xbf16>
    %cst_293 = arith.constant dense<0.000000e+00> : vector<8x512xf32>
    %818 = tpu.matmul %816, %817, %cst_293 {dimension_numbers = #tpu.dot_dimension_numbers<[1], [0], [0], [1], [0, 0, 1, 1], [], []>} : vector<8x256xbf16>, vector<256x512xbf16>, vector<8x512xf32> -> vector<8x512xf32>
    %819 = arith.addf %818, %21 : vector<8x512xf32>
    %820 = vector.extract_strided_slice %819 {offsets = [0, 0], sizes = [8, 128], strides = [1, 1]} : vector<8x512xf32> to vector<8x128xf32>
    %cst_294 = arith.constant 5.000000e-01 : f32
    %821 = vector.broadcast %cst_294 : f32 to vector<8x128xf32>
    %822 = arith.mulf %821, %820 : vector<8x128xf32>
    %823 = math.tanh %822 : vector<8x128xf32>
    %cst_295 = arith.constant 5.000000e-01 : f32
    %824 = vector.broadcast %cst_295 : f32 to vector<8x128xf32>
    %825 = arith.mulf %824, %823 : vector<8x128xf32>
    %cst_296 = arith.constant 5.000000e-01 : f32
    %826 = vector.broadcast %cst_296 : f32 to vector<8x128xf32>
    %827 = arith.addf %825, %826 : vector<8x128xf32>
    %828 = vector.extract_strided_slice %819 {offsets = [0, 128], sizes = [8, 128], strides = [1, 1]} : vector<8x512xf32> to vector<8x128xf32>
    %cst_297 = arith.constant 5.000000e-01 : f32
    %829 = vector.broadcast %cst_297 : f32 to vector<8x128xf32>
    %830 = arith.mulf %829, %828 : vector<8x128xf32>
    %831 = math.tanh %830 : vector<8x128xf32>
    %cst_298 = arith.constant 5.000000e-01 : f32
    %832 = vector.broadcast %cst_298 : f32 to vector<8x128xf32>
    %833 = arith.mulf %832, %831 : vector<8x128xf32>
    %cst_299 = arith.constant 5.000000e-01 : f32
    %834 = vector.broadcast %cst_299 : f32 to vector<8x128xf32>
    %835 = arith.addf %833, %834 : vector<8x128xf32>
    %836 = vector.extract_strided_slice %819 {offsets = [0, 256], sizes = [8, 128], strides = [1, 1]} : vector<8x512xf32> to vector<8x128xf32>
    %837 = math.tanh %836 : vector<8x128xf32>
    %838 = vector.extract_strided_slice %819 {offsets = [0, 384], sizes = [8, 128], strides = [1, 1]} : vector<8x512xf32> to vector<8x128xf32>
    %cst_300 = arith.constant 5.000000e-01 : f32
    %839 = vector.broadcast %cst_300 : f32 to vector<8x128xf32>
    %840 = arith.mulf %839, %838 : vector<8x128xf32>
    %841 = math.tanh %840 : vector<8x128xf32>
    %cst_301 = arith.constant 5.000000e-01 : f32
    %842 = vector.broadcast %cst_301 : f32 to vector<8x128xf32>
    %843 = arith.mulf %842, %841 : vector<8x128xf32>
    %cst_302 = arith.constant 5.000000e-01 : f32
    %844 = vector.broadcast %cst_302 : f32 to vector<8x128xf32>
    %845 = arith.addf %843, %844 : vector<8x128xf32>
    %846 = arith.mulf %835, %776 : vector<8x128xf32>
    %847 = arith.mulf %827, %837 : vector<8x128xf32>
    %848 = arith.addf %846, %847 : vector<8x128xf32>
    %849 = math.tanh %848 : vector<8x128xf32>
    %850 = arith.mulf %845, %849 : vector<8x128xf32>
    %851 = tpu.concatenate %814, %850 in 1 : vector<8x128xf32>, vector<8x128xf32> -> vector<8x256xf32>
    %852 = arith.truncf %851 : vector<8x256xf32> to vector<8x256xbf16>
    %c0_303 = arith.constant 0 : index
    %c0_304 = arith.constant 0 : index
    %853 = vector.load %arg8[%c0_303, %c0_304] : memref<256x512xbf16, #tpu.memory_space<vmem>>, vector<256x512xbf16>
    %cst_305 = arith.constant dense<0.000000e+00> : vector<8x512xf32>
    %854 = tpu.matmul %852, %853, %cst_305 {dimension_numbers = #tpu.dot_dimension_numbers<[1], [0], [0], [1], [0, 0, 1, 1], [], []>} : vector<8x256xbf16>, vector<256x512xbf16>, vector<8x512xf32> -> vector<8x512xf32>
    %855 = arith.addf %854, %21 : vector<8x512xf32>
    %856 = vector.extract_strided_slice %855 {offsets = [0, 0], sizes = [8, 128], strides = [1, 1]} : vector<8x512xf32> to vector<8x128xf32>
    %cst_306 = arith.constant 5.000000e-01 : f32
    %857 = vector.broadcast %cst_306 : f32 to vector<8x128xf32>
    %858 = arith.mulf %857, %856 : vector<8x128xf32>
    %859 = math.tanh %858 : vector<8x128xf32>
    %cst_307 = arith.constant 5.000000e-01 : f32
    %860 = vector.broadcast %cst_307 : f32 to vector<8x128xf32>
    %861 = arith.mulf %860, %859 : vector<8x128xf32>
    %cst_308 = arith.constant 5.000000e-01 : f32
    %862 = vector.broadcast %cst_308 : f32 to vector<8x128xf32>
    %863 = arith.addf %861, %862 : vector<8x128xf32>
    %864 = vector.extract_strided_slice %855 {offsets = [0, 128], sizes = [8, 128], strides = [1, 1]} : vector<8x512xf32> to vector<8x128xf32>
    %cst_309 = arith.constant 5.000000e-01 : f32
    %865 = vector.broadcast %cst_309 : f32 to vector<8x128xf32>
    %866 = arith.mulf %865, %864 : vector<8x128xf32>
    %867 = math.tanh %866 : vector<8x128xf32>
    %cst_310 = arith.constant 5.000000e-01 : f32
    %868 = vector.broadcast %cst_310 : f32 to vector<8x128xf32>
    %869 = arith.mulf %868, %867 : vector<8x128xf32>
    %cst_311 = arith.constant 5.000000e-01 : f32
    %870 = vector.broadcast %cst_311 : f32 to vector<8x128xf32>
    %871 = arith.addf %869, %870 : vector<8x128xf32>
    %872 = vector.extract_strided_slice %855 {offsets = [0, 256], sizes = [8, 128], strides = [1, 1]} : vector<8x512xf32> to vector<8x128xf32>
    %873 = math.tanh %872 : vector<8x128xf32>
    %874 = vector.extract_strided_slice %855 {offsets = [0, 384], sizes = [8, 128], strides = [1, 1]} : vector<8x512xf32> to vector<8x128xf32>
    %cst_312 = arith.constant 5.000000e-01 : f32
    %875 = vector.broadcast %cst_312 : f32 to vector<8x128xf32>
    %876 = arith.mulf %875, %874 : vector<8x128xf32>
    %877 = math.tanh %876 : vector<8x128xf32>
    %cst_313 = arith.constant 5.000000e-01 : f32
    %878 = vector.broadcast %cst_313 : f32 to vector<8x128xf32>
    %879 = arith.mulf %878, %877 : vector<8x128xf32>
    %cst_314 = arith.constant 5.000000e-01 : f32
    %880 = vector.broadcast %cst_314 : f32 to vector<8x128xf32>
    %881 = arith.addf %879, %880 : vector<8x128xf32>
    %882 = arith.mulf %871, %848 : vector<8x128xf32>
    %883 = arith.mulf %863, %873 : vector<8x128xf32>
    %884 = arith.addf %882, %883 : vector<8x128xf32>
    %885 = math.tanh %884 : vector<8x128xf32>
    %886 = arith.mulf %881, %885 : vector<8x128xf32>
    %c0_315 = arith.constant 0 : index
    %c0_316 = arith.constant 0 : index
    %c0_317 = arith.constant 0 : index
    %887 = vector.load %arg10[%c0_315, %c0_316, %c0_317] : memref<3x8x128xf32, #tpu.memory_space<vmem>>, vector<1x8x128xf32>
    %888 = vector.shape_cast %887 : vector<1x8x128xf32> to vector<8x128xf32>
    %889 = vector.shape_cast %706 : vector<8x128xf32> to vector<1x8x128xf32>
    tpu.vector_store %arg10[%c0_315, %c0_316, %c0_317], %889 {strides = array<i32>} : memref<3x8x128xf32, #tpu.memory_space<vmem>>, vector<1x8x128xf32>,
    %c0_318 = arith.constant 0 : index
    %c0_319 = arith.constant 0 : index
    %c0_320 = arith.constant 0 : index
    %890 = vector.load %arg11[%c0_318, %c0_319, %c0_320] : memref<3x8x128xf32, #tpu.memory_space<vmem>>, vector<1x8x128xf32>
    %891 = vector.shape_cast %890 : vector<1x8x128xf32> to vector<8x128xf32>
    %892 = vector.shape_cast %704 : vector<8x128xf32> to vector<1x8x128xf32>
    tpu.vector_store %arg11[%c0_318, %c0_319, %c0_320], %892 {strides = array<i32>} : memref<3x8x128xf32, #tpu.memory_space<vmem>>, vector<1x8x128xf32>,
    %c1 = arith.constant 1 : index
    %c0_321 = arith.constant 0 : index
    %c0_322 = arith.constant 0 : index
    %893 = vector.load %arg10[%c1, %c0_321, %c0_322] : memref<3x8x128xf32, #tpu.memory_space<vmem>>, vector<1x8x128xf32>
    %894 = vector.shape_cast %893 : vector<1x8x128xf32> to vector<8x128xf32>
    %895 = vector.shape_cast %814 : vector<8x128xf32> to vector<1x8x128xf32>
    tpu.vector_store %arg10[%c1, %c0_321, %c0_322], %895 {strides = array<i32>} : memref<3x8x128xf32, #tpu.memory_space<vmem>>, vector<1x8x128xf32>,
    %c1_323 = arith.constant 1 : index
    %c0_324 = arith.constant 0 : index
    %c0_325 = arith.constant 0 : index
    %896 = vector.load %arg11[%c1_323, %c0_324, %c0_325] : memref<3x8x128xf32, #tpu.memory_space<vmem>>, vector<1x8x128xf32>
    %897 = vector.shape_cast %896 : vector<1x8x128xf32> to vector<8x128xf32>
    %898 = vector.shape_cast %812 : vector<8x128xf32> to vector<1x8x128xf32>
    tpu.vector_store %arg11[%c1_323, %c0_324, %c0_325], %898 {strides = array<i32>} : memref<3x8x128xf32, #tpu.memory_space<vmem>>, vector<1x8x128xf32>,
    %c2 = arith.constant 2 : index
    %c0_326 = arith.constant 0 : index
    %c0_327 = arith.constant 0 : index
    %899 = vector.load %arg10[%c2, %c0_326, %c0_327] : memref<3x8x128xf32, #tpu.memory_space<vmem>>, vector<1x8x128xf32>
    %900 = vector.shape_cast %899 : vector<1x8x128xf32> to vector<8x128xf32>
    %901 = vector.shape_cast %886 : vector<8x128xf32> to vector<1x8x128xf32>
    tpu.vector_store %arg10[%c2, %c0_326, %c0_327], %901 {strides = array<i32>} : memref<3x8x128xf32, #tpu.memory_space<vmem>>, vector<1x8x128xf32>,
    %c2_328 = arith.constant 2 : index
    %c0_329 = arith.constant 0 : index
    %c0_330 = arith.constant 0 : index
    %902 = vector.load %arg11[%c2_328, %c0_329, %c0_330] : memref<3x8x128xf32, #tpu.memory_space<vmem>>, vector<1x8x128xf32>
    %903 = vector.shape_cast %902 : vector<1x8x128xf32> to vector<8x128xf32>
    %904 = vector.shape_cast %884 : vector<8x128xf32> to vector<1x8x128xf32>
    tpu.vector_store %arg11[%c2_328, %c0_329, %c0_330], %904 {strides = array<i32>} : memref<3x8x128xf32, #tpu.memory_space<vmem>>, vector<1x8x128xf32>,
    return
  }
}

</mosaic_0001>

<llo_original>
// kernel: tpu_custom_call.1
$region0: #{tpu_custom_call.1}
  #allocation0 [shape = 'u32[]', space=smem, size = 0x4, offset = 0x4, fixed_abs, tag = 'smem constant byte address 0x4 - core index']
  #allocation1 [shape = 'u32[72,128]{1,0:T(1,128)}', space=vmem, size = 0x9000, scoped, tag = 'internal scratch']
  #allocation2 [shape = 'f32[64,512]{1,0:T(8,128)}', space=vmem, size = 0x20000, scoped, tag = 'scratch operand']
  %s0 = inlined_call_operand.vmem [shape: f32[64,6], index: 0, kind: input, shape index: {}]
  %s1 = inlined_call_operand.vmem [shape: bf16[6,128], index: 1, kind: input, shape index: {}]
  %s2 = inlined_call_operand.vmem [shape: f32[1,128], index: 2, kind: input, shape index: {}]
  %s3 = inlined_call_operand.hbm [shape: bf16[128,512], index: 3, kind: input, shape index: {}]
  %s4 = inlined_call_operand.hbm [shape: bf16[128,512], index: 4, kind: input, shape index: {}]
  %s5 = inlined_call_operand.vmem [shape: f32[1,512], index: 5, kind: input, shape index: {}]
  %s6 = inlined_call_operand.hbm [shape: bf16[256,512], index: 6, kind: input, shape index: {}]
  %s7 = inlined_call_operand.vmem [shape: f32[1,512], index: 7, kind: input, shape index: {}]
  %s8 = inlined_call_operand.hbm [shape: bf16[256,512], index: 8, kind: input, shape index: {}]
  %s9 = inlined_call_operand.vmem [shape: f32[1,512], index: 9, kind: input, shape index: {}]
  %s10 = inlined_call_operand.hbm [shape: f32[3,8,128], index: 10, kind: output, shape index: {0}]
  %s11 = inlined_call_operand.hbm [shape: f32[3,8,128], index: 11, kind: output, shape index: {1}]
  %12 = xla_tuple %s10, %s11
  %s13 = sld [smem:[#allocation0]]
  $region74: #{tpu_custom_call.1} parent=0
    _
  %s15 = ssub.s32 1, %s13
  %s16 = scalar_select 0, %s15, %s13
  $region1: #{tpu_custom_call.1} parent=0
    #allocation3 [shape = 'u8[131072]{0}', space=vmem, size = 0x20000, scoped, tag = 'input window, operand 3, single buffered']
    #allocation4 [shape = 's32[1]{0}', space=sflag, size = 0x4, scoped, tag = 'scoped memory for tpu_custom_call.1']
    #allocation5 [shape = 's32[1]{0}', space=sflag, size = 0x4, scoped, tag = 'scoped memory for tpu_custom_call.1']
    #allocation6 [shape = 'u8[131072]{0}', space=vmem, size = 0x20000, scoped, tag = 'input window, operand 4, single buffered']
    #allocation7 [shape = 's32[1]{0}', space=sflag, size = 0x4, scoped, tag = 'scoped memory for tpu_custom_call.1']
    #allocation8 [shape = 'u8[262144]{0}', space=vmem, size = 0x40000, scoped, tag = 'input window, operand 6, single buffered']
    #allocation9 [shape = 'u8[262144]{0}', space=vmem, size = 0x40000, scoped, tag = 'input window, operand 8, single buffered']
    #allocation10 [shape = 's32[1]{0}', space=sflag, size = 0x4, scoped, tag = 'scoped memory for tpu_custom_call.1']
    #allocation11 [shape = 'u8[12288]{0}', space=vmem, size = 0x3000, scoped, tag = 'output window, operand 0, single buffered']
    #allocation12 [shape = 'u8[12288]{0}', space=vmem, size = 0x3000, scoped, tag = 'output window, operand 1, single buffered']
    #allocation13 [shape = 's32[1]{0}', space=sflag, size = 0x4, scoped, tag = 'scoped memory for tpu_custom_call.1']
    %17 = vsyncpa [#allocation4], 0
    %18 = vsyncpa [#allocation7], 0
    %19 = vsyncpa [#allocation10], 0
    %20 = vsyncpa [#allocation5], 0
    %21 = vsyncpa [#allocation13], 0
    // Predicated region
    $region2: #{tpu_custom_call.1} parent=1 // pred_check
      _
    $region3: #{tpu_custom_call.1} parent=1 // pred_check_branch
      %23 = sbr.rel (0) target = $region5
    $region4: #{tpu_custom_call.1} parent=1 // pred_region
      _
    $region5: #{tpu_custom_call.1} parent=1 // pred_fallthru
      _
    // Predicated region
    $region6: #{tpu_custom_call.1} parent=1 // pred_check
      _
    $region7: #{tpu_custom_call.1} parent=1 // pred_check_branch
      %25 = sbr.rel (0) target = $region9
    $region8: #{tpu_custom_call.1} parent=1 // pred_region
      _
    $region9: #{tpu_custom_call.1} parent=1 // pred_fallthru
      _
    // Predicated region
    $region10: #{tpu_custom_call.1} parent=1 // pred_check
      _
    $region11: #{tpu_custom_call.1} parent=1 // pred_check_branch
      %27 = sbr.rel (0) target = $region13
    $region12: #{tpu_custom_call.1} parent=1 // pred_region
      _
    $region13: #{tpu_custom_call.1} parent=1 // pred_fallthru
      _
    // Predicated region
    $region14: #{tpu_custom_call.1} parent=1 // pred_check
      _
    $region15: #{tpu_custom_call.1} parent=1 // pred_check_branch
      %29 = sbr.rel (0) target = $region17
    $region16: #{tpu_custom_call.1} parent=1 // pred_region
      %31 = vsyncadd [#allocation4], 0
      %s32 = sshll.u32 %s3, 4
      %s33 = int_to_ptr.hbm [resolvable:$true] %s32
      %s34 = sshll.u32 [#allocation3], 4
      %s35 = int_to_ptr.vmem [resolvable:$true] %s34
      %40 = dma.hbm_to_vmem [thread:$0]  %s33, 4096, %s35, [#allocation4], 256, 256, 16
    $region17: #{tpu_custom_call.1} parent=1 // pred_fallthru
      _
    // Predicated region
    $region18: #{tpu_custom_call.1} parent=1 // pred_check
      _
    $region19: #{tpu_custom_call.1} parent=1 // pred_check_branch
      %42 = sbr.rel (0) target = $region21
    $region20: #{tpu_custom_call.1} parent=1 // pred_region
      %44 = vsyncadd [#allocation7], 0
      %s45 = sshll.u32 %s4, 4
      %s46 = int_to_ptr.hbm [resolvable:$true] %s45
      %s47 = sshll.u32 [#allocation6], 4
      %s48 = int_to_ptr.vmem [resolvable:$true] %s47
      %53 = dma.hbm_to_vmem [thread:$0]  %s46, 4096, %s48, [#allocation7], 256, 256, 16
    $region21: #{tpu_custom_call.1} parent=1 // pred_fallthru
      _
    // Predicated region
    $region22: #{tpu_custom_call.1} parent=1 // pred_check
      _
    $region23: #{tpu_custom_call.1} parent=1 // pred_check_branch
      %55 = sbr.rel (0) target = $region25
    $region24: #{tpu_custom_call.1} parent=1 // pred_region
      _
    $region25: #{tpu_custom_call.1} parent=1 // pred_fallthru
      _
    // Predicated region
    $region26: #{tpu_custom_call.1} parent=1 // pred_check
      _
    $region27: #{tpu_custom_call.1} parent=1 // pred_check_branch
      %57 = sbr.rel (0) target = $region29
    $region28: #{tpu_custom_call.1} parent=1 // pred_region
      %59 = vsyncadd [#allocation7], 0
      %s60 = sshll.u32 %s6, 4
      %s61 = int_to_ptr.hbm [resolvable:$true] %s60
      %s62 = sshll.u32 [#allocation8], 4
      %s63 = int_to_ptr.vmem [resolvable:$true] %s62
      %68 = dma.hbm_to_vmem [thread:$0]  %s61, 8192, %s63, [#allocation7], 256, 256, 16
    $region29: #{tpu_custom_call.1} parent=1 // pred_fallthru
      _
    // Predicated region
    $region30: #{tpu_custom_call.1} parent=1 // pred_check
      _
    $region31: #{tpu_custom_call.1} parent=1 // pred_check_branch
      %70 = sbr.rel (0) target = $region33
    $region32: #{tpu_custom_call.1} parent=1 // pred_region
      _
    $region33: #{tpu_custom_call.1} parent=1 // pred_fallthru
      _
    // Predicated region
    $region34: #{tpu_custom_call.1} parent=1 // pred_check
      _
    $region35: #{tpu_custom_call.1} parent=1 // pred_check_branch
      %72 = sbr.rel (0) target = $region37
    $region36: #{tpu_custom_call.1} parent=1 // pred_region
      %74 = vsyncadd [#allocation10], 0
      %s75 = sshll.u32 %s8, 4
      %s76 = int_to_ptr.hbm [resolvable:$true] %s75
      %s77 = sshll.u32 [#allocation9], 4
      %s78 = int_to_ptr.vmem [resolvable:$true] %s77
      %83 = dma.hbm_to_vmem [thread:$0]  %s76, 8192, %s78, [#allocation10], 256, 256, 16
    $region37: #{tpu_custom_call.1} parent=1 // pred_fallthru
      _
    // Predicated region
    $region38: #{tpu_custom_call.1} parent=1 // pred_check
      _
    $region39: #{tpu_custom_call.1} parent=1 // pred_check_branch
      %85 = sbr.rel (0) target = $region41
    $region40: #{tpu_custom_call.1} parent=1 // pred_region
      _
    $region41: #{tpu_custom_call.1} parent=1 // pred_fallthru
      _
    // Predicated region
    $region42: #{tpu_custom_call.1} parent=1 // pred_check
      _
    $region43: #{tpu_custom_call.1} parent=1 // pred_check_branch
      %87 = sbr.rel (0) target = $region45
    $region44: #{tpu_custom_call.1} parent=1 // pred_region
      %89 = dma.done [#allocation4], 4096
    $region45: #{tpu_custom_call.1} parent=1 // pred_fallthru
      _
    // Predicated region
    $region46: #{tpu_custom_call.1} parent=1 // pred_check
      _
    $region47: #{tpu_custom_call.1} parent=1 // pred_check_branch
      %91 = sbr.rel (0) target = $region49
    $region48: #{tpu_custom_call.1} parent=1 // pred_region
      %93 = dma.done [#allocation7], 4096
    $region49: #{tpu_custom_call.1} parent=1 // pred_fallthru
      _
    // Predicated region
    $region50: #{tpu_custom_call.1} parent=1 // pred_check
      _
    $region51: #{tpu_custom_call.1} parent=1 // pred_check_branch
      %95 = sbr.rel (0) target = $region53
    $region52: #{tpu_custom_call.1} parent=1 // pred_region
      %97 = dma.done [#allocation7], 8192
    $region53: #{tpu_custom_call.1} parent=1 // pred_fallthru
      _
    // Predicated region
    $region54: #{tpu_custom_call.1} parent=1 // pred_check
      _
    $region55: #{tpu_custom_call.1} parent=1 // pred_check_branch
      %99 = sbr.rel (0) target = $region57
    $region56: #{tpu_custom_call.1} parent=1 // pred_region
      %101 = dma.done [#allocation10], 8192
    $region57: #{tpu_custom_call.1} parent=1 // pred_fallthru
      _
    %v103 = vld [vmem:[%s0] sm:$0xff]
    %v104 = vld [vmem:[%s0 + $0x8] sm:$0xff]
    %v105 = vld [vmem:[%s0 + $0x10] sm:$0xff]
    %v106 = vld [vmem:[%s0 + $0x18] sm:$0xff]
    %v107 = vld [vmem:[%s0 + $0x20] sm:$0xff]
    %v108 = vld [vmem:[%s0 + $0x28] sm:$0xff]
    %v109 = vld [vmem:[%s0 + $0x30] sm:$0xff]
    %v110 = vld [vmem:[%s0 + $0x38] sm:$0xff]
    %v111 = vpack.c.bf16 %v104, %v103
    %v112 = vpack.c.bf16 %v106, %v105
    %v113 = vpack.c.bf16 %v108, %v107
    %v114 = vpack.c.bf16 %v110, %v109
    %v115 = vld [vmem:[%s1] sm:$0x7]
    %v116 = vld [vmem:[%s2] sm:$0x1]
    %v118 = vperm.slane %v116, 0
    %vm120 = vcmask 48128
    %v122 = vsel %vm120, %v111, 0
    %v125 = vsel %vm120, %v112, 0
    %v128 = vsel %vm120, %v113, 0
    %v131 = vsel %vm120, %v114, 0
    %vm133 = vcmask 1042432
    %v135 = vsel %vm133, %v115, 0
    %137 = vmatpush.bf16.msra.mxu0 0
    %138 = vmatpush.bf16.msra.mxu0 0
    %139 = vmatpush.bf16.msra.mxu0 0
    %140 = vmatpush.bf16.msra.mxu0 0
    %141 = vmatpush.bf16.msra.mxu0 0
    %142 = vmatpush.bf16.msra.mxu0 0
    %143 = vmatpush.bf16.msra.mxu0 0
    %144 = vmatpush.bf16.msra.mxu0 %v135
    %145 = vmatmul.bf16.gmra.mxu0 %v122
    %v146 = vpop.f32.mrf.mxu0
    %v147 = vadd.f32 %v118, %v146
    %v148 = vpop.f32.mrf.mxu0
    %v149 = vadd.f32 %v118, %v148
    %150 = vmatmul.bf16.gmra.mxu0 %v125
    %v151 = vpop.f32.mrf.mxu0
    %v152 = vadd.f32 %v118, %v151
    %v153 = vpop.f32.mrf.mxu0
    %v154 = vadd.f32 %v118, %v153
    %155 = vmatmul.bf16.gmra.mxu0 %v128
    %v156 = vpop.f32.mrf.mxu0
    %v157 = vadd.f32 %v118, %v156
    %v158 = vpop.f32.mrf.mxu0
    %v159 = vadd.f32 %v118, %v158
    %160 = vmatmul.bf16.gmra.mxu0 %v131
    %v161 = vpop.f32.mrf.mxu0
    %v162 = vadd.f32 %v118, %v161
    %v163 = vpop.f32.mrf.mxu0
    %v164 = vadd.f32 %v118, %v163
    %165 = vdwg.mxu0
    %v166 = vmax.f32 %v147, 0.0
    %v167 = vmax.f32 %v149, 0.0
    %v168 = vmax.f32 %v152, 0.0
    %v169 = vmax.f32 %v154, 0.0
    %v170 = vmax.f32 %v157, 0.0
    %v171 = vmax.f32 %v159, 0.0
    %v172 = vmax.f32 %v162, 0.0
    %v173 = vmax.f32 %v164, 0.0
    %v174 = vpack.c.bf16 %v167, %v166
    %v175 = vpack.c.bf16 %v169, %v168
    %v176 = vpack.c.bf16 %v171, %v170
    %v177 = vpack.c.bf16 %v173, %v172
    %v178 = vld [vmem:[#allocation3] sm:$0xff]
    %v179 = vld [vmem:[#allocation3 + $0x8] sm:$0xff]
    %v180 = vld [vmem:[#allocation3 + $0x10] sm:$0xff]
    %v181 = vld [vmem:[#allocation3 + $0x18] sm:$0xff]
    %v182 = vld [vmem:[#allocation3 + $0x20] sm:$0xff]
    %v183 = vld [vmem:[#allocation3 + $0x28] sm:$0xff]
    %v184 = vld [vmem:[#allocation3 + $0x30] sm:$0xff]
    %v185 = vld [vmem:[#allocation3 + $0x38] sm:$0xff]
    %v186 = vld [vmem:[#allocation3 + $0x40] sm:$0xff]
    %v187 = vld [vmem:[#allocation3 + $0x48] sm:$0xff]
    %v188 = vld [vmem:[#allocation3 + $0x50] sm:$0xff]
    %v189 = vld [vmem:[#allocation3 + $0x58] sm:$0xff]
    %v190 = vld [vmem:[#allocation3 + $0x60] sm:$0xff]
    %v191 = vld [vmem:[#allocation3 + $0x68] sm:$0xff]
    %v192 = vld [vmem:[#allocation3 + $0x70] sm:$0xff]
    %v193 = vld [vmem:[#allocation3 + $0x78] sm:$0xff]
    %v194 = vld [vmem:[#allocation3 + $0x80] sm:$0xff]
    %v195 = vld [vmem:[#allocation3 + $0x88] sm:$0xff]
    %v196 = vld [vmem:[#allocation3 + $0x90] sm:$0xff]
    %v197 = vld [vmem:[#allocation3 + $0x98] sm:$0xff]
    %v198 = vld [vmem:[#allocation3 + $0xa0] sm:$0xff]
    %v199 = vld [vmem:[#allocation3 + $0xa8] sm:$0xff]
    %v200 = vld [vmem:[#allocation3 + $0xb0] sm:$0xff]
    %v201 = vld [vmem:[#allocation3 + $0xb8] sm:$0xff]
    %v202 = vld [vmem:[#allocation3 + $0xc0] sm:$0xff]
    %v203 = vld [vmem:[#allocation3 + $0xc8] sm:$0xff]
    %v204 = vld [vmem:[#allocation3 + $0xd0] sm:$0xff]
    %v205 = vld [vmem:[#allocation3 + $0xd8] sm:$0xff]
    %v206 = vld [vmem:[#allocation3 + $0xe0] sm:$0xff]
    %v207 = vld [vmem:[#allocation3 + $0xe8] sm:$0xff]
    %v208 = vld [vmem:[#allocation3 + $0xf0] sm:$0xff]
    %v209 = vld [vmem:[#allocation3 + $0xf8] sm:$0xff]
    %v210 = vld [vmem:[%s5] sm:$0xf]
    %v212 = vperm.slane %v210, 0
    %v213 = vperm.slane %v210, 1
    %v214 = vperm.slane %v210, 2
    %v215 = vperm.slane %v210, 3
    %v252 = vunpack.c.l.b16 %v178
    %v253 = vunpack.c.h.b16 %v178
    %v254 = vunpack.c.l.b16 %v179
    %v255 = vunpack.c.h.b16 %v179
    %v256 = vunpack.c.l.b16 %v180
    %v257 = vunpack.c.h.b16 %v180
    %v258 = vunpack.c.l.b16 %v181
    %v259 = vunpack.c.h.b16 %v181
    %v260 = vunpack.c.l.b16 %v182
    %v261 = vunpack.c.h.b16 %v182
    %v262 = vunpack.c.l.b16 %v183
    %v263 = vunpack.c.h.b16 %v183
    %v264 = vunpack.c.l.b16 %v184
    %v265 = vunpack.c.h.b16 %v184
    %v266 = vunpack.c.l.b16 %v185
    %v267 = vunpack.c.h.b16 %v185
    %v268 = vunpack.c.l.b16 %v186
    %v269 = vunpack.c.h.b16 %v186
    %v270 = vunpack.c.l.b16 %v187
    %v271 = vunpack.c.h.b16 %v187
    %v272 = vunpack.c.l.b16 %v188
    %v273 = vunpack.c.h.b16 %v188
    %v274 = vunpack.c.l.b16 %v189
    %v275 = vunpack.c.h.b16 %v189
    %v276 = vunpack.c.l.b16 %v190
    %v277 = vunpack.c.h.b16 %v190
    %v278 = vunpack.c.l.b16 %v191
    %v279 = vunpack.c.h.b16 %v191
    %v280 = vunpack.c.l.b16 %v192
    %v281 = vunpack.c.h.b16 %v192
    %v282 = vunpack.c.l.b16 %v193
    %v283 = vunpack.c.h.b16 %v193
    %v284 = vunpack.c.l.b16 %v194
    %v285 = vunpack.c.h.b16 %v194
    %v286 = vunpack.c.l.b16 %v195
    %v287 = vunpack.c.h.b16 %v195
    %v288 = vunpack.c.l.b16 %v196
    %v289 = vunpack.c.h.b16 %v196
    %v290 = vunpack.c.l.b16 %v197
    %v291 = vunpack.c.h.b16 %v197
    %v292 = vunpack.c.l.b16 %v198
    %v293 = vunpack.c.h.b16 %v198
    %v294 = vunpack.c.l.b16 %v199
    %v295 = vunpack.c.h.b16 %v199
    %v296 = vunpack.c.l.b16 %v200
    %v297 = vunpack.c.h.b16 %v200
    %v298 = vunpack.c.l.b16 %v201
    %v299 = vunpack.c.h.b16 %v201
    %v300 = vunpack.c.l.b16 %v202
    %v301 = vunpack.c.h.b16 %v202
    %v302 = vunpack.c.l.b16 %v203
    %v303 = vunpack.c.h.b16 %v203
    %v304 = vunpack.c.l.b16 %v204
    %v305 = vunpack.c.h.b16 %v204
    %v306 = vunpack.c.l.b16 %v205
    %v307 = vunpack.c.h.b16 %v205
    %v308 = vunpack.c.l.b16 %v206
    %v309 = vunpack.c.h.b16 %v206
    %v310 = vunpack.c.l.b16 %v207
    %v311 = vunpack.c.h.b16 %v207
    %v312 = vunpack.c.l.b16 %v208
    %v313 = vunpack.c.h.b16 %v208
    %v314 = vunpack.c.l.b16 %v209
    %v315 = vunpack.c.h.b16 %v209
    %v316 = vpack.c.b16 %v256, %v252
    %v317 = vpack.c.b16 %v257, %v253
    %v318 = vpack.c.b16 %v258, %v254
    %v319 = vpack.c.b16 %v259, %v255
    %v320 = vpack.c.b16 %v264, %v260
    %v321 = vpack.c.b16 %v265, %v261
    %v322 = vpack.c.b16 %v266, %v262
    %v323 = vpack.c.b16 %v267, %v263
    %v324 = vpack.c.b16 %v272, %v268
    %v325 = vpack.c.b16 %v273, %v269
    %v326 = vpack.c.b16 %v274, %v270
    %v327 = vpack.c.b16 %v275, %v271
    %v328 = vpack.c.b16 %v280, %v276
    %v329 = vpack.c.b16 %v281, %v277
    %v330 = vpack.c.b16 %v282, %v278
    %v331 = vpack.c.b16 %v283, %v279
    %v332 = vpack.c.b16 %v288, %v284
    %v333 = vpack.c.b16 %v289, %v285
    %v334 = vpack.c.b16 %v290, %v286
    %v335 = vpack.c.b16 %v291, %v287
    %v336 = vpack.c.b16 %v296, %v292
    %v337 = vpack.c.b16 %v297, %v293
    %v338 = vpack.c.b16 %v298, %v294
    %v339 = vpack.c.b16 %v299, %v295
    %v340 = vpack.c.b16 %v304, %v300
    %v341 = vpack.c.b16 %v305, %v301
    %v342 = vpack.c.b16 %v306, %v302
    %v343 = vpack.c.b16 %v307, %v303
    %v344 = vpack.c.b16 %v312, %v308
    %v345 = vpack.c.b16 %v313, %v309
    %v346 = vpack.c.b16 %v314, %v310
    %v347 = vpack.c.b16 %v315, %v311
    %380 = vmatpush.bf16.msra.mxu0 %v344
    %381 = vmatpush.bf16.msra.mxu0 %v340
    %382 = vmatpush.bf16.msra.mxu0 %v336
    %383 = vmatpush.bf16.msra.mxu0 %v332
    %384 = vmatpush.bf16.msra.mxu0 %v328
    %385 = vmatpush.bf16.msra.mxu0 %v324
    %386 = vmatpush.bf16.msra.mxu0 %v320
    %387 = vmatpush.bf16.msra.mxu0 %v316
    %388 = vmatmul.bf16.gmra.mxu0 %v174
    %v389 = vpop.f32.mrf.mxu0
    %v390 = vadd.f32 %v212, %v389
    %v391 = vpop.f32.mrf.mxu0
    %v392 = vadd.f32 %v212, %v391
    %393 = vmatmul.bf16.gmra.mxu0 %v175
    %v394 = vpop.f32.mrf.mxu0
    %v395 = vadd.f32 %v212, %v394
    %v396 = vpop.f32.mrf.mxu0
    %v397 = vadd.f32 %v212, %v396
    %398 = vmatmul.bf16.gmra.mxu0 %v176
    %v399 = vpop.f32.mrf.mxu0
    %v400 = vadd.f32 %v212, %v399
    %v401 = vpop.f32.mrf.mxu0
    %v402 = vadd.f32 %v212, %v401
    %403 = vmatmul.bf16.gmra.mxu0 %v177
    %v404 = vpop.f32.mrf.mxu0
    %v405 = vadd.f32 %v212, %v404
    %v406 = vpop.f32.mrf.mxu0
    %v407 = vadd.f32 %v212, %v406
    %408 = vdwg.mxu0
    %409 = vmatpush.bf16.msra.mxu0 %v345
    %410 = vmatpush.bf16.msra.mxu0 %v341
    %411 = vmatpush.bf16.msra.mxu0 %v337
    %412 = vmatpush.bf16.msra.mxu0 %v333
    %413 = vmatpush.bf16.msra.mxu0 %v329
    %414 = vmatpush.bf16.msra.mxu0 %v325
    %415 = vmatpush.bf16.msra.mxu0 %v321
    %416 = vmatpush.bf16.msra.mxu0 %v317
    %417 = vmatmul.bf16.gmra.mxu0 %v174
    %v418 = vpop.f32.mrf.mxu0
    %v419 = vadd.f32 %v213, %v418
    %v420 = vpop.f32.mrf.mxu0
    %v421 = vadd.f32 %v213, %v420
    %422 = vmatmul.bf16.gmra.mxu0 %v175
    %v423 = vpop.f32.mrf.mxu0
    %v424 = vadd.f32 %v213, %v423
    %v425 = vpop.f32.mrf.mxu0
    %v426 = vadd.f32 %v213, %v425
    %427 = vmatmul.bf16.gmra.mxu0 %v176
    %v428 = vpop.f32.mrf.mxu0
    %v429 = vadd.f32 %v213, %v428
    %v430 = vpop.f32.mrf.mxu0
    %v431 = vadd.f32 %v213, %v430
    %432 = vmatmul.bf16.gmra.mxu0 %v177
    %v433 = vpop.f32.mrf.mxu0
    %v434 = vadd.f32 %v213, %v433
    %v435 = vpop.f32.mrf.mxu0
    %v436 = vadd.f32 %v213, %v435
    %437 = vdwg.mxu0
    %438 = vmatpush.bf16.msra.mxu0 %v346
    %439 = vmatpush.bf16.msra.mxu0 %v342
    %440 = vmatpush.bf16.msra.mxu0 %v338
    %441 = vmatpush.bf16.msra.mxu0 %v334
    %442 = vmatpush.bf16.msra.mxu0 %v330
    %443 = vmatpush.bf16.msra.mxu0 %v326
    %444 = vmatpush.bf16.msra.mxu0 %v322
    %445 = vmatpush.bf16.msra.mxu0 %v318
    %446 = vmatmul.bf16.gmra.mxu0 %v174
    %v447 = vpop.f32.mrf.mxu0
    %v448 = vadd.f32 %v214, %v447
    %v449 = vpop.f32.mrf.mxu0
    %v450 = vadd.f32 %v214, %v449
    %451 = vmatmul.bf16.gmra.mxu0 %v175
    %v452 = vpop.f32.mrf.mxu0
    %v453 = vadd.f32 %v214, %v452
    %v454 = vpop.f32.mrf.mxu0
    %v455 = vadd.f32 %v214, %v454
    %456 = vmatmul.bf16.gmra.mxu0 %v176
    %v457 = vpop.f32.mrf.mxu0
    %v458 = vadd.f32 %v214, %v457
    %v459 = vpop.f32.mrf.mxu0
    %v460 = vadd.f32 %v214, %v459
    %461 = vmatmul.bf16.gmra.mxu0 %v177
    %v462 = vpop.f32.mrf.mxu0
    %v463 = vadd.f32 %v214, %v462
    %v464 = vpop.f32.mrf.mxu0
    %v465 = vadd.f32 %v214, %v464
    %466 = vdwg.mxu0
    %467 = vmatpush.bf16.msra.mxu0 %v347
    %468 = vmatpush.bf16.msra.mxu0 %v343
    %469 = vmatpush.bf16.msra.mxu0 %v339
    %470 = vmatpush.bf16.msra.mxu0 %v335
    %471 = vmatpush.bf16.msra.mxu0 %v331
    %472 = vmatpush.bf16.msra.mxu0 %v327
    %473 = vmatpush.bf16.msra.mxu0 %v323
    %474 = vmatpush.bf16.msra.mxu0 %v319
    %475 = vmatmul.bf16.gmra.mxu0 %v174
    %v476 = vpop.f32.mrf.mxu0
    %v477 = vadd.f32 %v215, %v476
    %v478 = vpop.f32.mrf.mxu0
    %v479 = vadd.f32 %v215, %v478
    %480 = vmatmul.bf16.gmra.mxu0 %v175
    %v481 = vpop.f32.mrf.mxu0
    %v482 = vadd.f32 %v215, %v481
    %v483 = vpop.f32.mrf.mxu0
    %v484 = vadd.f32 %v215, %v483
    %485 = vmatmul.bf16.gmra.mxu0 %v176
    %v486 = vpop.f32.mrf.mxu0
    %v487 = vadd.f32 %v215, %v486
    %v488 = vpop.f32.mrf.mxu0
    %v489 = vadd.f32 %v215, %v488
    %490 = vmatmul.bf16.gmra.mxu0 %v177
    %v491 = vpop.f32.mrf.mxu0
    %v492 = vadd.f32 %v215, %v491
    %v493 = vpop.f32.mrf.mxu0
    %v494 = vadd.f32 %v215, %v493
    %495 = vdwg.mxu0
    %496 = vst [vmem:[#allocation2] sm:$0xff] %v390
    %497 = vst [vmem:[#allocation2 + $0x8] sm:$0xff] %v419
    %498 = vst [vmem:[#allocation2 + $0x10] sm:$0xff] %v448
    %499 = vst [vmem:[#allocation2 + $0x18] sm:$0xff] %v477
    %500 = vst [vmem:[#allocation2 + $0x20] sm:$0xff] %v392
    %501 = vst [vmem:[#allocation2 + $0x28] sm:$0xff] %v421
    %502 = vst [vmem:[#allocation2 + $0x30] sm:$0xff] %v450
    %503 = vst [vmem:[#allocation2 + $0x38] sm:$0xff] %v479
    %504 = vst [vmem:[#allocation2 + $0x40] sm:$0xff] %v395
    %505 = vst [vmem:[#allocation2 + $0x48] sm:$0xff] %v424
    %506 = vst [vmem:[#allocation2 + $0x50] sm:$0xff] %v453
    %507 = vst [vmem:[#allocation2 + $0x58] sm:$0xff] %v482
    %508 = vst [vmem:[#allocation2 + $0x60] sm:$0xff] %v397
    %509 = vst [vmem:[#allocation2 + $0x68] sm:$0xff] %v426
    %510 = vst [vmem:[#allocation2 + $0x70] sm:$0xff] %v455
    %511 = vst [vmem:[#allocation2 + $0x78] sm:$0xff] %v484
    %512 = vst [vmem:[#allocation2 + $0x80] sm:$0xff] %v400
    %513 = vst [vmem:[#allocation2 + $0x88] sm:$0xff] %v429
    %514 = vst [vmem:[#allocation2 + $0x90] sm:$0xff] %v458
    %515 = vst [vmem:[#allocation2 + $0x98] sm:$0xff] %v487
    %516 = vst [vmem:[#allocation2 + $0xa0] sm:$0xff] %v402
    %517 = vst [vmem:[#allocation2 + $0xa8] sm:$0xff] %v431
    %518 = vst [vmem:[#allocation2 + $0xb0] sm:$0xff] %v460
    %519 = vst [vmem:[#allocation2 + $0xb8] sm:$0xff] %v489
    %520 = vst [vmem:[#allocation2 + $0xc0] sm:$0xff] %v405
    %521 = vst [vmem:[#allocation2 + $0xc8] sm:$0xff] %v434
    %522 = vst [vmem:[#allocation2 + $0xd0] sm:$0xff] %v463
    %523 = vst [vmem:[#allocation2 + $0xd8] sm:$0xff] %v492
    %524 = vst [vmem:[#allocation2 + $0xe0] sm:$0xff] %v407
    %525 = vst [vmem:[#allocation2 + $0xe8] sm:$0xff] %v436
    %526 = vst [vmem:[#allocation2 + $0xf0] sm:$0xff] %v465
    %527 = vst [vmem:[#allocation2 + $0xf8] sm:$0xff] %v494
    %v528 = vld [vmem:[%s7] sm:$0xf]
    %v530 = vperm.slane %v528, 0
    %v531 = vperm.slane %v528, 1
    %v532 = vperm.slane %v528, 2
    %v533 = vperm.slane %v528, 3
    %v538 = vld [vmem:[%s9] sm:$0xf]
    %v540 = vperm.slane %v538, 0
    %v541 = vperm.slane %v538, 1
    %v542 = vperm.slane %v538, 2
    %v543 = vperm.slane %v538, 3
    %v548 = vld [vmem:[#allocation2] sm:$0xff]
    %v549 = vld [vmem:[#allocation2 + $0x8] sm:$0xff]
    %v550 = vld [vmem:[#allocation2 + $0x10] sm:$0xff]
    %v551 = vld [vmem:[#allocation2 + $0x18] sm:$0xff]
    %v552 = vld [vmem:[#allocation6] sm:$0xff]
    %v553 = vld [vmem:[#allocation6 + $0x8] sm:$0xff]
    %v554 = vld [vmem:[#allocation6 + $0x10] sm:$0xff]
    %v555 = vld [vmem:[#allocation6 + $0x18] sm:$0xff]
    %v556 = vld [vmem:[#allocation6 + $0x20] sm:$0xff]
    %v557 = vld [vmem:[#allocation6 + $0x28] sm:$0xff]
    %v558 = vld [vmem:[#allocation6 + $0x30] sm:$0xff]
    %v559 = vld [vmem:[#allocation6 + $0x38] sm:$0xff]
    %v560 = vld [vmem:[#allocation6 + $0x40] sm:$0xff]
    %v561 = vld [vmem:[#allocation6 + $0x48] sm:$0xff]
    %v562 = vld [vmem:[#allocation6 + $0x50] sm:$0xff]
    %v563 = vld [vmem:[#allocation6 + $0x58] sm:$0xff]
    %v564 = vld [vmem:[#allocation6 + $0x60] sm:$0xff]
    %v565 = vld [vmem:[#allocation6 + $0x68] sm:$0xff]
    %v566 = vld [vmem:[#allocation6 + $0x70] sm:$0xff]
    %v567 = vld [vmem:[#allocation6 + $0x78] sm:$0xff]
    %v568 = vld [vmem:[#allocation6 + $0x80] sm:$0xff]
    %v569 = vld [vmem:[#allocation6 + $0x88] sm:$0xff]
    %v570 = vld [vmem:[#allocation6 + $0x90] sm:$0xff]
    %v571 = vld [vmem:[#allocation6 + $0x98] sm:$0xff]
    %v572 = vld [vmem:[#allocation6 + $0xa0] sm:$0xff]
    %v573 = vld [vmem:[#allocation6 + $0xa8] sm:$0xff]
    %v574 = vld [vmem:[#allocation6 + $0xb0] sm:$0xff]
    %v575 = vld [vmem:[#allocation6 + $0xb8] sm:$0xff]
    %v576 = vld [vmem:[#allocation6 + $0xc0] sm:$0xff]
    %v577 = vld [vmem:[#allocation6 + $0xc8] sm:$0xff]
    %v578 = vld [vmem:[#allocation6 + $0xd0] sm:$0xff]
    %v579 = vld [vmem:[#allocation6 + $0xd8] sm:$0xff]
    %v580 = vld [vmem:[#allocation6 + $0xe0] sm:$0xff]
    %v581 = vld [vmem:[#allocation6 + $0xe8] sm:$0xff]
    %v582 = vld [vmem:[#allocation6 + $0xf0] sm:$0xff]
    %v583 = vld [vmem:[#allocation6 + $0xf8] sm:$0xff]
    %v616 = vunpack.c.l.b16 %v552
    %v617 = vunpack.c.h.b16 %v552
    %v618 = vunpack.c.l.b16 %v553
    %v619 = vunpack.c.h.b16 %v553
    %v620 = vunpack.c.l.b16 %v554
    %v621 = vunpack.c.h.b16 %v554
    %v622 = vunpack.c.l.b16 %v555
    %v623 = vunpack.c.h.b16 %v555
    %v624 = vunpack.c.l.b16 %v556
    %v625 = vunpack.c.h.b16 %v556
    %v626 = vunpack.c.l.b16 %v557
    %v627 = vunpack.c.h.b16 %v557
    %v628 = vunpack.c.l.b16 %v558
    %v629 = vunpack.c.h.b16 %v558
    %v630 = vunpack.c.l.b16 %v559
    %v631 = vunpack.c.h.b16 %v559
    %v632 = vunpack.c.l.b16 %v560
    %v633 = vunpack.c.h.b16 %v560
    %v634 = vunpack.c.l.b16 %v561
    %v635 = vunpack.c.h.b16 %v561
    %v636 = vunpack.c.l.b16 %v562
    %v637 = vunpack.c.h.b16 %v562
    %v638 = vunpack.c.l.b16 %v563
    %v639 = vunpack.c.h.b16 %v563
    %v640 = vunpack.c.l.b16 %v564
    %v641 = vunpack.c.h.b16 %v564
    %v642 = vunpack.c.l.b16 %v565
    %v643 = vunpack.c.h.b16 %v565
    %v644 = vunpack.c.l.b16 %v566
    %v645 = vunpack.c.h.b16 %v566
    %v646 = vunpack.c.l.b16 %v567
    %v647 = vunpack.c.h.b16 %v567
    %v648 = vunpack.c.l.b16 %v568
    %v649 = vunpack.c.h.b16 %v568
    %v650 = vunpack.c.l.b16 %v569
    %v651 = vunpack.c.h.b16 %v569
    %v652 = vunpack.c.l.b16 %v570
    %v653 = vunpack.c.h.b16 %v570
    %v654 = vunpack.c.l.b16 %v571
    %v655 = vunpack.c.h.b16 %v571
    %v656 = vunpack.c.l.b16 %v572
    %v657 = vunpack.c.h.b16 %v572
    %v658 = vunpack.c.l.b16 %v573
    %v659 = vunpack.c.h.b16 %v573
    %v660 = vunpack.c.l.b16 %v574
    %v661 = vunpack.c.h.b16 %v574
    %v662 = vunpack.c.l.b16 %v575
    %v663 = vunpack.c.h.b16 %v575
    %v664 = vunpack.c.l.b16 %v576
    %v665 = vunpack.c.h.b16 %v576
    %v666 = vunpack.c.l.b16 %v577
    %v667 = vunpack.c.h.b16 %v577
    %v668 = vunpack.c.l.b16 %v578
    %v669 = vunpack.c.h.b16 %v578
    %v670 = vunpack.c.l.b16 %v579
    %v671 = vunpack.c.h.b16 %v579
    %v672 = vunpack.c.l.b16 %v580
    %v673 = vunpack.c.h.b16 %v580
    %v674 = vunpack.c.l.b16 %v581
    %v675 = vunpack.c.h.b16 %v581
    %v676 = vunpack.c.l.b16 %v582
    %v677 = vunpack.c.h.b16 %v582
    %v678 = vunpack.c.l.b16 %v583
    %v679 = vunpack.c.h.b16 %v583
    %v680 = vpack.c.b16 %v620, %v616
    %v681 = vpack.c.b16 %v621, %v617
    %v682 = vpack.c.b16 %v622, %v618
    %v683 = vpack.c.b16 %v623, %v619
    %v684 = vpack.c.b16 %v628, %v624
    %v685 = vpack.c.b16 %v629, %v625
    %v686 = vpack.c.b16 %v630, %v626
    %v687 = vpack.c.b16 %v631, %v627
    %v688 = vpack.c.b16 %v636, %v632
    %v689 = vpack.c.b16 %v637, %v633
    %v690 = vpack.c.b16 %v638, %v634
    %v691 = vpack.c.b16 %v639, %v635
    %v692 = vpack.c.b16 %v644, %v640
    %v693 = vpack.c.b16 %v645, %v641
    %v694 = vpack.c.b16 %v646, %v642
    %v695 = vpack.c.b16 %v647, %v643
    %v696 = vpack.c.b16 %v652, %v648
    %v697 = vpack.c.b16 %v653, %v649
    %v698 = vpack.c.b16 %v654, %v650
    %v699 = vpack.c.b16 %v655, %v651
    %v700 = vpack.c.b16 %v660, %v656
    %v701 = vpack.c.b16 %v661, %v657
    %v702 = vpack.c.b16 %v662, %v658
    %v703 = vpack.c.b16 %v663, %v659
    %v704 = vpack.c.b16 %v668, %v664
    %v705 = vpack.c.b16 %v669, %v665
    %v706 = vpack.c.b16 %v670, %v666
    %v707 = vpack.c.b16 %v671, %v667
    %v708 = vpack.c.b16 %v676, %v672
    %v709 = vpack.c.b16 %v677, %v673
    %v710 = vpack.c.b16 %v678, %v674
    %v711 = vpack.c.b16 %v679, %v675
    %744 = vmatpush.bf16.msra.mxu0 %v708
    %745 = vmatpush.bf16.msra.mxu0 %v704
    %746 = vmatpush.bf16.msra.mxu0 %v700
    %747 = vmatpush.bf16.msra.mxu0 %v696
    %748 = vmatpush.bf16.msra.mxu0 %v692
    %749 = vmatpush.bf16.msra.mxu0 %v688
    %750 = vmatpush.bf16.msra.mxu0 %v684
    %751 = vmatpush.bf16.msra.mxu0 %v680
    %752 = vmatmul.bf16.gmra.mxu0 0
    %v753 = vpop.f32.mrf.mxu0
    %v754 = vadd.f32 0.0, %v753
    %v755 = vpop.f32.mrf.mxu0
    %756 = vdwg.mxu0
    %757 = vmatpush.bf16.msra.mxu0 %v709
    %758 = vmatpush.bf16.msra.mxu0 %v705
    %759 = vmatpush.bf16.msra.mxu0 %v701
    %760 = vmatpush.bf16.msra.mxu0 %v697
    %761 = vmatpush.bf16.msra.mxu0 %v693
    %762 = vmatpush.bf16.msra.mxu0 %v689
    %763 = vmatpush.bf16.msra.mxu0 %v685
    %764 = vmatpush.bf16.msra.mxu0 %v681
    %765 = vmatmul.bf16.gmra.mxu0 0
    %v766 = vpop.f32.mrf.mxu0
    %v767 = vadd.f32 0.0, %v766
    %v768 = vpop.f32.mrf.mxu0
    %769 = vdwg.mxu0
    %770 = vmatpush.bf16.msra.mxu0 %v710
    %771 = vmatpush.bf16.msra.mxu0 %v706
    %772 = vmatpush.bf16.msra.mxu0 %v702
    %773 = vmatpush.bf16.msra.mxu0 %v698
    %774 = vmatpush.bf16.msra.mxu0 %v694
    %775 = vmatpush.bf16.msra.mxu0 %v690
    %776 = vmatpush.bf16.msra.mxu0 %v686
    %777 = vmatpush.bf16.msra.mxu0 %v682
    %778 = vmatmul.bf16.gmra.mxu0 0
    %v779 = vpop.f32.mrf.mxu0
    %v780 = vadd.f32 0.0, %v779
    %v781 = vpop.f32.mrf.mxu0
    %782 = vdwg.mxu0
    %783 = vmatpush.bf16.msra.mxu0 %v711
    %784 = vmatpush.bf16.msra.mxu0 %v707
    %785 = vmatpush.bf16.msra.mxu0 %v703
    %786 = vmatpush.bf16.msra.mxu0 %v699
    %787 = vmatpush.bf16.msra.mxu0 %v695
    %788 = vmatpush.bf16.msra.mxu0 %v691
    %789 = vmatpush.bf16.msra.mxu0 %v687
    %790 = vmatpush.bf16.msra.mxu0 %v683
    %791 = vmatmul.bf16.gmra.mxu0 0
    %v792 = vpop.f32.mrf.mxu0
    %v793 = vadd.f32 0.0, %v792
    %v794 = vpop.f32.mrf.mxu0
    %795 = vdwg.mxu0
    %v796 = vadd.f32 %v548, %v754
    %v797 = vadd.f32 %v549, %v767
    %v798 = vadd.f32 %v550, %v780
    %v799 = vadd.f32 %v551, %v793
    %v800 = vmul.f32 %v796, 0.5
    %v801 = vtanh.pop %v800
    %v802 = vmul.f32 %v801, 0.5
    %v803 = vadd.f32 %v802, 0.5
    %v804 = vmul.f32 %v797, 0.5
    %v805 = vtanh.pop %v804
    %v806 = vmul.f32 %v805, 0.5
    %v807 = vadd.f32 %v806, 0.5
    %v808 = vtanh.pop %v798
    %v809 = vmul.f32 %v799, 0.5
    %v810 = vtanh.pop %v809
    %v811 = vmul.f32 %v810, 0.5
    %v812 = vadd.f32 %v811, 0.5
    %v813 = vmul.f32 %v807, 0.0
    %v814 = vmul.f32 %v803, %v808
    %v815 = vadd.f32 %v813, %v814
    %v816 = vtanh.pop %v815
    %v817 = vmul.f32 %v812, %v816
    %v818 = vld [vmem:[#allocation2 + $0x20] sm:$0xff]
    %v819 = vld [vmem:[#allocation2 + $0x28] sm:$0xff]
    %v820 = vld [vmem:[#allocation2 + $0x30] sm:$0xff]
    %v821 = vld [vmem:[#allocation2 + $0x38] sm:$0xff]
    %v822 = vpack.c.bf16 %v817, %v817
    %823 = vmatpush.bf16.msra.mxu0 %v708
    %824 = vmatpush.bf16.msra.mxu0 %v704
    %825 = vmatpush.bf16.msra.mxu0 %v700
    %826 = vmatpush.bf16.msra.mxu0 %v696
    %827 = vmatpush.bf16.msra.mxu0 %v692
    %828 = vmatpush.bf16.msra.mxu0 %v688
    %829 = vmatpush.bf16.msra.mxu0 %v684
    %830 = vmatpush.bf16.msra.mxu0 %v680
    %831 = vmatmul.bf16.gmra.mxu0 %v822
    %v832 = vpop.f32.mrf.mxu0
    %v833 = vadd.f32 0.0, %v832
    %v834 = vpop.f32.mrf.mxu0
    %835 = vdwg.mxu0
    %836 = vmatpush.bf16.msra.mxu0 %v709
    %837 = vmatpush.bf16.msra.mxu0 %v705
    %838 = vmatpush.bf16.msra.mxu0 %v701
    %839 = vmatpush.bf16.msra.mxu0 %v697
    %840 = vmatpush.bf16.msra.mxu0 %v693
    %841 = vmatpush.bf16.msra.mxu0 %v689
    %842 = vmatpush.bf16.msra.mxu0 %v685
    %843 = vmatpush.bf16.msra.mxu0 %v681
    %844 = vmatmul.bf16.gmra.mxu0 %v822
    %v845 = vpop.f32.mrf.mxu0
    %v846 = vadd.f32 0.0, %v845
    %v847 = vpop.f32.mrf.mxu0
    %848 = vdwg.mxu0
    %849 = vmatpush.bf16.msra.mxu0 %v710
    %850 = vmatpush.bf16.msra.mxu0 %v706
    %851 = vmatpush.bf16.msra.mxu0 %v702
    %852 = vmatpush.bf16.msra.mxu0 %v698
    %853 = vmatpush.bf16.msra.mxu0 %v694
    %854 = vmatpush.bf16.msra.mxu0 %v690
    %855 = vmatpush.bf16.msra.mxu0 %v686
    %856 = vmatpush.bf16.msra.mxu0 %v682
    %857 = vmatmul.bf16.gmra.mxu0 %v822
    %v858 = vpop.f32.mrf.mxu0
    %v859 = vadd.f32 0.0, %v858
    %v860 = vpop.f32.mrf.mxu0
    %861 = vdwg.mxu0
    %862 = vmatpush.bf16.msra.mxu0 %v711
    %863 = vmatpush.bf16.msra.mxu0 %v707
    %864 = vmatpush.bf16.msra.mxu0 %v703
    %865 = vmatpush.bf16.msra.mxu0 %v699
    %866 = vmatpush.bf16.msra.mxu0 %v695
    %867 = vmatpush.bf16.msra.mxu0 %v691
    %868 = vmatpush.bf16.msra.mxu0 %v687
    %869 = vmatpush.bf16.msra.mxu0 %v683
    %870 = vmatmul.bf16.gmra.mxu0 %v822
    %v871 = vpop.f32.mrf.mxu0
    %v872 = vadd.f32 0.0, %v871
    %v873 = vpop.f32.mrf.mxu0
    %874 = vdwg.mxu0
    %v875 = vadd.f32 %v818, %v833
    %v876 = vadd.f32 %v819, %v846
    %v877 = vadd.f32 %v820, %v859
    %v878 = vadd.f32 %v821, %v872
    %v879 = vmul.f32 %v875, 0.5
    %v880 = vtanh.pop %v879
    %v881 = vmul.f32 %v880, 0.5
    %v882 = vadd.f32 %v881, 0.5
    %v883 = vmul.f32 %v876, 0.5
    %v884 = vtanh.pop %v883
    %v885 = vmul.f32 %v884, 0.5
    %v886 = vadd.f32 %v885, 0.5
    %v887 = vtanh.pop %v877
    %v888 = vmul.f32 %v878, 0.5
    %v889 = vtanh.pop %v888
    %v890 = vmul.f32 %v889, 0.5
    %v891 = vadd.f32 %v890, 0.5
    %v892 = vmul.f32 %v886, %v815
    %v893 = vmul.f32 %v882, %v887
    %v894 = vadd.f32 %v892, %v893
    %v895 = vtanh.pop %v894
    %v896 = vmul.f32 %v891, %v895
    %v897 = vpack.c.bf16 0.0, 0.0
    %v898 = vld [vmem:[#allocation8] sm:$0xff]
    %v899 = vld [vmem:[#allocation8 + $0x8] sm:$0xff]
    %v900 = vld [vmem:[#allocation8 + $0x10] sm:$0xff]
    %v901 = vld [vmem:[#allocation8 + $0x18] sm:$0xff]
    %v902 = vld [vmem:[#allocation8 + $0x20] sm:$0xff]
    %v903 = vld [vmem:[#allocation8 + $0x28] sm:$0xff]
    %v904 = vld [vmem:[#allocation8 + $0x30] sm:$0xff]
    %v905 = vld [vmem:[#allocation8 + $0x38] sm:$0xff]
    %v906 = vld [vmem:[#allocation8 + $0x40] sm:$0xff]
    %v907 = vld [vmem:[#allocation8 + $0x48] sm:$0xff]
    %v908 = vld [vmem:[#allocation8 + $0x50] sm:$0xff]
    %v909 = vld [vmem:[#allocation8 + $0x58] sm:$0xff]
    %v910 = vld [vmem:[#allocation8 + $0x60] sm:$0xff]
    %v911 = vld [vmem:[#allocation8 + $0x68] sm:$0xff]
    %v912 = vld [vmem:[#allocation8 + $0x70] sm:$0xff]
    %v913 = vld [vmem:[#allocation8 + $0x78] sm:$0xff]
    %v914 = vld [vmem:[#allocation8 + $0x80] sm:$0xff]
    %v915 = vld [vmem:[#allocation8 + $0x88] sm:$0xff]
    %v916 = vld [vmem:[#allocation8 + $0x90] sm:$0xff]
    %v917 = vld [vmem:[#allocation8 + $0x98] sm:$0xff]
    %v918 = vld [vmem:[#allocation8 + $0xa0] sm:$0xff]
    %v919 = vld [vmem:[#allocation8 + $0xa8] sm:$0xff]
    %v920 = vld [vmem:[#allocation8 + $0xb0] sm:$0xff]
    %v921 = vld [vmem:[#allocation8 + $0xb8] sm:$0xff]
    %v922 = vld [vmem:[#allocation8 + $0xc0] sm:$0xff]
    %v923 = vld [vmem:[#allocation8 + $0xc8] sm:$0xff]
    %v924 = vld [vmem:[#allocation8 + $0xd0] sm:$0xff]
    %v925 = vld [vmem:[#allocation8 + $0xd8] sm:$0xff]
    %v926 = vld [vmem:[#allocation8 + $0xe0] sm:$0xff]
    %v927 = vld [vmem:[#allocation8 + $0xe8] sm:$0xff]
    %v928 = vld [vmem:[#allocation8 + $0xf0] sm:$0xff]
    %v929 = vld [vmem:[#allocation8 + $0xf8] sm:$0xff]
    %v930 = vld [vmem:[#allocation8 + $0x100] sm:$0xff]
    %v931 = vld [vmem:[#allocation8 + $0x108] sm:$0xff]
    %v932 = vld [vmem:[#allocation8 + $0x110] sm:$0xff]
    %v933 = vld [vmem:[#allocation8 + $0x118] sm:$0xff]
    %v934 = vld [vmem:[#allocation8 + $0x120] sm:$0xff]
    %v935 = vld [vmem:[#allocation8 + $0x128] sm:$0xff]
    %v936 = vld [vmem:[#allocation8 + $0x130] sm:$0xff]
    %v937 = vld [vmem:[#allocation8 + $0x138] sm:$0xff]
    %v938 = vld [vmem:[#allocation8 + $0x140] sm:$0xff]
    %v939 = vld [vmem:[#allocation8 + $0x148] sm:$0xff]
    %v940 = vld [vmem:[#allocation8 + $0x150] sm:$0xff]
    %v941 = vld [vmem:[#allocation8 + $0x158] sm:$0xff]
    %v942 = vld [vmem:[#allocation8 + $0x160] sm:$0xff]
    %v943 = vld [vmem:[#allocation8 + $0x168] sm:$0xff]
    %v944 = vld [vmem:[#allocation8 + $0x170] sm:$0xff]
    %v945 = vld [vmem:[#allocation8 + $0x178] sm:$0xff]
    %v946 = vld [vmem:[#allocation8 + $0x180] sm:$0xff]
    %v947 = vld [vmem:[#allocation8 + $0x188] sm:$0xff]
    %v948 = vld [vmem:[#allocation8 + $0x190] sm:$0xff]
    %v949 = vld [vmem:[#allocation8 + $0x198] sm:$0xff]
    %v950 = vld [vmem:[#allocation8 + $0x1a0] sm:$0xff]
    %v951 = vld [vmem:[#allocation8 + $0x1a8] sm:$0xff]
    %v952 = vld [vmem:[#allocation8 + $0x1b0] sm:$0xff]
    %v953 = vld [vmem:[#allocation8 + $0x1b8] sm:$0xff]
    %v954 = vld [vmem:[#allocation8 + $0x1c0] sm:$0xff]
    %v955 = vld [vmem:[#allocation8 + $0x1c8] sm:$0xff]
    %v956 = vld [vmem:[#allocation8 + $0x1d0] sm:$0xff]
    %v957 = vld [vmem:[#allocation8 + $0x1d8] sm:$0xff]
    %v958 = vld [vmem:[#allocation8 + $0x1e0] sm:$0xff]
    %v959 = vld [vmem:[#allocation8 + $0x1e8] sm:$0xff]
    %v960 = vld [vmem:[#allocation8 + $0x1f0] sm:$0xff]
    %v961 = vld [vmem:[#allocation8 + $0x1f8] sm:$0xff]
    %v1026 = vunpack.c.l.b16 %v898
    %v1027 = vunpack.c.h.b16 %v898
    %v1028 = vunpack.c.l.b16 %v899
    %v1029 = vunpack.c.h.b16 %v899
    %v1030 = vunpack.c.l.b16 %v900
    %v1031 = vunpack.c.h.b16 %v900
    %v1032 = vunpack.c.l.b16 %v901
    %v1033 = vunpack.c.h.b16 %v901
    %v1034 = vunpack.c.l.b16 %v902
    %v1035 = vunpack.c.h.b16 %v902
    %v1036 = vunpack.c.l.b16 %v903
    %v1037 = vunpack.c.h.b16 %v903
    %v1038 = vunpack.c.l.b16 %v904
    %v1039 = vunpack.c.h.b16 %v904
    %v1040 = vunpack.c.l.b16 %v905
    %v1041 = vunpack.c.h.b16 %v905
    %v1042 = vunpack.c.l.b16 %v906
    %v1043 = vunpack.c.h.b16 %v906
    %v1044 = vunpack.c.l.b16 %v907
    %v1045 = vunpack.c.h.b16 %v907
    %v1046 = vunpack.c.l.b16 %v908
    %v1047 = vunpack.c.h.b16 %v908
    %v1048 = vunpack.c.l.b16 %v909
    %v1049 = vunpack.c.h.b16 %v909
    %v1050 = vunpack.c.l.b16 %v910
    %v1051 = vunpack.c.h.b16 %v910
    %v1052 = vunpack.c.l.b16 %v911
    %v1053 = vunpack.c.h.b16 %v911
    %v1054 = vunpack.c.l.b16 %v912
    %v1055 = vunpack.c.h.b16 %v912
    %v1056 = vunpack.c.l.b16 %v913
    %v1057 = vunpack.c.h.b16 %v913
    %v1058 = vunpack.c.l.b16 %v914
    %v1059 = vunpack.c.h.b16 %v914
    %v1060 = vunpack.c.l.b16 %v915
    %v1061 = vunpack.c.h.b16 %v915
    %v1062 = vunpack.c.l.b16 %v916
    %v1063 = vunpack.c.h.b16 %v916
    %v1064 = vunpack.c.l.b16 %v917
    %v1065 = vunpack.c.h.b16 %v917
    %v1066 = vunpack.c.l.b16 %v918
    %v1067 = vunpack.c.h.b16 %v918
    %v1068 = vunpack.c.l.b16 %v919
    %v1069 = vunpack.c.h.b16 %v919
    %v1070 = vunpack.c.l.b16 %v920
    %v1071 = vunpack.c.h.b16 %v920
    %v1072 = vunpack.c.l.b16 %v921
    %v1073 = vunpack.c.h.b16 %v921
    %v1074 = vunpack.c.l.b16 %v922
    %v1075 = vunpack.c.h.b16 %v922
    %v1076 = vunpack.c.l.b16 %v923
    %v1077 = vunpack.c.h.b16 %v923
    %v1078 = vunpack.c.l.b16 %v924
    %v1079 = vunpack.c.h.b16 %v924
    %v1080 = vunpack.c.l.b16 %v925
    %v1081 = vunpack.c.h.b16 %v925
    %v1082 = vunpack.c.l.b16 %v926
    %v1083 = vunpack.c.h.b16 %v926
    %v1084 = vunpack.c.l.b16 %v927
    %v1085 = vunpack.c.h.b16 %v927
    %v1086 = vunpack.c.l.b16 %v928
    %v1087 = vunpack.c.h.b16 %v928
    %v1088 = vunpack.c.l.b16 %v929
    %v1089 = vunpack.c.h.b16 %v929
    %v1090 = vunpack.c.l.b16 %v930
    %v1091 = vunpack.c.h.b16 %v930
    %v1092 = vunpack.c.l.b16 %v931
    %v1093 = vunpack.c.h.b16 %v931
    %v1094 = vunpack.c.l.b16 %v932
    %v1095 = vunpack.c.h.b16 %v932
    %v1096 = vunpack.c.l.b16 %v933
    %v1097 = vunpack.c.h.b16 %v933
    %v1098 = vunpack.c.l.b16 %v934
    %v1099 = vunpack.c.h.b16 %v934
    %v1100 = vunpack.c.l.b16 %v935
    %v1101 = vunpack.c.h.b16 %v935
    %v1102 = vunpack.c.l.b16 %v936
    %v1103 = vunpack.c.h.b16 %v936
    %v1104 = vunpack.c.l.b16 %v937
    %v1105 = vunpack.c.h.b16 %v937
    %v1106 = vunpack.c.l.b16 %v938
    %v1107 = vunpack.c.h.b16 %v938
    %v1108 = vunpack.c.l.b16 %v939
    %v1109 = vunpack.c.h.b16 %v939
    %v1110 = vunpack.c.l.b16 %v940
    %v1111 = vunpack.c.h.b16 %v940
    %v1112 = vunpack.c.l.b16 %v941
    %v1113 = vunpack.c.h.b16 %v941
    %v1114 = vunpack.c.l.b16 %v942
    %v1115 = vunpack.c.h.b16 %v942
    %v1116 = vunpack.c.l.b16 %v943
    %v1117 = vunpack.c.h.b16 %v943
    %v1118 = vunpack.c.l.b16 %v944
    %v1119 = vunpack.c.h.b16 %v944
    %v1120 = vunpack.c.l.b16 %v945
    %v1121 = vunpack.c.h.b16 %v945
    %v1122 = vunpack.c.l.b16 %v946
    %v1123 = vunpack.c.h.b16 %v946
    %v1124 = vunpack.c.l.b16 %v947
    %v1125 = vunpack.c.h.b16 %v947
    %v1126 = vunpack.c.l.b16 %v948
    %v1127 = vunpack.c.h.b16 %v948
    %v1128 = vunpack.c.l.b16 %v949
    %v1129 = vunpack.c.h.b16 %v949
    %v1130 = vunpack.c.l.b16 %v950
    %v1131 = vunpack.c.h.b16 %v950
    %v1132 = vunpack.c.l.b16 %v951
    %v1133 = vunpack.c.h.b16 %v951
    %v1134 = vunpack.c.l.b16 %v952
    %v1135 = vunpack.c.h.b16 %v952
    %v1136 = vunpack.c.l.b16 %v953
    %v1137 = vunpack.c.h.b16 %v953
    %v1138 = vunpack.c.l.b16 %v954
    %v1139 = vunpack.c.h.b16 %v954
    %v1140 = vunpack.c.l.b16 %v955
    %v1141 = vunpack.c.h.b16 %v955
    %v1142 = vunpack.c.l.b16 %v956
    %v1143 = vunpack.c.h.b16 %v956
    %v1144 = vunpack.c.l.b16 %v957
    %v1145 = vunpack.c.h.b16 %v957
    %v1146 = vunpack.c.l.b16 %v958
    %v1147 = vunpack.c.h.b16 %v958
    %v1148 = vunpack.c.l.b16 %v959
    %v1149 = vunpack.c.h.b16 %v959
    %v1150 = vunpack.c.l.b16 %v960
    %v1151 = vunpack.c.h.b16 %v960
    %v1152 = vunpack.c.l.b16 %v961
    %v1153 = vunpack.c.h.b16 %v961
    %v1154 = vpack.c.b16 %v1030, %v1026
    %v1155 = vpack.c.b16 %v1031, %v1027
    %v1156 = vpack.c.b16 %v1032, %v1028
    %v1157 = vpack.c.b16 %v1033, %v1029
    %v1158 = vpack.c.b16 %v1038, %v1034
    %v1159 = vpack.c.b16 %v1039, %v1035
    %v1160 = vpack.c.b16 %v1040, %v1036
    %v1161 = vpack.c.b16 %v1041, %v1037
    %v1162 = vpack.c.b16 %v1046, %v1042
    %v1163 = vpack.c.b16 %v1047, %v1043
    %v1164 = vpack.c.b16 %v1048, %v1044
    %v1165 = vpack.c.b16 %v1049, %v1045
    %v1166 = vpack.c.b16 %v1054, %v1050
    %v1167 = vpack.c.b16 %v1055, %v1051
    %v1168 = vpack.c.b16 %v1056, %v1052
    %v1169 = vpack.c.b16 %v1057, %v1053
    %v1170 = vpack.c.b16 %v1062, %v1058
    %v1171 = vpack.c.b16 %v1063, %v1059
    %v1172 = vpack.c.b16 %v1064, %v1060
    %v1173 = vpack.c.b16 %v1065, %v1061
    %v1174 = vpack.c.b16 %v1070, %v1066
    %v1175 = vpack.c.b16 %v1071, %v1067
    %v1176 = vpack.c.b16 %v1072, %v1068
    %v1177 = vpack.c.b16 %v1073, %v1069
    %v1178 = vpack.c.b16 %v1078, %v1074
    %v1179 = vpack.c.b16 %v1079, %v1075
    %v1180 = vpack.c.b16 %v1080, %v1076
    %v1181 = vpack.c.b16 %v1081, %v1077
    %v1182 = vpack.c.b16 %v1086, %v1082
    %v1183 = vpack.c.b16 %v1087, %v1083
    %v1184 = vpack.c.b16 %v1088, %v1084
    %v1185 = vpack.c.b16 %v1089, %v1085
    %v1186 = vpack.c.b16 %v1094, %v1090
    %v1187 = vpack.c.b16 %v1095, %v1091
    %v1188 = vpack.c.b16 %v1096, %v1092
    %v1189 = vpack.c.b16 %v1097, %v1093
    %v1190 = vpack.c.b16 %v1102, %v1098
    %v1191 = vpack.c.b16 %v1103, %v1099
    %v1192 = vpack.c.b16 %v1104, %v1100
    %v1193 = vpack.c.b16 %v1105, %v1101
    %v1194 = vpack.c.b16 %v1110, %v1106
    %v1195 = vpack.c.b16 %v1111, %v1107
    %v1196 = vpack.c.b16 %v1112, %v1108
    %v1197 = vpack.c.b16 %v1113, %v1109
    %v1198 = vpack.c.b16 %v1118, %v1114
    %v1199 = vpack.c.b16 %v1119, %v1115
    %v1200 = vpack.c.b16 %v1120, %v1116
    %v1201 = vpack.c.b16 %v1121, %v1117
    %v1202 = vpack.c.b16 %v1126, %v1122
    %v1203 = vpack.c.b16 %v1127, %v1123
    %v1204 = vpack.c.b16 %v1128, %v1124
    %v1205 = vpack.c.b16 %v1129, %v1125
    %v1206 = vpack.c.b16 %v1134, %v1130
    %v1207 = vpack.c.b16 %v1135, %v1131
    %v1208 = vpack.c.b16 %v1136, %v1132
    %v1209 = vpack.c.b16 %v1137, %v1133
    %v1210 = vpack.c.b16 %v1142, %v1138
    %v1211 = vpack.c.b16 %v1143, %v1139
    %v1212 = vpack.c.b16 %v1144, %v1140
    %v1213 = vpack.c.b16 %v1145, %v1141
    %v1214 = vpack.c.b16 %v1150, %v1146
    %v1215 = vpack.c.b16 %v1151, %v1147
    %v1216 = vpack.c.b16 %v1152, %v1148
    %v1217 = vpack.c.b16 %v1153, %v1149
    %1282 = vmatpush.bf16.msra.mxu0 %v1182
    %1283 = vmatpush.bf16.msra.mxu0 %v1178
    %1284 = vmatpush.bf16.msra.mxu0 %v1174
    %1285 = vmatpush.bf16.msra.mxu0 %v1170
    %1286 = vmatpush.bf16.msra.mxu0 %v1166
    %1287 = vmatpush.bf16.msra.mxu0 %v1162
    %1288 = vmatpush.bf16.msra.mxu0 %v1158
    %1289 = vmatpush.bf16.msra.mxu0 %v1154
    %1290 = vmatmul.bf16.gmra.mxu0 %v822
    %v1291 = vpop.f32.mrf.mxu0
    %v1292 = vadd.f32 %v530, %v1291
    %v1293 = vpop.f32.mrf.mxu0
    %1294 = vdwg.mxu0
    %1295 = vmatpush.bf16.msra.mxu0 %v1214
    %1296 = vmatpush.bf16.msra.mxu0 %v1210
    %1297 = vmatpush.bf16.msra.mxu0 %v1206
    %1298 = vmatpush.bf16.msra.mxu0 %v1202
    %1299 = vmatpush.bf16.msra.mxu0 %v1198
    %1300 = vmatpush.bf16.msra.mxu0 %v1194
    %1301 = vmatpush.bf16.msra.mxu0 %v1190
    %1302 = vmatpush.bf16.msra.mxu0 %v1186
    %1303 = vmatmul.bf16.gmra.mxu0 %v897
    %v1304 = vpop.f32.mrf.mxu0
    %v1305 = vadd.f32 %v1292, %v1304
    %v1306 = vpop.f32.mrf.mxu0
    %1307 = vdwg.mxu0
    %1308 = vmatpush.bf16.msra.mxu0 %v1183
    %1309 = vmatpush.bf16.msra.mxu0 %v1179
    %1310 = vmatpush.bf16.msra.mxu0 %v1175
    %1311 = vmatpush.bf16.msra.mxu0 %v1171
    %1312 = vmatpush.bf16.msra.mxu0 %v1167
    %1313 = vmatpush.bf16.msra.mxu0 %v1163
    %1314 = vmatpush.bf16.msra.mxu0 %v1159
    %1315 = vmatpush.bf16.msra.mxu0 %v1155
    %1316 = vmatmul.bf16.gmra.mxu0 %v822
    %v1317 = vpop.f32.mrf.mxu0
    %v1318 = vadd.f32 %v531, %v1317
    %v1319 = vpop.f32.mrf.mxu0
    %1320 = vdwg.mxu0
    %1321 = vmatpush.bf16.msra.mxu0 %v1215
    %1322 = vmatpush.bf16.msra.mxu0 %v1211
    %1323 = vmatpush.bf16.msra.mxu0 %v1207
    %1324 = vmatpush.bf16.msra.mxu0 %v1203
    %1325 = vmatpush.bf16.msra.mxu0 %v1199
    %1326 = vmatpush.bf16.msra.mxu0 %v1195
    %1327 = vmatpush.bf16.msra.mxu0 %v1191
    %1328 = vmatpush.bf16.msra.mxu0 %v1187
    %1329 = vmatmul.bf16.gmra.mxu0 %v897
    %v1330 = vpop.f32.mrf.mxu0
    %v1331 = vadd.f32 %v1318, %v1330
    %v1332 = vpop.f32.mrf.mxu0
    %1333 = vdwg.mxu0
    %1334 = vmatpush.bf16.msra.mxu0 %v1184
    %1335 = vmatpush.bf16.msra.mxu0 %v1180
    %1336 = vmatpush.bf16.msra.mxu0 %v1176
    %1337 = vmatpush.bf16.msra.mxu0 %v1172
    %1338 = vmatpush.bf16.msra.mxu0 %v1168
    %1339 = vmatpush.bf16.msra.mxu0 %v1164
    %1340 = vmatpush.bf16.msra.mxu0 %v1160
    %1341 = vmatpush.bf16.msra.mxu0 %v1156
    %1342 = vmatmul.bf16.gmra.mxu0 %v822
    %v1343 = vpop.f32.mrf.mxu0
    %v1344 = vadd.f32 %v532, %v1343
    %v1345 = vpop.f32.mrf.mxu0
    %1346 = vdwg.mxu0
    %1347 = vmatpush.bf16.msra.mxu0 %v1216
    %1348 = vmatpush.bf16.msra.mxu0 %v1212
    %1349 = vmatpush.bf16.msra.mxu0 %v1208
    %1350 = vmatpush.bf16.msra.mxu0 %v1204
    %1351 = vmatpush.bf16.msra.mxu0 %v1200
    %1352 = vmatpush.bf16.msra.mxu0 %v1196
    %1353 = vmatpush.bf16.msra.mxu0 %v1192
    %1354 = vmatpush.bf16.msra.mxu0 %v1188
    %1355 = vmatmul.bf16.gmra.mxu0 %v897
    %v1356 = vpop.f32.mrf.mxu0
    %v1357 = vadd.f32 %v1344, %v1356
    %v1358 = vpop.f32.mrf.mxu0
    %1359 = vdwg.mxu0
    %1360 = vmatpush.bf16.msra.mxu0 %v1185
    %1361 = vmatpush.bf16.msra.mxu0 %v1181
    %1362 = vmatpush.bf16.msra.mxu0 %v1177
    %1363 = vmatpush.bf16.msra.mxu0 %v1173
    %1364 = vmatpush.bf16.msra.mxu0 %v1169
    %1365 = vmatpush.bf16.msra.mxu0 %v1165
    %1366 = vmatpush.bf16.msra.mxu0 %v1161
    %1367 = vmatpush.bf16.msra.mxu0 %v1157
    %1368 = vmatmul.bf16.gmra.mxu0 %v822
    %v1369 = vpop.f32.mrf.mxu0
    %v1370 = vadd.f32 %v533, %v1369
    %v1371 = vpop.f32.mrf.mxu0
    %1372 = vdwg.mxu0
    %1373 = vmatpush.bf16.msra.mxu0 %v1217
    %1374 = vmatpush.bf16.msra.mxu0 %v1213
    %1375 = vmatpush.bf16.msra.mxu0 %v1209
    %1376 = vmatpush.bf16.msra.mxu0 %v1205
    %1377 = vmatpush.bf16.msra.mxu0 %v1201
    %1378 = vmatpush.bf16.msra.mxu0 %v1197
    %1379 = vmatpush.bf16.msra.mxu0 %v1193
    %1380 = vmatpush.bf16.msra.mxu0 %v1189
    %1381 = vmatmul.bf16.gmra.mxu0 %v897
    %v1382 = vpop.f32.mrf.mxu0
    %v1383 = vadd.f32 %v1370, %v1382
    %v1384 = vpop.f32.mrf.mxu0
    %1385 = vdwg.mxu0
    %v1386 = vmul.f32 %v1305, 0.5
    %v1387 = vtanh.pop %v1386
    %v1388 = vmul.f32 %v1387, 0.5
    %v1389 = vadd.f32 %v1388, 0.5
    %v1390 = vmul.f32 %v1331, 0.5
    %v1391 = vtanh.pop %v1390
    %v1392 = vmul.f32 %v1391, 0.5
    %v1393 = vadd.f32 %v1392, 0.5
    %v1394 = vtanh.pop %v1357
    %v1395 = vmul.f32 %v1383, 0.5
    %v1396 = vtanh.pop %v1395
    %v1397 = vmul.f32 %v1396, 0.5
    %v1398 = vadd.f32 %v1397, 0.5
    %v1399 = vmul.f32 %v1393, 0.0
    %v1400 = vmul.f32 %v1389, %v1394
    %v1401 = vadd.f32 %v1399, %v1400
    %v1402 = vtanh.pop %v1401
    %v1403 = vmul.f32 %v1398, %v1402
    %v1404 = vld [vmem:[#allocation2 + $0x40] sm:$0xff]
    %v1405 = vld [vmem:[#allocation2 + $0x48] sm:$0xff]
    %v1406 = vld [vmem:[#allocation2 + $0x50] sm:$0xff]
    %v1407 = vld [vmem:[#allocation2 + $0x58] sm:$0xff]
    %v1408 = vpack.c.bf16 %v896, %v896
    %1409 = vmatpush.bf16.msra.mxu0 %v708
    %1410 = vmatpush.bf16.msra.mxu0 %v704
    %1411 = vmatpush.bf16.msra.mxu0 %v700
    %1412 = vmatpush.bf16.msra.mxu0 %v696
    %1413 = vmatpush.bf16.msra.mxu0 %v692
    %1414 = vmatpush.bf16.msra.mxu0 %v688
    %1415 = vmatpush.bf16.msra.mxu0 %v684
    %1416 = vmatpush.bf16.msra.mxu0 %v680
    %1417 = vmatmul.bf16.gmra.mxu0 %v1408
    %v1418 = vpop.f32.mrf.mxu0
    %v1419 = vadd.f32 0.0, %v1418
    %v1420 = vpop.f32.mrf.mxu0
    %1421 = vdwg.mxu0
    %1422 = vmatpush.bf16.msra.mxu0 %v709
    %1423 = vmatpush.bf16.msra.mxu0 %v705
    %1424 = vmatpush.bf16.msra.mxu0 %v701
    %1425 = vmatpush.bf16.msra.mxu0 %v697
    %1426 = vmatpush.bf16.msra.mxu0 %v693
    %1427 = vmatpush.bf16.msra.mxu0 %v689
    %1428 = vmatpush.bf16.msra.mxu0 %v685
    %1429 = vmatpush.bf16.msra.mxu0 %v681
    %1430 = vmatmul.bf16.gmra.mxu0 %v1408
    %v1431 = vpop.f32.mrf.mxu0
    %v1432 = vadd.f32 0.0, %v1431
    %v1433 = vpop.f32.mrf.mxu0
    %1434 = vdwg.mxu0
    %1435 = vmatpush.bf16.msra.mxu0 %v710
    %1436 = vmatpush.bf16.msra.mxu0 %v706
    %1437 = vmatpush.bf16.msra.mxu0 %v702
    %1438 = vmatpush.bf16.msra.mxu0 %v698
    %1439 = vmatpush.bf16.msra.mxu0 %v694
    %1440 = vmatpush.bf16.msra.mxu0 %v690
    %1441 = vmatpush.bf16.msra.mxu0 %v686
    %1442 = vmatpush.bf16.msra.mxu0 %v682
    %1443 = vmatmul.bf16.gmra.mxu0 %v1408
    %v1444 = vpop.f32.mrf.mxu0
    %v1445 = vadd.f32 0.0, %v1444
    %v1446 = vpop.f32.mrf.mxu0
    %1447 = vdwg.mxu0
    %1448 = vmatpush.bf16.msra.mxu0 %v711
    %1449 = vmatpush.bf16.msra.mxu0 %v707
    %1450 = vmatpush.bf16.msra.mxu0 %v703
    %1451 = vmatpush.bf16.msra.mxu0 %v699
    %1452 = vmatpush.bf16.msra.mxu0 %v695
    %1453 = vmatpush.bf16.msra.mxu0 %v691
    %1454 = vmatpush.bf16.msra.mxu0 %v687
    %1455 = vmatpush.bf16.msra.mxu0 %v683
    %1456 = vmatmul.bf16.gmra.mxu0 %v1408
    %v1457 = vpop.f32.mrf.mxu0
    %v1458 = vadd.f32 0.0, %v1457
    %v1459 = vpop.f32.mrf.mxu0
    %1460 = vdwg.mxu0
    %v1461 = vadd.f32 %v1404, %v1419
    %v1462 = vadd.f32 %v1405, %v1432
    %v1463 = vadd.f32 %v1406, %v1445
    %v1464 = vadd.f32 %v1407, %v1458
    %v1465 = vmul.f32 %v1461, 0.5
    %v1466 = vtanh.pop %v1465
    %v1467 = vmul.f32 %v1466, 0.5
    %v1468 = vadd.f32 %v1467, 0.5
    %v1469 = vmul.f32 %v1462, 0.5
    %v1470 = vtanh.pop %v1469
    %v1471 = vmul.f32 %v1470, 0.5
    %v1472 = vadd.f32 %v1471, 0.5
    %v1473 = vtanh.pop %v1463
    %v1474 = vmul.f32 %v1464, 0.5
    %v1475 = vtanh.pop %v1474
    %v1476 = vmul.f32 %v1475, 0.5
    %v1477 = vadd.f32 %v1476, 0.5
    %v1478 = vmul.f32 %v1472, %v894
    %v1479 = vmul.f32 %v1468, %v1473
    %v1480 = vadd.f32 %v1478, %v1479
    %v1481 = vtanh.pop %v1480
    %v1482 = vmul.f32 %v1477, %v1481
    %v1483 = vpack.c.bf16 %v1403, %v1403
    %1484 = vmatpush.bf16.msra.mxu0 %v1182
    %1485 = vmatpush.bf16.msra.mxu0 %v1178
    %1486 = vmatpush.bf16.msra.mxu0 %v1174
    %1487 = vmatpush.bf16.msra.mxu0 %v1170
    %1488 = vmatpush.bf16.msra.mxu0 %v1166
    %1489 = vmatpush.bf16.msra.mxu0 %v1162
    %1490 = vmatpush.bf16.msra.mxu0 %v1158
    %1491 = vmatpush.bf16.msra.mxu0 %v1154
    %1492 = vmatmul.bf16.gmra.mxu0 %v1408
    %v1493 = vpop.f32.mrf.mxu0
    %v1494 = vadd.f32 %v530, %v1493
    %v1495 = vpop.f32.mrf.mxu0
    %1496 = vdwg.mxu0
    %1497 = vmatpush.bf16.msra.mxu0 %v1214
    %1498 = vmatpush.bf16.msra.mxu0 %v1210
    %1499 = vmatpush.bf16.msra.mxu0 %v1206
    %1500 = vmatpush.bf16.msra.mxu0 %v1202
    %1501 = vmatpush.bf16.msra.mxu0 %v1198
    %1502 = vmatpush.bf16.msra.mxu0 %v1194
    %1503 = vmatpush.bf16.msra.mxu0 %v1190
    %1504 = vmatpush.bf16.msra.mxu0 %v1186
    %1505 = vmatmul.bf16.gmra.mxu0 %v1483
    %v1506 = vpop.f32.mrf.mxu0
    %v1507 = vadd.f32 %v1494, %v1506
    %v1508 = vpop.f32.mrf.mxu0
    %1509 = vdwg.mxu0
    %1510 = vmatpush.bf16.msra.mxu0 %v1183
    %1511 = vmatpush.bf16.msra.mxu0 %v1179
    %1512 = vmatpush.bf16.msra.mxu0 %v1175
    %1513 = vmatpush.bf16.msra.mxu0 %v1171
    %1514 = vmatpush.bf16.msra.mxu0 %v1167
    %1515 = vmatpush.bf16.msra.mxu0 %v1163
    %1516 = vmatpush.bf16.msra.mxu0 %v1159
    %1517 = vmatpush.bf16.msra.mxu0 %v1155
    %1518 = vmatmul.bf16.gmra.mxu0 %v1408
    %v1519 = vpop.f32.mrf.mxu0
    %v1520 = vadd.f32 %v531, %v1519
    %v1521 = vpop.f32.mrf.mxu0
    %1522 = vdwg.mxu0
    %1523 = vmatpush.bf16.msra.mxu0 %v1215
    %1524 = vmatpush.bf16.msra.mxu0 %v1211
    %1525 = vmatpush.bf16.msra.mxu0 %v1207
    %1526 = vmatpush.bf16.msra.mxu0 %v1203
    %1527 = vmatpush.bf16.msra.mxu0 %v1199
    %1528 = vmatpush.bf16.msra.mxu0 %v1195
    %1529 = vmatpush.bf16.msra.mxu0 %v1191
    %1530 = vmatpush.bf16.msra.mxu0 %v1187
    %1531 = vmatmul.bf16.gmra.mxu0 %v1483
    %v1532 = vpop.f32.mrf.mxu0
    %v1533 = vadd.f32 %v1520, %v1532
    %v1534 = vpop.f32.mrf.mxu0
    %1535 = vdwg.mxu0
    %1536 = vmatpush.bf16.msra.mxu0 %v1184
    %1537 = vmatpush.bf16.msra.mxu0 %v1180
    %1538 = vmatpush.bf16.msra.mxu0 %v1176
    %1539 = vmatpush.bf16.msra.mxu0 %v1172
    %1540 = vmatpush.bf16.msra.mxu0 %v1168
    %1541 = vmatpush.bf16.msra.mxu0 %v1164
    %1542 = vmatpush.bf16.msra.mxu0 %v1160
    %1543 = vmatpush.bf16.msra.mxu0 %v1156
    %1544 = vmatmul.bf16.gmra.mxu0 %v1408
    %v1545 = vpop.f32.mrf.mxu0
    %v1546 = vadd.f32 %v532, %v1545
    %v1547 = vpop.f32.mrf.mxu0
    %1548 = vdwg.mxu0
    %1549 = vmatpush.bf16.msra.mxu0 %v1216
    %1550 = vmatpush.bf16.msra.mxu0 %v1212
    %1551 = vmatpush.bf16.msra.mxu0 %v1208
    %1552 = vmatpush.bf16.msra.mxu0 %v1204
    %1553 = vmatpush.bf16.msra.mxu0 %v1200
    %1554 = vmatpush.bf16.msra.mxu0 %v1196
    %1555 = vmatpush.bf16.msra.mxu0 %v1192
    %1556 = vmatpush.bf16.msra.mxu0 %v1188
    %1557 = vmatmul.bf16.gmra.mxu0 %v1483
    %v1558 = vpop.f32.mrf.mxu0
    %v1559 = vadd.f32 %v1546, %v1558
    %v1560 = vpop.f32.mrf.mxu0
    %1561 = vdwg.mxu0
    %1562 = vmatpush.bf16.msra.mxu0 %v1185
    %1563 = vmatpush.bf16.msra.mxu0 %v1181
    %1564 = vmatpush.bf16.msra.mxu0 %v1177
    %1565 = vmatpush.bf16.msra.mxu0 %v1173
    %1566 = vmatpush.bf16.msra.mxu0 %v1169
    %1567 = vmatpush.bf16.msra.mxu0 %v1165
    %1568 = vmatpush.bf16.msra.mxu0 %v1161
    %1569 = vmatpush.bf16.msra.mxu0 %v1157
    %1570 = vmatmul.bf16.gmra.mxu0 %v1408
    %v1571 = vpop.f32.mrf.mxu0
    %v1572 = vadd.f32 %v533, %v1571
    %v1573 = vpop.f32.mrf.mxu0
    %1574 = vdwg.mxu0
    %1575 = vmatpush.bf16.msra.mxu0 %v1217
    %1576 = vmatpush.bf16.msra.mxu0 %v1213
    %1577 = vmatpush.bf16.msra.mxu0 %v1209
    %1578 = vmatpush.bf16.msra.mxu0 %v1205
    %1579 = vmatpush.bf16.msra.mxu0 %v1201
    %1580 = vmatpush.bf16.msra.mxu0 %v1197
    %1581 = vmatpush.bf16.msra.mxu0 %v1193
    %1582 = vmatpush.bf16.msra.mxu0 %v1189
    %1583 = vmatmul.bf16.gmra.mxu0 %v1483
    %v1584 = vpop.f32.mrf.mxu0
    %v1585 = vadd.f32 %v1572, %v1584
    %v1586 = vpop.f32.mrf.mxu0
    %1587 = vdwg.mxu0
    %v1588 = vmul.f32 %v1507, 0.5
    %v1589 = vtanh.pop %v1588
    %v1590 = vmul.f32 %v1589, 0.5
    %v1591 = vadd.f32 %v1590, 0.5
    %v1592 = vmul.f32 %v1533, 0.5
    %v1593 = vtanh.pop %v1592
    %v1594 = vmul.f32 %v1593, 0.5
    %v1595 = vadd.f32 %v1594, 0.5
    %v1596 = vtanh.pop %v1559
    %v1597 = vmul.f32 %v1585, 0.5
    %v1598 = vtanh.pop %v1597
    %v1599 = vmul.f32 %v1598, 0.5
    %v1600 = vadd.f32 %v1599, 0.5
    %v1601 = vmul.f32 %v1595, %v1401
    %v1602 = vmul.f32 %v1591, %v1596
    %v1603 = vadd.f32 %v1601, %v1602
    %v1604 = vtanh.pop %v1603
    %v1605 = vmul.f32 %v1600, %v1604
    %v1606 = vld [vmem:[#allocation9] sm:$0xff]
    %v1607 = vld [vmem:[#allocation9 + $0x8] sm:$0xff]
    %v1608 = vld [vmem:[#allocation9 + $0x10] sm:$0xff]
    %v1609 = vld [vmem:[#allocation9 + $0x18] sm:$0xff]
    %v1610 = vld [vmem:[#allocation9 + $0x20] sm:$0xff]
    %v1611 = vld [vmem:[#allocation9 + $0x28] sm:$0xff]
    %v1612 = vld [vmem:[#allocation9 + $0x30] sm:$0xff]
    %v1613 = vld [vmem:[#allocation9 + $0x38] sm:$0xff]
    %v1614 = vld [vmem:[#allocation9 + $0x40] sm:$0xff]
    %v1615 = vld [vmem:[#allocation9 + $0x48] sm:$0xff]
    %v1616 = vld [vmem:[#allocation9 + $0x50] sm:$0xff]
    %v1617 = vld [vmem:[#allocation9 + $0x58] sm:$0xff]
    %v1618 = vld [vmem:[#allocation9 + $0x60] sm:$0xff]
    %v1619 = vld [vmem:[#allocation9 + $0x68] sm:$0xff]
    %v1620 = vld [vmem:[#allocation9 + $0x70] sm:$0xff]
    %v1621 = vld [vmem:[#allocation9 + $0x78] sm:$0xff]
    %v1622 = vld [vmem:[#allocation9 + $0x80] sm:$0xff]
    %v1623 = vld [vmem:[#allocation9 + $0x88] sm:$0xff]
    %v1624 = vld [vmem:[#allocation9 + $0x90] sm:$0xff]
    %v1625 = vld [vmem:[#allocation9 + $0x98] sm:$0xff]
    %v1626 = vld [vmem:[#allocation9 + $0xa0] sm:$0xff]
    %v1627 = vld [vmem:[#allocation9 + $0xa8] sm:$0xff]
    %v1628 = vld [vmem:[#allocation9 + $0xb0] sm:$0xff]
    %v1629 = vld [vmem:[#allocation9 + $0xb8] sm:$0xff]
    %v1630 = vld [vmem:[#allocation9 + $0xc0] sm:$0xff]
    %v1631 = vld [vmem:[#allocation9 + $0xc8] sm:$0xff]
    %v1632 = vld [vmem:[#allocation9 + $0xd0] sm:$0xff]
    %v1633 = vld [vmem:[#allocation9 + $0xd8] sm:$0xff]
    %v1634 = vld [vmem:[#allocation9 + $0xe0] sm:$0xff]
    %v1635 = vld [vmem:[#allocation9 + $0xe8] sm:$0xff]
    %v1636 = vld [vmem:[#allocation9 + $0xf0] sm:$0xff]
    %v1637 = vld [vmem:[#allocation9 + $0xf8] sm:$0xff]
    %v1638 = vld [vmem:[#allocation9 + $0x100] sm:$0xff]
    %v1639 = vld [vmem:[#allocation9 + $0x108] sm:$0xff]
    %v1640 = vld [vmem:[#allocation9 + $0x110] sm:$0xff]
    %v1641 = vld [vmem:[#allocation9 + $0x118] sm:$0xff]
    %v1642 = vld [vmem:[#allocation9 + $0x120] sm:$0xff]
    %v1643 = vld [vmem:[#allocation9 + $0x128] sm:$0xff]
    %v1644 = vld [vmem:[#allocation9 + $0x130] sm:$0xff]
    %v1645 = vld [vmem:[#allocation9 + $0x138] sm:$0xff]
    %v1646 = vld [vmem:[#allocation9 + $0x140] sm:$0xff]
    %v1647 = vld [vmem:[#allocation9 + $0x148] sm:$0xff]
    %v1648 = vld [vmem:[#allocation9 + $0x150] sm:$0xff]
    %v1649 = vld [vmem:[#allocation9 + $0x158] sm:$0xff]
    %v1650 = vld [vmem:[#allocation9 + $0x160] sm:$0xff]
    %v1651 = vld [vmem:[#allocation9 + $0x168] sm:$0xff]
    %v1652 = vld [vmem:[#allocation9 + $0x170] sm:$0xff]
    %v1653 = vld [vmem:[#allocation9 + $0x178] sm:$0xff]
    %v1654 = vld [vmem:[#allocation9 + $0x180] sm:$0xff]
    %v1655 = vld [vmem:[#allocation9 + $0x188] sm:$0xff]
    %v1656 = vld [vmem:[#allocation9 + $0x190] sm:$0xff]
    %v1657 = vld [vmem:[#allocation9 + $0x198] sm:$0xff]
    %v1658 = vld [vmem:[#allocation9 + $0x1a0] sm:$0xff]
    %v1659 = vld [vmem:[#allocation9 + $0x1a8] sm:$0xff]
    %v1660 = vld [vmem:[#allocation9 + $0x1b0] sm:$0xff]
    %v1661 = vld [vmem:[#allocation9 + $0x1b8] sm:$0xff]
    %v1662 = vld [vmem:[#allocation9 + $0x1c0] sm:$0xff]
    %v1663 = vld [vmem:[#allocation9 + $0x1c8] sm:$0xff]
    %v1664 = vld [vmem:[#allocation9 + $0x1d0] sm:$0xff]
    %v1665 = vld [vmem:[#allocation9 + $0x1d8] sm:$0xff]
    %v1666 = vld [vmem:[#allocation9 + $0x1e0] sm:$0xff]
    %v1667 = vld [vmem:[#allocation9 + $0x1e8] sm:$0xff]
    %v1668 = vld [vmem:[#allocation9 + $0x1f0] sm:$0xff]
    %v1669 = vld [vmem:[#allocation9 + $0x1f8] sm:$0xff]
    %v1734 = vunpack.c.l.b16 %v1606
    %v1735 = vunpack.c.h.b16 %v1606
    %v1736 = vunpack.c.l.b16 %v1607
    %v1737 = vunpack.c.h.b16 %v1607
    %v1738 = vunpack.c.l.b16 %v1608
    %v1739 = vunpack.c.h.b16 %v1608
    %v1740 = vunpack.c.l.b16 %v1609
    %v1741 = vunpack.c.h.b16 %v1609
    %v1742 = vunpack.c.l.b16 %v1610
    %v1743 = vunpack.c.h.b16 %v1610
    %v1744 = vunpack.c.l.b16 %v1611
    %v1745 = vunpack.c.h.b16 %v1611
    %v1746 = vunpack.c.l.b16 %v1612
    %v1747 = vunpack.c.h.b16 %v1612
    %v1748 = vunpack.c.l.b16 %v1613
    %v1749 = vunpack.c.h.b16 %v1613
    %v1750 = vunpack.c.l.b16 %v1614
    %v1751 = vunpack.c.h.b16 %v1614
    %v1752 = vunpack.c.l.b16 %v1615
    %v1753 = vunpack.c.h.b16 %v1615
    %v1754 = vunpack.c.l.b16 %v1616
    %v1755 = vunpack.c.h.b16 %v1616
    %v1756 = vunpack.c.l.b16 %v1617
    %v1757 = vunpack.c.h.b16 %v1617
    %v1758 = vunpack.c.l.b16 %v1618
    %v1759 = vunpack.c.h.b16 %v1618
    %v1760 = vunpack.c.l.b16 %v1619
    %v1761 = vunpack.c.h.b16 %v1619
    %v1762 = vunpack.c.l.b16 %v1620
    %v1763 = vunpack.c.h.b16 %v1620
    %v1764 = vunpack.c.l.b16 %v1621
    %v1765 = vunpack.c.h.b16 %v1621
    %v1766 = vunpack.c.l.b16 %v1622
    %v1767 = vunpack.c.h.b16 %v1622
    %v1768 = vunpack.c.l.b16 %v1623
    %v1769 = vunpack.c.h.b16 %v1623
    %v1770 = vunpack.c.l.b16 %v1624
    %v1771 = vunpack.c.h.b16 %v1624
    %v1772 = vunpack.c.l.b16 %v1625
    %v1773 = vunpack.c.h.b16 %v1625
    %v1774 = vunpack.c.l.b16 %v1626
    %v1775 = vunpack.c.h.b16 %v1626
    %v1776 = vunpack.c.l.b16 %v1627
    %v1777 = vunpack.c.h.b16 %v1627
    %v1778 = vunpack.c.l.b16 %v1628
    %v1779 = vunpack.c.h.b16 %v1628
    %v1780 = vunpack.c.l.b16 %v1629
    %v1781 = vunpack.c.h.b16 %v1629
    %v1782 = vunpack.c.l.b16 %v1630
    %v1783 = vunpack.c.h.b16 %v1630
    %v1784 = vunpack.c.l.b16 %v1631
    %v1785 = vunpack.c.h.b16 %v1631
    %v1786 = vunpack.c.l.b16 %v1632
    %v1787 = vunpack.c.h.b16 %v1632
    %v1788 = vunpack.c.l.b16 %v1633
    %v1789 = vunpack.c.h.b16 %v1633
    %v1790 = vunpack.c.l.b16 %v1634
    %v1791 = vunpack.c.h.b16 %v1634
    %v1792 = vunpack.c.l.b16 %v1635
    %v1793 = vunpack.c.h.b16 %v1635
    %v1794 = vunpack.c.l.b16 %v1636
    %v1795 = vunpack.c.h.b16 %v1636
    %v1796 = vunpack.c.l.b16 %v1637
    %v1797 = vunpack.c.h.b16 %v1637
    %v1798 = vunpack.c.l.b16 %v1638
    %v1799 = vunpack.c.h.b16 %v1638
    %v1800 = vunpack.c.l.b16 %v1639
    %v1801 = vunpack.c.h.b16 %v1639
    %v1802 = vunpack.c.l.b16 %v1640
    %v1803 = vunpack.c.h.b16 %v1640
    %v1804 = vunpack.c.l.b16 %v1641
    %v1805 = vunpack.c.h.b16 %v1641
    %v1806 = vunpack.c.l.b16 %v1642
    %v1807 = vunpack.c.h.b16 %v1642
    %v1808 = vunpack.c.l.b16 %v1643
    %v1809 = vunpack.c.h.b16 %v1643
    %v1810 = vunpack.c.l.b16 %v1644
    %v1811 = vunpack.c.h.b16 %v1644
    %v1812 = vunpack.c.l.b16 %v1645
    %v1813 = vunpack.c.h.b16 %v1645
    %v1814 = vunpack.c.l.b16 %v1646
    %v1815 = vunpack.c.h.b16 %v1646
    %v1816 = vunpack.c.l.b16 %v1647
    %v1817 = vunpack.c.h.b16 %v1647
    %v1818 = vunpack.c.l.b16 %v1648
    %v1819 = vunpack.c.h.b16 %v1648
    %v1820 = vunpack.c.l.b16 %v1649
    %v1821 = vunpack.c.h.b16 %v1649
    %v1822 = vunpack.c.l.b16 %v1650
    %v1823 = vunpack.c.h.b16 %v1650
    %v1824 = vunpack.c.l.b16 %v1651
    %v1825 = vunpack.c.h.b16 %v1651
    %v1826 = vunpack.c.l.b16 %v1652
    %v1827 = vunpack.c.h.b16 %v1652
    %v1828 = vunpack.c.l.b16 %v1653
    %v1829 = vunpack.c.h.b16 %v1653
    %v1830 = vunpack.c.l.b16 %v1654
    %v1831 = vunpack.c.h.b16 %v1654
    %v1832 = vunpack.c.l.b16 %v1655
    %v1833 = vunpack.c.h.b16 %v1655
    %v1834 = vunpack.c.l.b16 %v1656
    %v1835 = vunpack.c.h.b16 %v1656
    %v1836 = vunpack.c.l.b16 %v1657
    %v1837 = vunpack.c.h.b16 %v1657
    %v1838 = vunpack.c.l.b16 %v1658
    %v1839 = vunpack.c.h.b16 %v1658
    %v1840 = vunpack.c.l.b16 %v1659
    %v1841 = vunpack.c.h.b16 %v1659
    %v1842 = vunpack.c.l.b16 %v1660
    %v1843 = vunpack.c.h.b16 %v1660
    %v1844 = vunpack.c.l.b16 %v1661
    %v1845 = vunpack.c.h.b16 %v1661
    %v1846 = vunpack.c.l.b16 %v1662
    %v1847 = vunpack.c.h.b16 %v1662
    %v1848 = vunpack.c.l.b16 %v1663
    %v1849 = vunpack.c.h.b16 %v1663
    %v1850 = vunpack.c.l.b16 %v1664
    %v1851 = vunpack.c.h.b16 %v1664
    %v1852 = vunpack.c.l.b16 %v1665
    %v1853 = vunpack.c.h.b16 %v1665
    %v1854 = vunpack.c.l.b16 %v1666
    %v1855 = vunpack.c.h.b16 %v1666
    %v1856 = vunpack.c.l.b16 %v1667
    %v1857 = vunpack.c.h.b16 %v1667
    %v1858 = vunpack.c.l.b16 %v1668
    %v1859 = vunpack.c.h.b16 %v1668
    %v1860 = vunpack.c.l.b16 %v1669
    %v1861 = vunpack.c.h.b16 %v1669
    %v1862 = vpack.c.b16 %v1738, %v1734
    %v1863 = vpack.c.b16 %v1739, %v1735
    %v1864 = vpack.c.b16 %v1740, %v1736
    %v1865 = vpack.c.b16 %v1741, %v1737
    %v1866 = vpack.c.b16 %v1746, %v1742
    %v1867 = vpack.c.b16 %v1747, %v1743
    %v1868 = vpack.c.b16 %v1748, %v1744
    %v1869 = vpack.c.b16 %v1749, %v1745
    %v1870 = vpack.c.b16 %v1754, %v1750
    %v1871 = vpack.c.b16 %v1755, %v1751
    %v1872 = vpack.c.b16 %v1756, %v1752
    %v1873 = vpack.c.b16 %v1757, %v1753
    %v1874 = vpack.c.b16 %v1762, %v1758
    %v1875 = vpack.c.b16 %v1763, %v1759
    %v1876 = vpack.c.b16 %v1764, %v1760
    %v1877 = vpack.c.b16 %v1765, %v1761
    %v1878 = vpack.c.b16 %v1770, %v1766
    %v1879 = vpack.c.b16 %v1771, %v1767
    %v1880 = vpack.c.b16 %v1772, %v1768
    %v1881 = vpack.c.b16 %v1773, %v1769
    %v1882 = vpack.c.b16 %v1778, %v1774
    %v1883 = vpack.c.b16 %v1779, %v1775
    %v1884 = vpack.c.b16 %v1780, %v1776
    %v1885 = vpack.c.b16 %v1781, %v1777
    %v1886 = vpack.c.b16 %v1786, %v1782
    %v1887 = vpack.c.b16 %v1787, %v1783
    %v1888 = vpack.c.b16 %v1788, %v1784
    %v1889 = vpack.c.b16 %v1789, %v1785
    %v1890 = vpack.c.b16 %v1794, %v1790
    %v1891 = vpack.c.b16 %v1795, %v1791
    %v1892 = vpack.c.b16 %v1796, %v1792
    %v1893 = vpack.c.b16 %v1797, %v1793
    %v1894 = vpack.c.b16 %v1802, %v1798
    %v1895 = vpack.c.b16 %v1803, %v1799
    %v1896 = vpack.c.b16 %v1804, %v1800
    %v1897 = vpack.c.b16 %v1805, %v1801
    %v1898 = vpack.c.b16 %v1810, %v1806
    %v1899 = vpack.c.b16 %v1811, %v1807
    %v1900 = vpack.c.b16 %v1812, %v1808
    %v1901 = vpack.c.b16 %v1813, %v1809
    %v1902 = vpack.c.b16 %v1818, %v1814
    %v1903 = vpack.c.b16 %v1819, %v1815
    %v1904 = vpack.c.b16 %v1820, %v1816
    %v1905 = vpack.c.b16 %v1821, %v1817
    %v1906 = vpack.c.b16 %v1826, %v1822
    %v1907 = vpack.c.b16 %v1827, %v1823
    %v1908 = vpack.c.b16 %v1828, %v1824
    %v1909 = vpack.c.b16 %v1829, %v1825
    %v1910 = vpack.c.b16 %v1834, %v1830
    %v1911 = vpack.c.b16 %v1835, %v1831
    %v1912 = vpack.c.b16 %v1836, %v1832
    %v1913 = vpack.c.b16 %v1837, %v1833
    %v1914 = vpack.c.b16 %v1842, %v1838
    %v1915 = vpack.c.b16 %v1843, %v1839
    %v1916 = vpack.c.b16 %v1844, %v1840
    %v1917 = vpack.c.b16 %v1845, %v1841
    %v1918 = vpack.c.b16 %v1850, %v1846
    %v1919 = vpack.c.b16 %v1851, %v1847
    %v1920 = vpack.c.b16 %v1852, %v1848
    %v1921 = vpack.c.b16 %v1853, %v1849
    %v1922 = vpack.c.b16 %v1858, %v1854
    %v1923 = vpack.c.b16 %v1859, %v1855
    %v1924 = vpack.c.b16 %v1860, %v1856
    %v1925 = vpack.c.b16 %v1861, %v1857
    %1990 = vmatpush.bf16.msra.mxu0 %v1890
    %1991 = vmatpush.bf16.msra.mxu0 %v1886
    %1992 = vmatpush.bf16.msra.mxu0 %v1882
    %1993 = vmatpush.bf16.msra.mxu0 %v1878
    %1994 = vmatpush.bf16.msra.mxu0 %v1874
    %1995 = vmatpush.bf16.msra.mxu0 %v1870
    %1996 = vmatpush.bf16.msra.mxu0 %v1866
    %1997 = vmatpush.bf16.msra.mxu0 %v1862
    %1998 = vmatmul.bf16.gmra.mxu0 %v1483
    %v1999 = vpop.f32.mrf.mxu0
    %v2000 = vadd.f32 %v540, %v1999
    %v2001 = vpop.f32.mrf.mxu0
    %2002 = vdwg.mxu0
    %2003 = vmatpush.bf16.msra.mxu0 %v1922
    %2004 = vmatpush.bf16.msra.mxu0 %v1918
    %2005 = vmatpush.bf16.msra.mxu0 %v1914
    %2006 = vmatpush.bf16.msra.mxu0 %v1910
    %2007 = vmatpush.bf16.msra.mxu0 %v1906
    %2008 = vmatpush.bf16.msra.mxu0 %v1902
    %2009 = vmatpush.bf16.msra.mxu0 %v1898
    %2010 = vmatpush.bf16.msra.mxu0 %v1894
    %2011 = vmatmul.bf16.gmra.mxu0 %v897
    %v2012 = vpop.f32.mrf.mxu0
    %v2013 = vadd.f32 %v2000, %v2012
    %v2014 = vpop.f32.mrf.mxu0
    %2015 = vdwg.mxu0
    %2016 = vmatpush.bf16.msra.mxu0 %v1891
    %2017 = vmatpush.bf16.msra.mxu0 %v1887
    %2018 = vmatpush.bf16.msra.mxu0 %v1883
    %2019 = vmatpush.bf16.msra.mxu0 %v1879
    %2020 = vmatpush.bf16.msra.mxu0 %v1875
    %2021 = vmatpush.bf16.msra.mxu0 %v1871
    %2022 = vmatpush.bf16.msra.mxu0 %v1867
    %2023 = vmatpush.bf16.msra.mxu0 %v1863
    %2024 = vmatmul.bf16.gmra.mxu0 %v1483
    %v2025 = vpop.f32.mrf.mxu0
    %v2026 = vadd.f32 %v541, %v2025
    %v2027 = vpop.f32.mrf.mxu0
    %2028 = vdwg.mxu0
    %2029 = vmatpush.bf16.msra.mxu0 %v1923
    %2030 = vmatpush.bf16.msra.mxu0 %v1919
    %2031 = vmatpush.bf16.msra.mxu0 %v1915
    %2032 = vmatpush.bf16.msra.mxu0 %v1911
    %2033 = vmatpush.bf16.msra.mxu0 %v1907
    %2034 = vmatpush.bf16.msra.mxu0 %v1903
    %2035 = vmatpush.bf16.msra.mxu0 %v1899
    %2036 = vmatpush.bf16.msra.mxu0 %v1895
    %2037 = vmatmul.bf16.gmra.mxu0 %v897
    %v2038 = vpop.f32.mrf.mxu0
    %v2039 = vadd.f32 %v2026, %v2038
    %v2040 = vpop.f32.mrf.mxu0
    %2041 = vdwg.mxu0
    %2042 = vmatpush.bf16.msra.mxu0 %v1892
    %2043 = vmatpush.bf16.msra.mxu0 %v1888
    %2044 = vmatpush.bf16.msra.mxu0 %v1884
    %2045 = vmatpush.bf16.msra.mxu0 %v1880
    %2046 = vmatpush.bf16.msra.mxu0 %v1876
    %2047 = vmatpush.bf16.msra.mxu0 %v1872
    %2048 = vmatpush.bf16.msra.mxu0 %v1868
    %2049 = vmatpush.bf16.msra.mxu0 %v1864
    %2050 = vmatmul.bf16.gmra.mxu0 %v1483
    %v2051 = vpop.f32.mrf.mxu0
    %v2052 = vadd.f32 %v542, %v2051
    %v2053 = vpop.f32.mrf.mxu0
    %2054 = vdwg.mxu0
    %2055 = vmatpush.bf16.msra.mxu0 %v1924
    %2056 = vmatpush.bf16.msra.mxu0 %v1920
    %2057 = vmatpush.bf16.msra.mxu0 %v1916
    %2058 = vmatpush.bf16.msra.mxu0 %v1912
    %2059 = vmatpush.bf16.msra.mxu0 %v1908
    %2060 = vmatpush.bf16.msra.mxu0 %v1904
    %2061 = vmatpush.bf16.msra.mxu0 %v1900
    %2062 = vmatpush.bf16.msra.mxu0 %v1896
    %2063 = vmatmul.bf16.gmra.mxu0 %v897
    %v2064 = vpop.f32.mrf.mxu0
    %v2065 = vadd.f32 %v2052, %v2064
    %v2066 = vpop.f32.mrf.mxu0
    %2067 = vdwg.mxu0
    %2068 = vmatpush.bf16.msra.mxu0 %v1893
    %2069 = vmatpush.bf16.msra.mxu0 %v1889
    %2070 = vmatpush.bf16.msra.mxu0 %v1885
    %2071 = vmatpush.bf16.msra.mxu0 %v1881
    %2072 = vmatpush.bf16.msra.mxu0 %v1877
    %2073 = vmatpush.bf16.msra.mxu0 %v1873
    %2074 = vmatpush.bf16.msra.mxu0 %v1869
    %2075 = vmatpush.bf16.msra.mxu0 %v1865
    %2076 = vmatmul.bf16.gmra.mxu0 %v1483
    %v2077 = vpop.f32.mrf.mxu0
    %v2078 = vadd.f32 %v543, %v2077
    %v2079 = vpop.f32.mrf.mxu0
    %2080 = vdwg.mxu0
    %2081 = vmatpush.bf16.msra.mxu0 %v1925
    %2082 = vmatpush.bf16.msra.mxu0 %v1921
    %2083 = vmatpush.bf16.msra.mxu0 %v1917
    %2084 = vmatpush.bf16.msra.mxu0 %v1913
    %2085 = vmatpush.bf16.msra.mxu0 %v1909
    %2086 = vmatpush.bf16.msra.mxu0 %v1905
    %2087 = vmatpush.bf16.msra.mxu0 %v1901
    %2088 = vmatpush.bf16.msra.mxu0 %v1897
    %2089 = vmatmul.bf16.gmra.mxu0 %v897
    %v2090 = vpop.f32.mrf.mxu0
    %v2091 = vadd.f32 %v2078, %v2090
    %v2092 = vpop.f32.mrf.mxu0
    %2093 = vdwg.mxu0
    %v2094 = vmul.f32 %v2013, 0.5
    %v2095 = vtanh.pop %v2094
    %v2096 = vmul.f32 %v2095, 0.5
    %v2097 = vadd.f32 %v2096, 0.5
    %v2098 = vmul.f32 %v2039, 0.5
    %v2099 = vtanh.pop %v2098
    %v2100 = vmul.f32 %v2099, 0.5
    %v2101 = vadd.f32 %v2100, 0.5
    %v2102 = vtanh.pop %v2065
    %v2103 = vmul.f32 %v2091, 0.5
    %v2104 = vtanh.pop %v2103
    %v2105 = vmul.f32 %v2104, 0.5
    %v2106 = vadd.f32 %v2105, 0.5
    %v2107 = vmul.f32 %v2101, 0.0
    %v2108 = vmul.f32 %v2097, %v2102
    %v2109 = vadd.f32 %v2107, %v2108
    %v2110 = vtanh.pop %v2109
    %v2111 = vmul.f32 %v2106, %v2110
    %v2112 = vld [vmem:[#allocation2 + $0x60] sm:$0xff]
    %v2113 = vld [vmem:[#allocation2 + $0x68] sm:$0xff]
    %v2114 = vld [vmem:[#allocation2 + $0x70] sm:$0xff]
    %v2115 = vld [vmem:[#allocation2 + $0x78] sm:$0xff]
    %v2116 = vpack.c.bf16 %v1482, %v1482
    %2117 = vmatpush.bf16.msra.mxu0 %v708
    %2118 = vmatpush.bf16.msra.mxu0 %v704
    %2119 = vmatpush.bf16.msra.mxu0 %v700
    %2120 = vmatpush.bf16.msra.mxu0 %v696
    %2121 = vmatpush.bf16.msra.mxu0 %v692
    %2122 = vmatpush.bf16.msra.mxu0 %v688
    %2123 = vmatpush.bf16.msra.mxu0 %v684
    %2124 = vmatpush.bf16.msra.mxu0 %v680
    %2125 = vmatmul.bf16.gmra.mxu0 %v2116
    %v2126 = vpop.f32.mrf.mxu0
    %v2127 = vadd.f32 0.0, %v2126
    %v2128 = vpop.f32.mrf.mxu0
    %2129 = vdwg.mxu0
    %2130 = vmatpush.bf16.msra.mxu0 %v709
    %2131 = vmatpush.bf16.msra.mxu0 %v705
    %2132 = vmatpush.bf16.msra.mxu0 %v701
    %2133 = vmatpush.bf16.msra.mxu0 %v697
    %2134 = vmatpush.bf16.msra.mxu0 %v693
    %2135 = vmatpush.bf16.msra.mxu0 %v689
    %2136 = vmatpush.bf16.msra.mxu0 %v685
    %2137 = vmatpush.bf16.msra.mxu0 %v681
    %2138 = vmatmul.bf16.gmra.mxu0 %v2116
    %v2139 = vpop.f32.mrf.mxu0
    %v2140 = vadd.f32 0.0, %v2139
    %v2141 = vpop.f32.mrf.mxu0
    %2142 = vdwg.mxu0
    %2143 = vmatpush.bf16.msra.mxu0 %v710
    %2144 = vmatpush.bf16.msra.mxu0 %v706
    %2145 = vmatpush.bf16.msra.mxu0 %v702
    %2146 = vmatpush.bf16.msra.mxu0 %v698
    %2147 = vmatpush.bf16.msra.mxu0 %v694
    %2148 = vmatpush.bf16.msra.mxu0 %v690
    %2149 = vmatpush.bf16.msra.mxu0 %v686
    %2150 = vmatpush.bf16.msra.mxu0 %v682
    %2151 = vmatmul.bf16.gmra.mxu0 %v2116
    %v2152 = vpop.f32.mrf.mxu0
    %v2153 = vadd.f32 0.0, %v2152
    %v2154 = vpop.f32.mrf.mxu0
    %2155 = vdwg.mxu0
    %2156 = vmatpush.bf16.msra.mxu0 %v711
    %2157 = vmatpush.bf16.msra.mxu0 %v707
    %2158 = vmatpush.bf16.msra.mxu0 %v703
    %2159 = vmatpush.bf16.msra.mxu0 %v699
    %2160 = vmatpush.bf16.msra.mxu0 %v695
    %2161 = vmatpush.bf16.msra.mxu0 %v691
    %2162 = vmatpush.bf16.msra.mxu0 %v687
    %2163 = vmatpush.bf16.msra.mxu0 %v683
    %2164 = vmatmul.bf16.gmra.mxu0 %v2116
    %v2165 = vpop.f32.mrf.mxu0
    %v2166 = vadd.f32 0.0, %v2165
    %v2167 = vpop.f32.mrf.mxu0
    %2168 = vdwg.mxu0
    %v2169 = vadd.f32 %v2112, %v2127
    %v2170 = vadd.f32 %v2113, %v2140
    %v2171 = vadd.f32 %v2114, %v2153
    %v2172 = vadd.f32 %v2115, %v2166
    %v2173 = vmul.f32 %v2169, 0.5
    %v2174 = vtanh.pop %v2173
    %v2175 = vmul.f32 %v2174, 0.5
    %v2176 = vadd.f32 %v2175, 0.5
    %v2177 = vmul.f32 %v2170, 0.5
    %v2178 = vtanh.pop %v2177
    %v2179 = vmul.f32 %v2178, 0.5
    %v2180 = vadd.f32 %v2179, 0.5
    %v2181 = vtanh.pop %v2171
    %v2182 = vmul.f32 %v2172, 0.5
    %v2183 = vtanh.pop %v2182
    %v2184 = vmul.f32 %v2183, 0.5
    %v2185 = vadd.f32 %v2184, 0.5
    %v2186 = vmul.f32 %v2180, %v1480
    %v2187 = vmul.f32 %v2176, %v2181
    %v2188 = vadd.f32 %v2186, %v2187
    %v2189 = vtanh.pop %v2188
    %v2190 = vmul.f32 %v2185, %v2189
    %v2191 = vpack.c.bf16 %v1605, %v1605
    %2192 = vmatpush.bf16.msra.mxu0 %v1182
    %2193 = vmatpush.bf16.msra.mxu0 %v1178
    %2194 = vmatpush.bf16.msra.mxu0 %v1174
    %2195 = vmatpush.bf16.msra.mxu0 %v1170
    %2196 = vmatpush.bf16.msra.mxu0 %v1166
    %2197 = vmatpush.bf16.msra.mxu0 %v1162
    %2198 = vmatpush.bf16.msra.mxu0 %v1158
    %2199 = vmatpush.bf16.msra.mxu0 %v1154
    %2200 = vmatmul.bf16.gmra.mxu0 %v2116
    %v2201 = vpop.f32.mrf.mxu0
    %v2202 = vadd.f32 %v530, %v2201
    %v2203 = vpop.f32.mrf.mxu0
    %2204 = vdwg.mxu0
    %2205 = vmatpush.bf16.msra.mxu0 %v1214
    %2206 = vmatpush.bf16.msra.mxu0 %v1210
    %2207 = vmatpush.bf16.msra.mxu0 %v1206
    %2208 = vmatpush.bf16.msra.mxu0 %v1202
    %2209 = vmatpush.bf16.msra.mxu0 %v1198
    %2210 = vmatpush.bf16.msra.mxu0 %v1194
    %2211 = vmatpush.bf16.msra.mxu0 %v1190
    %2212 = vmatpush.bf16.msra.mxu0 %v1186
    %2213 = vmatmul.bf16.gmra.mxu0 %v2191
    %v2214 = vpop.f32.mrf.mxu0
    %v2215 = vadd.f32 %v2202, %v2214
    %v2216 = vpop.f32.mrf.mxu0
    %2217 = vdwg.mxu0
    %2218 = vmatpush.bf16.msra.mxu0 %v1183
    %2219 = vmatpush.bf16.msra.mxu0 %v1179
    %2220 = vmatpush.bf16.msra.mxu0 %v1175
    %2221 = vmatpush.bf16.msra.mxu0 %v1171
    %2222 = vmatpush.bf16.msra.mxu0 %v1167
    %2223 = vmatpush.bf16.msra.mxu0 %v1163
    %2224 = vmatpush.bf16.msra.mxu0 %v1159
    %2225 = vmatpush.bf16.msra.mxu0 %v1155
    %2226 = vmatmul.bf16.gmra.mxu0 %v2116
    %v2227 = vpop.f32.mrf.mxu0
    %v2228 = vadd.f32 %v531, %v2227
    %v2229 = vpop.f32.mrf.mxu0
    %2230 = vdwg.mxu0
    %2231 = vmatpush.bf16.msra.mxu0 %v1215
    %2232 = vmatpush.bf16.msra.mxu0 %v1211
    %2233 = vmatpush.bf16.msra.mxu0 %v1207
    %2234 = vmatpush.bf16.msra.mxu0 %v1203
    %2235 = vmatpush.bf16.msra.mxu0 %v1199
    %2236 = vmatpush.bf16.msra.mxu0 %v1195
    %2237 = vmatpush.bf16.msra.mxu0 %v1191
    %2238 = vmatpush.bf16.msra.mxu0 %v1187
    %2239 = vmatmul.bf16.gmra.mxu0 %v2191
    %v2240 = vpop.f32.mrf.mxu0
    %v2241 = vadd.f32 %v2228, %v2240
    %v2242 = vpop.f32.mrf.mxu0
    %2243 = vdwg.mxu0
    %2244 = vmatpush.bf16.msra.mxu0 %v1184
    %2245 = vmatpush.bf16.msra.mxu0 %v1180
    %2246 = vmatpush.bf16.msra.mxu0 %v1176
    %2247 = vmatpush.bf16.msra.mxu0 %v1172
    %2248 = vmatpush.bf16.msra.mxu0 %v1168
    %2249 = vmatpush.bf16.msra.mxu0 %v1164
    %2250 = vmatpush.bf16.msra.mxu0 %v1160
    %2251 = vmatpush.bf16.msra.mxu0 %v1156
    %2252 = vmatmul.bf16.gmra.mxu0 %v2116
    %v2253 = vpop.f32.mrf.mxu0
    %v2254 = vadd.f32 %v532, %v2253
    %v2255 = vpop.f32.mrf.mxu0
    %2256 = vdwg.mxu0
    %2257 = vmatpush.bf16.msra.mxu0 %v1216
    %2258 = vmatpush.bf16.msra.mxu0 %v1212
    %2259 = vmatpush.bf16.msra.mxu0 %v1208
    %2260 = vmatpush.bf16.msra.mxu0 %v1204
    %2261 = vmatpush.bf16.msra.mxu0 %v1200
    %2262 = vmatpush.bf16.msra.mxu0 %v1196
    %2263 = vmatpush.bf16.msra.mxu0 %v1192
    %2264 = vmatpush.bf16.msra.mxu0 %v1188
    %2265 = vmatmul.bf16.gmra.mxu0 %v2191
    %v2266 = vpop.f32.mrf.mxu0
    %v2267 = vadd.f32 %v2254, %v2266
    %v2268 = vpop.f32.mrf.mxu0
    %2269 = vdwg.mxu0
    %2270 = vmatpush.bf16.msra.mxu0 %v1185
    %2271 = vmatpush.bf16.msra.mxu0 %v1181
    %2272 = vmatpush.bf16.msra.mxu0 %v1177
    %2273 = vmatpush.bf16.msra.mxu0 %v1173
    %2274 = vmatpush.bf16.msra.mxu0 %v1169
    %2275 = vmatpush.bf16.msra.mxu0 %v1165
    %2276 = vmatpush.bf16.msra.mxu0 %v1161
    %2277 = vmatpush.bf16.msra.mxu0 %v1157
    %2278 = vmatmul.bf16.gmra.mxu0 %v2116
    %v2279 = vpop.f32.mrf.mxu0
    %v2280 = vadd.f32 %v533, %v2279
    %v2281 = vpop.f32.mrf.mxu0
    %2282 = vdwg.mxu0
    %2283 = vmatpush.bf16.msra.mxu0 %v1217
    %2284 = vmatpush.bf16.msra.mxu0 %v1213
    %2285 = vmatpush.bf16.msra.mxu0 %v1209
    %2286 = vmatpush.bf16.msra.mxu0 %v1205
    %2287 = vmatpush.bf16.msra.mxu0 %v1201
    %2288 = vmatpush.bf16.msra.mxu0 %v1197
    %2289 = vmatpush.bf16.msra.mxu0 %v1193
    %2290 = vmatpush.bf16.msra.mxu0 %v1189
    %2291 = vmatmul.bf16.gmra.mxu0 %v2191
    %v2292 = vpop.f32.mrf.mxu0
    %v2293 = vadd.f32 %v2280, %v2292
    %v2294 = vpop.f32.mrf.mxu0
    %2295 = vdwg.mxu0
    %v2296 = vmul.f32 %v2215, 0.5
    %v2297 = vtanh.pop %v2296
    %v2298 = vmul.f32 %v2297, 0.5
    %v2299 = vadd.f32 %v2298, 0.5
    %v2300 = vmul.f32 %v2241, 0.5
    %v2301 = vtanh.pop %v2300
    %v2302 = vmul.f32 %v2301, 0.5
    %v2303 = vadd.f32 %v2302, 0.5
    %v2304 = vtanh.pop %v2267
    %v2305 = vmul.f32 %v2293, 0.5
    %v2306 = vtanh.pop %v2305
    %v2307 = vmul.f32 %v2306, 0.5
    %v2308 = vadd.f32 %v2307, 0.5
    %v2309 = vmul.f32 %v2303, %v1603
    %v2310 = vmul.f32 %v2299, %v2304
    %v2311 = vadd.f32 %v2309, %v2310
    %v2312 = vtanh.pop %v2311
    %v2313 = vmul.f32 %v2308, %v2312
    %v2314 = vpack.c.bf16 %v2111, %v2111
    %2315 = vmatpush.bf16.msra.mxu0 %v1890
    %2316 = vmatpush.bf16.msra.mxu0 %v1886
    %2317 = vmatpush.bf16.msra.mxu0 %v1882
    %2318 = vmatpush.bf16.msra.mxu0 %v1878
    %2319 = vmatpush.bf16.msra.mxu0 %v1874
    %2320 = vmatpush.bf16.msra.mxu0 %v1870
    %2321 = vmatpush.bf16.msra.mxu0 %v1866
    %2322 = vmatpush.bf16.msra.mxu0 %v1862
    %2323 = vmatmul.bf16.gmra.mxu0 %v2191
    %v2324 = vpop.f32.mrf.mxu0
    %v2325 = vadd.f32 %v540, %v2324
    %v2326 = vpop.f32.mrf.mxu0
    %2327 = vdwg.mxu0
    %2328 = vmatpush.bf16.msra.mxu0 %v1922
    %2329 = vmatpush.bf16.msra.mxu0 %v1918
    %2330 = vmatpush.bf16.msra.mxu0 %v1914
    %2331 = vmatpush.bf16.msra.mxu0 %v1910
    %2332 = vmatpush.bf16.msra.mxu0 %v1906
    %2333 = vmatpush.bf16.msra.mxu0 %v1902
    %2334 = vmatpush.bf16.msra.mxu0 %v1898
    %2335 = vmatpush.bf16.msra.mxu0 %v1894
    %2336 = vmatmul.bf16.gmra.mxu0 %v2314
    %v2337 = vpop.f32.mrf.mxu0
    %v2338 = vadd.f32 %v2325, %v2337
    %v2339 = vpop.f32.mrf.mxu0
    %2340 = vdwg.mxu0
    %2341 = vmatpush.bf16.msra.mxu0 %v1891
    %2342 = vmatpush.bf16.msra.mxu0 %v1887
    %2343 = vmatpush.bf16.msra.mxu0 %v1883
    %2344 = vmatpush.bf16.msra.mxu0 %v1879
    %2345 = vmatpush.bf16.msra.mxu0 %v1875
    %2346 = vmatpush.bf16.msra.mxu0 %v1871
    %2347 = vmatpush.bf16.msra.mxu0 %v1867
    %2348 = vmatpush.bf16.msra.mxu0 %v1863
    %2349 = vmatmul.bf16.gmra.mxu0 %v2191
    %v2350 = vpop.f32.mrf.mxu0
    %v2351 = vadd.f32 %v541, %v2350
    %v2352 = vpop.f32.mrf.mxu0
    %2353 = vdwg.mxu0
    %2354 = vmatpush.bf16.msra.mxu0 %v1923
    %2355 = vmatpush.bf16.msra.mxu0 %v1919
    %2356 = vmatpush.bf16.msra.mxu0 %v1915
    %2357 = vmatpush.bf16.msra.mxu0 %v1911
    %2358 = vmatpush.bf16.msra.mxu0 %v1907
    %2359 = vmatpush.bf16.msra.mxu0 %v1903
    %2360 = vmatpush.bf16.msra.mxu0 %v1899
    %2361 = vmatpush.bf16.msra.mxu0 %v1895
    %2362 = vmatmul.bf16.gmra.mxu0 %v2314
    %v2363 = vpop.f32.mrf.mxu0
    %v2364 = vadd.f32 %v2351, %v2363
    %v2365 = vpop.f32.mrf.mxu0
    %2366 = vdwg.mxu0
    %2367 = vmatpush.bf16.msra.mxu0 %v1892
    %2368 = vmatpush.bf16.msra.mxu0 %v1888
    %2369 = vmatpush.bf16.msra.mxu0 %v1884
    %2370 = vmatpush.bf16.msra.mxu0 %v1880
    %2371 = vmatpush.bf16.msra.mxu0 %v1876
    %2372 = vmatpush.bf16.msra.mxu0 %v1872
    %2373 = vmatpush.bf16.msra.mxu0 %v1868
    %2374 = vmatpush.bf16.msra.mxu0 %v1864
    %2375 = vmatmul.bf16.gmra.mxu0 %v2191
    %v2376 = vpop.f32.mrf.mxu0
    %v2377 = vadd.f32 %v542, %v2376
    %v2378 = vpop.f32.mrf.mxu0
    %2379 = vdwg.mxu0
    %2380 = vmatpush.bf16.msra.mxu0 %v1924
    %2381 = vmatpush.bf16.msra.mxu0 %v1920
    %2382 = vmatpush.bf16.msra.mxu0 %v1916
    %2383 = vmatpush.bf16.msra.mxu0 %v1912
    %2384 = vmatpush.bf16.msra.mxu0 %v1908
    %2385 = vmatpush.bf16.msra.mxu0 %v1904
    %2386 = vmatpush.bf16.msra.mxu0 %v1900
    %2387 = vmatpush.bf16.msra.mxu0 %v1896
    %2388 = vmatmul.bf16.gmra.mxu0 %v2314
    %v2389 = vpop.f32.mrf.mxu0
    %v2390 = vadd.f32 %v2377, %v2389
    %v2391 = vpop.f32.mrf.mxu0
    %2392 = vdwg.mxu0
    %2393 = vmatpush.bf16.msra.mxu0 %v1893
    %2394 = vmatpush.bf16.msra.mxu0 %v1889
    %2395 = vmatpush.bf16.msra.mxu0 %v1885
    %2396 = vmatpush.bf16.msra.mxu0 %v1881
    %2397 = vmatpush.bf16.msra.mxu0 %v1877
    %2398 = vmatpush.bf16.msra.mxu0 %v1873
    %2399 = vmatpush.bf16.msra.mxu0 %v1869
    %2400 = vmatpush.bf16.msra.mxu0 %v1865
    %2401 = vmatmul.bf16.gmra.mxu0 %v2191
    %v2402 = vpop.f32.mrf.mxu0
    %v2403 = vadd.f32 %v543, %v2402
    %v2404 = vpop.f32.mrf.mxu0
    %2405 = vdwg.mxu0
    %2406 = vmatpush.bf16.msra.mxu0 %v1925
    %2407 = vmatpush.bf16.msra.mxu0 %v1921
    %2408 = vmatpush.bf16.msra.mxu0 %v1917
    %2409 = vmatpush.bf16.msra.mxu0 %v1913
    %2410 = vmatpush.bf16.msra.mxu0 %v1909
    %2411 = vmatpush.bf16.msra.mxu0 %v1905
    %2412 = vmatpush.bf16.msra.mxu0 %v1901
    %2413 = vmatpush.bf16.msra.mxu0 %v1897
    %2414 = vmatmul.bf16.gmra.mxu0 %v2314
    %v2415 = vpop.f32.mrf.mxu0
    %v2416 = vadd.f32 %v2403, %v2415
    %v2417 = vpop.f32.mrf.mxu0
    %2418 = vdwg.mxu0
    %v2419 = vmul.f32 %v2338, 0.5
    %v2420 = vtanh.pop %v2419
    %v2421 = vmul.f32 %v2420, 0.5
    %v2422 = vadd.f32 %v2421, 0.5
    %v2423 = vmul.f32 %v2364, 0.5
    %v2424 = vtanh.pop %v2423
    %v2425 = vmul.f32 %v2424, 0.5
    %v2426 = vadd.f32 %v2425, 0.5
    %v2427 = vtanh.pop %v2390
    %v2428 = vmul.f32 %v2416, 0.5
    %v2429 = vtanh.pop %v2428
    %v2430 = vmul.f32 %v2429, 0.5
    %v2431 = vadd.f32 %v2430, 0.5
    %v2432 = vmul.f32 %v2426, %v2109
    %v2433 = vmul.f32 %v2422, %v2427
    %v2434 = vadd.f32 %v2432, %v2433
    %v2435 = vtanh.pop %v2434
    %v2436 = vmul.f32 %v2431, %v2435
    %v2437 = vld [vmem:[#allocation2 + $0x80] sm:$0xff]
    %v2438 = vld [vmem:[#allocation2 + $0x88] sm:$0xff]
    %v2439 = vld [vmem:[#allocation2 + $0x90] sm:$0xff]
    %v2440 = vld [vmem:[#allocation2 + $0x98] sm:$0xff]
    %v2441 = vpack.c.bf16 %v2190, %v2190
    %2442 = vmatpush.bf16.msra.mxu0 %v708
    %2443 = vmatpush.bf16.msra.mxu0 %v704
    %2444 = vmatpush.bf16.msra.mxu0 %v700
    %2445 = vmatpush.bf16.msra.mxu0 %v696
    %2446 = vmatpush.bf16.msra.mxu0 %v692
    %2447 = vmatpush.bf16.msra.mxu0 %v688
    %2448 = vmatpush.bf16.msra.mxu0 %v684
    %2449 = vmatpush.bf16.msra.mxu0 %v680
    %2450 = vmatmul.bf16.gmra.mxu0 %v2441
    %v2451 = vpop.f32.mrf.mxu0
    %v2452 = vadd.f32 0.0, %v2451
    %v2453 = vpop.f32.mrf.mxu0
    %2454 = vdwg.mxu0
    %2455 = vmatpush.bf16.msra.mxu0 %v709
    %2456 = vmatpush.bf16.msra.mxu0 %v705
    %2457 = vmatpush.bf16.msra.mxu0 %v701
    %2458 = vmatpush.bf16.msra.mxu0 %v697
    %2459 = vmatpush.bf16.msra.mxu0 %v693
    %2460 = vmatpush.bf16.msra.mxu0 %v689
    %2461 = vmatpush.bf16.msra.mxu0 %v685
    %2462 = vmatpush.bf16.msra.mxu0 %v681
    %2463 = vmatmul.bf16.gmra.mxu0 %v2441
    %v2464 = vpop.f32.mrf.mxu0
    %v2465 = vadd.f32 0.0, %v2464
    %v2466 = vpop.f32.mrf.mxu0
    %2467 = vdwg.mxu0
    %2468 = vmatpush.bf16.msra.mxu0 %v710
    %2469 = vmatpush.bf16.msra.mxu0 %v706
    %2470 = vmatpush.bf16.msra.mxu0 %v702
    %2471 = vmatpush.bf16.msra.mxu0 %v698
    %2472 = vmatpush.bf16.msra.mxu0 %v694
    %2473 = vmatpush.bf16.msra.mxu0 %v690
    %2474 = vmatpush.bf16.msra.mxu0 %v686
    %2475 = vmatpush.bf16.msra.mxu0 %v682
    %2476 = vmatmul.bf16.gmra.mxu0 %v2441
    %v2477 = vpop.f32.mrf.mxu0
    %v2478 = vadd.f32 0.0, %v2477
    %v2479 = vpop.f32.mrf.mxu0
    %2480 = vdwg.mxu0
    %2481 = vmatpush.bf16.msra.mxu0 %v711
    %2482 = vmatpush.bf16.msra.mxu0 %v707
    %2483 = vmatpush.bf16.msra.mxu0 %v703
    %2484 = vmatpush.bf16.msra.mxu0 %v699
    %2485 = vmatpush.bf16.msra.mxu0 %v695
    %2486 = vmatpush.bf16.msra.mxu0 %v691
    %2487 = vmatpush.bf16.msra.mxu0 %v687
    %2488 = vmatpush.bf16.msra.mxu0 %v683
    %2489 = vmatmul.bf16.gmra.mxu0 %v2441
    %v2490 = vpop.f32.mrf.mxu0
    %v2491 = vadd.f32 0.0, %v2490
    %v2492 = vpop.f32.mrf.mxu0
    %2493 = vdwg.mxu0
    %v2494 = vadd.f32 %v2437, %v2452
    %v2495 = vadd.f32 %v2438, %v2465
    %v2496 = vadd.f32 %v2439, %v2478
    %v2497 = vadd.f32 %v2440, %v2491
    %v2498 = vmul.f32 %v2494, 0.5
    %v2499 = vtanh.pop %v2498
    %v2500 = vmul.f32 %v2499, 0.5
    %v2501 = vadd.f32 %v2500, 0.5
    %v2502 = vmul.f32 %v2495, 0.5
    %v2503 = vtanh.pop %v2502
    %v2504 = vmul.f32 %v2503, 0.5
    %v2505 = vadd.f32 %v2504, 0.5
    %v2506 = vtanh.pop %v2496
    %v2507 = vmul.f32 %v2497, 0.5
    %v2508 = vtanh.pop %v2507
    %v2509 = vmul.f32 %v2508, 0.5
    %v2510 = vadd.f32 %v2509, 0.5
    %v2511 = vmul.f32 %v2505, %v2188
    %v2512 = vmul.f32 %v2501, %v2506
    %v2513 = vadd.f32 %v2511, %v2512
    %v2514 = vtanh.pop %v2513
    %v2515 = vmul.f32 %v2510, %v2514
    %v2516 = vpack.c.bf16 %v2313, %v2313
    %2517 = vmatpush.bf16.msra.mxu0 %v1182
    %2518 = vmatpush.bf16.msra.mxu0 %v1178
    %2519 = vmatpush.bf16.msra.mxu0 %v1174
    %2520 = vmatpush.bf16.msra.mxu0 %v1170
    %2521 = vmatpush.bf16.msra.mxu0 %v1166
    %2522 = vmatpush.bf16.msra.mxu0 %v1162
    %2523 = vmatpush.bf16.msra.mxu0 %v1158
    %2524 = vmatpush.bf16.msra.mxu0 %v1154
    %2525 = vmatmul.bf16.gmra.mxu0 %v2441
    %v2526 = vpop.f32.mrf.mxu0
    %v2527 = vadd.f32 %v530, %v2526
    %v2528 = vpop.f32.mrf.mxu0
    %2529 = vdwg.mxu0
    %2530 = vmatpush.bf16.msra.mxu0 %v1214
    %2531 = vmatpush.bf16.msra.mxu0 %v1210
    %2532 = vmatpush.bf16.msra.mxu0 %v1206
    %2533 = vmatpush.bf16.msra.mxu0 %v1202
    %2534 = vmatpush.bf16.msra.mxu0 %v1198
    %2535 = vmatpush.bf16.msra.mxu0 %v1194
    %2536 = vmatpush.bf16.msra.mxu0 %v1190
    %2537 = vmatpush.bf16.msra.mxu0 %v1186
    %2538 = vmatmul.bf16.gmra.mxu0 %v2516
    %v2539 = vpop.f32.mrf.mxu0
    %v2540 = vadd.f32 %v2527, %v2539
    %v2541 = vpop.f32.mrf.mxu0
    %2542 = vdwg.mxu0
    %2543 = vmatpush.bf16.msra.mxu0 %v1183
    %2544 = vmatpush.bf16.msra.mxu0 %v1179
    %2545 = vmatpush.bf16.msra.mxu0 %v1175
    %2546 = vmatpush.bf16.msra.mxu0 %v1171
    %2547 = vmatpush.bf16.msra.mxu0 %v1167
    %2548 = vmatpush.bf16.msra.mxu0 %v1163
    %2549 = vmatpush.bf16.msra.mxu0 %v1159
    %2550 = vmatpush.bf16.msra.mxu0 %v1155
    %2551 = vmatmul.bf16.gmra.mxu0 %v2441
    %v2552 = vpop.f32.mrf.mxu0
    %v2553 = vadd.f32 %v531, %v2552
    %v2554 = vpop.f32.mrf.mxu0
    %2555 = vdwg.mxu0
    %2556 = vmatpush.bf16.msra.mxu0 %v1215
    %2557 = vmatpush.bf16.msra.mxu0 %v1211
    %2558 = vmatpush.bf16.msra.mxu0 %v1207
    %2559 = vmatpush.bf16.msra.mxu0 %v1203
    %2560 = vmatpush.bf16.msra.mxu0 %v1199
    %2561 = vmatpush.bf16.msra.mxu0 %v1195
    %2562 = vmatpush.bf16.msra.mxu0 %v1191
    %2563 = vmatpush.bf16.msra.mxu0 %v1187
    %2564 = vmatmul.bf16.gmra.mxu0 %v2516
    %v2565 = vpop.f32.mrf.mxu0
    %v2566 = vadd.f32 %v2553, %v2565
    %v2567 = vpop.f32.mrf.mxu0
    %2568 = vdwg.mxu0
    %2569 = vmatpush.bf16.msra.mxu0 %v1184
    %2570 = vmatpush.bf16.msra.mxu0 %v1180
    %2571 = vmatpush.bf16.msra.mxu0 %v1176
    %2572 = vmatpush.bf16.msra.mxu0 %v1172
    %2573 = vmatpush.bf16.msra.mxu0 %v1168
    %2574 = vmatpush.bf16.msra.mxu0 %v1164
    %2575 = vmatpush.bf16.msra.mxu0 %v1160
    %2576 = vmatpush.bf16.msra.mxu0 %v1156
    %2577 = vmatmul.bf16.gmra.mxu0 %v2441
    %v2578 = vpop.f32.mrf.mxu0
    %v2579 = vadd.f32 %v532, %v2578
    %v2580 = vpop.f32.mrf.mxu0
    %2581 = vdwg.mxu0
    %2582 = vmatpush.bf16.msra.mxu0 %v1216
    %2583 = vmatpush.bf16.msra.mxu0 %v1212
    %2584 = vmatpush.bf16.msra.mxu0 %v1208
    %2585 = vmatpush.bf16.msra.mxu0 %v1204
    %2586 = vmatpush.bf16.msra.mxu0 %v1200
    %2587 = vmatpush.bf16.msra.mxu0 %v1196
    %2588 = vmatpush.bf16.msra.mxu0 %v1192
    %2589 = vmatpush.bf16.msra.mxu0 %v1188
    %2590 = vmatmul.bf16.gmra.mxu0 %v2516
    %v2591 = vpop.f32.mrf.mxu0
    %v2592 = vadd.f32 %v2579, %v2591
    %v2593 = vpop.f32.mrf.mxu0
    %2594 = vdwg.mxu0
    %2595 = vmatpush.bf16.msra.mxu0 %v1185
    %2596 = vmatpush.bf16.msra.mxu0 %v1181
    %2597 = vmatpush.bf16.msra.mxu0 %v1177
    %2598 = vmatpush.bf16.msra.mxu0 %v1173
    %2599 = vmatpush.bf16.msra.mxu0 %v1169
    %2600 = vmatpush.bf16.msra.mxu0 %v1165
    %2601 = vmatpush.bf16.msra.mxu0 %v1161
    %2602 = vmatpush.bf16.msra.mxu0 %v1157
    %2603 = vmatmul.bf16.gmra.mxu0 %v2441
    %v2604 = vpop.f32.mrf.mxu0
    %v2605 = vadd.f32 %v533, %v2604
    %v2606 = vpop.f32.mrf.mxu0
    %2607 = vdwg.mxu0
    %2608 = vmatpush.bf16.msra.mxu0 %v1217
    %2609 = vmatpush.bf16.msra.mxu0 %v1213
    %2610 = vmatpush.bf16.msra.mxu0 %v1209
    %2611 = vmatpush.bf16.msra.mxu0 %v1205
    %2612 = vmatpush.bf16.msra.mxu0 %v1201
    %2613 = vmatpush.bf16.msra.mxu0 %v1197
    %2614 = vmatpush.bf16.msra.mxu0 %v1193
    %2615 = vmatpush.bf16.msra.mxu0 %v1189
    %2616 = vmatmul.bf16.gmra.mxu0 %v2516
    %v2617 = vpop.f32.mrf.mxu0
    %v2618 = vadd.f32 %v2605, %v2617
    %v2619 = vpop.f32.mrf.mxu0
    %2620 = vdwg.mxu0
    %v2621 = vmul.f32 %v2540, 0.5
    %v2622 = vtanh.pop %v2621
    %v2623 = vmul.f32 %v2622, 0.5
    %v2624 = vadd.f32 %v2623, 0.5
    %v2625 = vmul.f32 %v2566, 0.5
    %v2626 = vtanh.pop %v2625
    %v2627 = vmul.f32 %v2626, 0.5
    %v2628 = vadd.f32 %v2627, 0.5
    %v2629 = vtanh.pop %v2592
    %v2630 = vmul.f32 %v2618, 0.5
    %v2631 = vtanh.pop %v2630
    %v2632 = vmul.f32 %v2631, 0.5
    %v2633 = vadd.f32 %v2632, 0.5
    %v2634 = vmul.f32 %v2628, %v2311
    %v2635 = vmul.f32 %v2624, %v2629
    %v2636 = vadd.f32 %v2634, %v2635
    %v2637 = vtanh.pop %v2636
    %v2638 = vmul.f32 %v2633, %v2637
    %v2639 = vpack.c.bf16 %v2436, %v2436
    %2640 = vmatpush.bf16.msra.mxu0 %v1890
    %2641 = vmatpush.bf16.msra.mxu0 %v1886
    %2642 = vmatpush.bf16.msra.mxu0 %v1882
    %2643 = vmatpush.bf16.msra.mxu0 %v1878
    %2644 = vmatpush.bf16.msra.mxu0 %v1874
    %2645 = vmatpush.bf16.msra.mxu0 %v1870
    %2646 = vmatpush.bf16.msra.mxu0 %v1866
    %2647 = vmatpush.bf16.msra.mxu0 %v1862
    %2648 = vmatmul.bf16.gmra.mxu0 %v2516
    %v2649 = vpop.f32.mrf.mxu0
    %v2650 = vadd.f32 %v540, %v2649
    %v2651 = vpop.f32.mrf.mxu0
    %2652 = vdwg.mxu0
    %2653 = vmatpush.bf16.msra.mxu0 %v1922
    %2654 = vmatpush.bf16.msra.mxu0 %v1918
    %2655 = vmatpush.bf16.msra.mxu0 %v1914
    %2656 = vmatpush.bf16.msra.mxu0 %v1910
    %2657 = vmatpush.bf16.msra.mxu0 %v1906
    %2658 = vmatpush.bf16.msra.mxu0 %v1902
    %2659 = vmatpush.bf16.msra.mxu0 %v1898
    %2660 = vmatpush.bf16.msra.mxu0 %v1894
    %2661 = vmatmul.bf16.gmra.mxu0 %v2639
    %v2662 = vpop.f32.mrf.mxu0
    %v2663 = vadd.f32 %v2650, %v2662
    %v2664 = vpop.f32.mrf.mxu0
    %2665 = vdwg.mxu0
    %2666 = vmatpush.bf16.msra.mxu0 %v1891
    %2667 = vmatpush.bf16.msra.mxu0 %v1887
    %2668 = vmatpush.bf16.msra.mxu0 %v1883
    %2669 = vmatpush.bf16.msra.mxu0 %v1879
    %2670 = vmatpush.bf16.msra.mxu0 %v1875
    %2671 = vmatpush.bf16.msra.mxu0 %v1871
    %2672 = vmatpush.bf16.msra.mxu0 %v1867
    %2673 = vmatpush.bf16.msra.mxu0 %v1863
    %2674 = vmatmul.bf16.gmra.mxu0 %v2516
    %v2675 = vpop.f32.mrf.mxu0
    %v2676 = vadd.f32 %v541, %v2675
    %v2677 = vpop.f32.mrf.mxu0
    %2678 = vdwg.mxu0
    %2679 = vmatpush.bf16.msra.mxu0 %v1923
    %2680 = vmatpush.bf16.msra.mxu0 %v1919
    %2681 = vmatpush.bf16.msra.mxu0 %v1915
    %2682 = vmatpush.bf16.msra.mxu0 %v1911
    %2683 = vmatpush.bf16.msra.mxu0 %v1907
    %2684 = vmatpush.bf16.msra.mxu0 %v1903
    %2685 = vmatpush.bf16.msra.mxu0 %v1899
    %2686 = vmatpush.bf16.msra.mxu0 %v1895
    %2687 = vmatmul.bf16.gmra.mxu0 %v2639
    %v2688 = vpop.f32.mrf.mxu0
    %v2689 = vadd.f32 %v2676, %v2688
    %v2690 = vpop.f32.mrf.mxu0
    %2691 = vdwg.mxu0
    %2692 = vmatpush.bf16.msra.mxu0 %v1892
    %2693 = vmatpush.bf16.msra.mxu0 %v1888
    %2694 = vmatpush.bf16.msra.mxu0 %v1884
    %2695 = vmatpush.bf16.msra.mxu0 %v1880
    %2696 = vmatpush.bf16.msra.mxu0 %v1876
    %2697 = vmatpush.bf16.msra.mxu0 %v1872
    %2698 = vmatpush.bf16.msra.mxu0 %v1868
    %2699 = vmatpush.bf16.msra.mxu0 %v1864
    %2700 = vmatmul.bf16.gmra.mxu0 %v2516
    %v2701 = vpop.f32.mrf.mxu0
    %v2702 = vadd.f32 %v542, %v2701
    %v2703 = vpop.f32.mrf.mxu0
    %2704 = vdwg.mxu0
    %2705 = vmatpush.bf16.msra.mxu0 %v1924
    %2706 = vmatpush.bf16.msra.mxu0 %v1920
    %2707 = vmatpush.bf16.msra.mxu0 %v1916
    %2708 = vmatpush.bf16.msra.mxu0 %v1912
    %2709 = vmatpush.bf16.msra.mxu0 %v1908
    %2710 = vmatpush.bf16.msra.mxu0 %v1904
    %2711 = vmatpush.bf16.msra.mxu0 %v1900
    %2712 = vmatpush.bf16.msra.mxu0 %v1896
    %2713 = vmatmul.bf16.gmra.mxu0 %v2639
    %v2714 = vpop.f32.mrf.mxu0
    %v2715 = vadd.f32 %v2702, %v2714
    %v2716 = vpop.f32.mrf.mxu0
    %2717 = vdwg.mxu0
    %2718 = vmatpush.bf16.msra.mxu0 %v1893
    %2719 = vmatpush.bf16.msra.mxu0 %v1889
    %2720 = vmatpush.bf16.msra.mxu0 %v1885
    %2721 = vmatpush.bf16.msra.mxu0 %v1881
    %2722 = vmatpush.bf16.msra.mxu0 %v1877
    %2723 = vmatpush.bf16.msra.mxu0 %v1873
    %2724 = vmatpush.bf16.msra.mxu0 %v1869
    %2725 = vmatpush.bf16.msra.mxu0 %v1865
    %2726 = vmatmul.bf16.gmra.mxu0 %v2516
    %v2727 = vpop.f32.mrf.mxu0
    %v2728 = vadd.f32 %v543, %v2727
    %v2729 = vpop.f32.mrf.mxu0
    %2730 = vdwg.mxu0
    %2731 = vmatpush.bf16.msra.mxu0 %v1925
    %2732 = vmatpush.bf16.msra.mxu0 %v1921
    %2733 = vmatpush.bf16.msra.mxu0 %v1917
    %2734 = vmatpush.bf16.msra.mxu0 %v1913
    %2735 = vmatpush.bf16.msra.mxu0 %v1909
    %2736 = vmatpush.bf16.msra.mxu0 %v1905
    %2737 = vmatpush.bf16.msra.mxu0 %v1901
    %2738 = vmatpush.bf16.msra.mxu0 %v1897
    %2739 = vmatmul.bf16.gmra.mxu0 %v2639
    %v2740 = vpop.f32.mrf.mxu0
    %v2741 = vadd.f32 %v2728, %v2740
    %v2742 = vpop.f32.mrf.mxu0
    %2743 = vdwg.mxu0
    %v2744 = vmul.f32 %v2663, 0.5
    %v2745 = vtanh.pop %v2744
    %v2746 = vmul.f32 %v2745, 0.5
    %v2747 = vadd.f32 %v2746, 0.5
    %v2748 = vmul.f32 %v2689, 0.5
    %v2749 = vtanh.pop %v2748
    %v2750 = vmul.f32 %v2749, 0.5
    %v2751 = vadd.f32 %v2750, 0.5
    %v2752 = vtanh.pop %v2715
    %v2753 = vmul.f32 %v2741, 0.5
    %v2754 = vtanh.pop %v2753
    %v2755 = vmul.f32 %v2754, 0.5
    %v2756 = vadd.f32 %v2755, 0.5
    %v2757 = vmul.f32 %v2751, %v2434
    %v2758 = vmul.f32 %v2747, %v2752
    %v2759 = vadd.f32 %v2757, %v2758
    %v2760 = vtanh.pop %v2759
    %v2761 = vmul.f32 %v2756, %v2760
    %v2762 = vld [vmem:[#allocation2 + $0xa0] sm:$0xff]
    %v2763 = vld [vmem:[#allocation2 + $0xa8] sm:$0xff]
    %v2764 = vld [vmem:[#allocation2 + $0xb0] sm:$0xff]
    %v2765 = vld [vmem:[#allocation2 + $0xb8] sm:$0xff]
    %v2766 = vpack.c.bf16 %v2515, %v2515
    %2767 = vmatpush.bf16.msra.mxu0 %v708
    %2768 = vmatpush.bf16.msra.mxu0 %v704
    %2769 = vmatpush.bf16.msra.mxu0 %v700
    %2770 = vmatpush.bf16.msra.mxu0 %v696
    %2771 = vmatpush.bf16.msra.mxu0 %v692
    %2772 = vmatpush.bf16.msra.mxu0 %v688
    %2773 = vmatpush.bf16.msra.mxu0 %v684
    %2774 = vmatpush.bf16.msra.mxu0 %v680
    %2775 = vmatmul.bf16.gmra.mxu0 %v2766
    %v2776 = vpop.f32.mrf.mxu0
    %v2777 = vadd.f32 0.0, %v2776
    %v2778 = vpop.f32.mrf.mxu0
    %2779 = vdwg.mxu0
    %2780 = vmatpush.bf16.msra.mxu0 %v709
    %2781 = vmatpush.bf16.msra.mxu0 %v705
    %2782 = vmatpush.bf16.msra.mxu0 %v701
    %2783 = vmatpush.bf16.msra.mxu0 %v697
    %2784 = vmatpush.bf16.msra.mxu0 %v693
    %2785 = vmatpush.bf16.msra.mxu0 %v689
    %2786 = vmatpush.bf16.msra.mxu0 %v685
    %2787 = vmatpush.bf16.msra.mxu0 %v681
    %2788 = vmatmul.bf16.gmra.mxu0 %v2766
    %v2789 = vpop.f32.mrf.mxu0
    %v2790 = vadd.f32 0.0, %v2789
    %v2791 = vpop.f32.mrf.mxu0
    %2792 = vdwg.mxu0
    %2793 = vmatpush.bf16.msra.mxu0 %v710
    %2794 = vmatpush.bf16.msra.mxu0 %v706
    %2795 = vmatpush.bf16.msra.mxu0 %v702
    %2796 = vmatpush.bf16.msra.mxu0 %v698
    %2797 = vmatpush.bf16.msra.mxu0 %v694
    %2798 = vmatpush.bf16.msra.mxu0 %v690
    %2799 = vmatpush.bf16.msra.mxu0 %v686
    %2800 = vmatpush.bf16.msra.mxu0 %v682
    %2801 = vmatmul.bf16.gmra.mxu0 %v2766
    %v2802 = vpop.f32.mrf.mxu0
    %v2803 = vadd.f32 0.0, %v2802
    %v2804 = vpop.f32.mrf.mxu0
    %2805 = vdwg.mxu0
    %2806 = vmatpush.bf16.msra.mxu0 %v711
    %2807 = vmatpush.bf16.msra.mxu0 %v707
    %2808 = vmatpush.bf16.msra.mxu0 %v703
    %2809 = vmatpush.bf16.msra.mxu0 %v699
    %2810 = vmatpush.bf16.msra.mxu0 %v695
    %2811 = vmatpush.bf16.msra.mxu0 %v691
    %2812 = vmatpush.bf16.msra.mxu0 %v687
    %2813 = vmatpush.bf16.msra.mxu0 %v683
    %2814 = vmatmul.bf16.gmra.mxu0 %v2766
    %v2815 = vpop.f32.mrf.mxu0
    %v2816 = vadd.f32 0.0, %v2815
    %v2817 = vpop.f32.mrf.mxu0
    %2818 = vdwg.mxu0
    %v2819 = vadd.f32 %v2762, %v2777
    %v2820 = vadd.f32 %v2763, %v2790
    %v2821 = vadd.f32 %v2764, %v2803
    %v2822 = vadd.f32 %v2765, %v2816
    %v2823 = vmul.f32 %v2819, 0.5
    %v2824 = vtanh.pop %v2823
    %v2825 = vmul.f32 %v2824, 0.5
    %v2826 = vadd.f32 %v2825, 0.5
    %v2827 = vmul.f32 %v2820, 0.5
    %v2828 = vtanh.pop %v2827
    %v2829 = vmul.f32 %v2828, 0.5
    %v2830 = vadd.f32 %v2829, 0.5
    %v2831 = vtanh.pop %v2821
    %v2832 = vmul.f32 %v2822, 0.5
    %v2833 = vtanh.pop %v2832
    %v2834 = vmul.f32 %v2833, 0.5
    %v2835 = vadd.f32 %v2834, 0.5
    %v2836 = vmul.f32 %v2830, %v2513
    %v2837 = vmul.f32 %v2826, %v2831
    %v2838 = vadd.f32 %v2836, %v2837
    %v2839 = vtanh.pop %v2838
    %v2840 = vmul.f32 %v2835, %v2839
    %v2841 = vpack.c.bf16 %v2638, %v2638
    %2842 = vmatpush.bf16.msra.mxu0 %v1182
    %2843 = vmatpush.bf16.msra.mxu0 %v1178
    %2844 = vmatpush.bf16.msra.mxu0 %v1174
    %2845 = vmatpush.bf16.msra.mxu0 %v1170
    %2846 = vmatpush.bf16.msra.mxu0 %v1166
    %2847 = vmatpush.bf16.msra.mxu0 %v1162
    %2848 = vmatpush.bf16.msra.mxu0 %v1158
    %2849 = vmatpush.bf16.msra.mxu0 %v1154
    %2850 = vmatmul.bf16.gmra.mxu0 %v2766
    %v2851 = vpop.f32.mrf.mxu0
    %v2852 = vadd.f32 %v530, %v2851
    %v2853 = vpop.f32.mrf.mxu0
    %2854 = vdwg.mxu0
    %2855 = vmatpush.bf16.msra.mxu0 %v1214
    %2856 = vmatpush.bf16.msra.mxu0 %v1210
    %2857 = vmatpush.bf16.msra.mxu0 %v1206
    %2858 = vmatpush.bf16.msra.mxu0 %v1202
    %2859 = vmatpush.bf16.msra.mxu0 %v1198
    %2860 = vmatpush.bf16.msra.mxu0 %v1194
    %2861 = vmatpush.bf16.msra.mxu0 %v1190
    %2862 = vmatpush.bf16.msra.mxu0 %v1186
    %2863 = vmatmul.bf16.gmra.mxu0 %v2841
    %v2864 = vpop.f32.mrf.mxu0
    %v2865 = vadd.f32 %v2852, %v2864
    %v2866 = vpop.f32.mrf.mxu0
    %2867 = vdwg.mxu0
    %2868 = vmatpush.bf16.msra.mxu0 %v1183
    %2869 = vmatpush.bf16.msra.mxu0 %v1179
    %2870 = vmatpush.bf16.msra.mxu0 %v1175
    %2871 = vmatpush.bf16.msra.mxu0 %v1171
    %2872 = vmatpush.bf16.msra.mxu0 %v1167
    %2873 = vmatpush.bf16.msra.mxu0 %v1163
    %2874 = vmatpush.bf16.msra.mxu0 %v1159
    %2875 = vmatpush.bf16.msra.mxu0 %v1155
    %2876 = vmatmul.bf16.gmra.mxu0 %v2766
    %v2877 = vpop.f32.mrf.mxu0
    %v2878 = vadd.f32 %v531, %v2877
    %v2879 = vpop.f32.mrf.mxu0
    %2880 = vdwg.mxu0
    %2881 = vmatpush.bf16.msra.mxu0 %v1215
    %2882 = vmatpush.bf16.msra.mxu0 %v1211
    %2883 = vmatpush.bf16.msra.mxu0 %v1207
    %2884 = vmatpush.bf16.msra.mxu0 %v1203
    %2885 = vmatpush.bf16.msra.mxu0 %v1199
    %2886 = vmatpush.bf16.msra.mxu0 %v1195
    %2887 = vmatpush.bf16.msra.mxu0 %v1191
    %2888 = vmatpush.bf16.msra.mxu0 %v1187
    %2889 = vmatmul.bf16.gmra.mxu0 %v2841
    %v2890 = vpop.f32.mrf.mxu0
    %v2891 = vadd.f32 %v2878, %v2890
    %v2892 = vpop.f32.mrf.mxu0
    %2893 = vdwg.mxu0
    %2894 = vmatpush.bf16.msra.mxu0 %v1184
    %2895 = vmatpush.bf16.msra.mxu0 %v1180
    %2896 = vmatpush.bf16.msra.mxu0 %v1176
    %2897 = vmatpush.bf16.msra.mxu0 %v1172
    %2898 = vmatpush.bf16.msra.mxu0 %v1168
    %2899 = vmatpush.bf16.msra.mxu0 %v1164
    %2900 = vmatpush.bf16.msra.mxu0 %v1160
    %2901 = vmatpush.bf16.msra.mxu0 %v1156
    %2902 = vmatmul.bf16.gmra.mxu0 %v2766
    %v2903 = vpop.f32.mrf.mxu0
    %v2904 = vadd.f32 %v532, %v2903
    %v2905 = vpop.f32.mrf.mxu0
    %2906 = vdwg.mxu0
    %2907 = vmatpush.bf16.msra.mxu0 %v1216
    %2908 = vmatpush.bf16.msra.mxu0 %v1212
    %2909 = vmatpush.bf16.msra.mxu0 %v1208
    %2910 = vmatpush.bf16.msra.mxu0 %v1204
    %2911 = vmatpush.bf16.msra.mxu0 %v1200
    %2912 = vmatpush.bf16.msra.mxu0 %v1196
    %2913 = vmatpush.bf16.msra.mxu0 %v1192
    %2914 = vmatpush.bf16.msra.mxu0 %v1188
    %2915 = vmatmul.bf16.gmra.mxu0 %v2841
    %v2916 = vpop.f32.mrf.mxu0
    %v2917 = vadd.f32 %v2904, %v2916
    %v2918 = vpop.f32.mrf.mxu0
    %2919 = vdwg.mxu0
    %2920 = vmatpush.bf16.msra.mxu0 %v1185
    %2921 = vmatpush.bf16.msra.mxu0 %v1181
    %2922 = vmatpush.bf16.msra.mxu0 %v1177
    %2923 = vmatpush.bf16.msra.mxu0 %v1173
    %2924 = vmatpush.bf16.msra.mxu0 %v1169
    %2925 = vmatpush.bf16.msra.mxu0 %v1165
    %2926 = vmatpush.bf16.msra.mxu0 %v1161
    %2927 = vmatpush.bf16.msra.mxu0 %v1157
    %2928 = vmatmul.bf16.gmra.mxu0 %v2766
    %v2929 = vpop.f32.mrf.mxu0
    %v2930 = vadd.f32 %v533, %v2929
    %v2931 = vpop.f32.mrf.mxu0
    %2932 = vdwg.mxu0
    %2933 = vmatpush.bf16.msra.mxu0 %v1217
    %2934 = vmatpush.bf16.msra.mxu0 %v1213
    %2935 = vmatpush.bf16.msra.mxu0 %v1209
    %2936 = vmatpush.bf16.msra.mxu0 %v1205
    %2937 = vmatpush.bf16.msra.mxu0 %v1201
    %2938 = vmatpush.bf16.msra.mxu0 %v1197
    %2939 = vmatpush.bf16.msra.mxu0 %v1193
    %2940 = vmatpush.bf16.msra.mxu0 %v1189
    %2941 = vmatmul.bf16.gmra.mxu0 %v2841
    %v2942 = vpop.f32.mrf.mxu0
    %v2943 = vadd.f32 %v2930, %v2942
    %v2944 = vpop.f32.mrf.mxu0
    %2945 = vdwg.mxu0
    %v2946 = vmul.f32 %v2865, 0.5
    %v2947 = vtanh.pop %v2946
    %v2948 = vmul.f32 %v2947, 0.5
    %v2949 = vadd.f32 %v2948, 0.5
    %v2950 = vmul.f32 %v2891, 0.5
    %v2951 = vtanh.pop %v2950
    %v2952 = vmul.f32 %v2951, 0.5
    %v2953 = vadd.f32 %v2952, 0.5
    %v2954 = vtanh.pop %v2917
    %v2955 = vmul.f32 %v2943, 0.5
    %v2956 = vtanh.pop %v2955
    %v2957 = vmul.f32 %v2956, 0.5
    %v2958 = vadd.f32 %v2957, 0.5
    %v2959 = vmul.f32 %v2953, %v2636
    %v2960 = vmul.f32 %v2949, %v2954
    %v2961 = vadd.f32 %v2959, %v2960
    %v2962 = vtanh.pop %v2961
    %v2963 = vmul.f32 %v2958, %v2962
    %v2964 = vpack.c.bf16 %v2761, %v2761
    %2965 = vmatpush.bf16.msra.mxu0 %v1890
    %2966 = vmatpush.bf16.msra.mxu0 %v1886
    %2967 = vmatpush.bf16.msra.mxu0 %v1882
    %2968 = vmatpush.bf16.msra.mxu0 %v1878
    %2969 = vmatpush.bf16.msra.mxu0 %v1874
    %2970 = vmatpush.bf16.msra.mxu0 %v1870
    %2971 = vmatpush.bf16.msra.mxu0 %v1866
    %2972 = vmatpush.bf16.msra.mxu0 %v1862
    %2973 = vmatmul.bf16.gmra.mxu0 %v2841
    %v2974 = vpop.f32.mrf.mxu0
    %v2975 = vadd.f32 %v540, %v2974
    %v2976 = vpop.f32.mrf.mxu0
    %2977 = vdwg.mxu0
    %2978 = vmatpush.bf16.msra.mxu0 %v1922
    %2979 = vmatpush.bf16.msra.mxu0 %v1918
    %2980 = vmatpush.bf16.msra.mxu0 %v1914
    %2981 = vmatpush.bf16.msra.mxu0 %v1910
    %2982 = vmatpush.bf16.msra.mxu0 %v1906
    %2983 = vmatpush.bf16.msra.mxu0 %v1902
    %2984 = vmatpush.bf16.msra.mxu0 %v1898
    %2985 = vmatpush.bf16.msra.mxu0 %v1894
    %2986 = vmatmul.bf16.gmra.mxu0 %v2964
    %v2987 = vpop.f32.mrf.mxu0
    %v2988 = vadd.f32 %v2975, %v2987
    %v2989 = vpop.f32.mrf.mxu0
    %2990 = vdwg.mxu0
    %2991 = vmatpush.bf16.msra.mxu0 %v1891
    %2992 = vmatpush.bf16.msra.mxu0 %v1887
    %2993 = vmatpush.bf16.msra.mxu0 %v1883
    %2994 = vmatpush.bf16.msra.mxu0 %v1879
    %2995 = vmatpush.bf16.msra.mxu0 %v1875
    %2996 = vmatpush.bf16.msra.mxu0 %v1871
    %2997 = vmatpush.bf16.msra.mxu0 %v1867
    %2998 = vmatpush.bf16.msra.mxu0 %v1863
    %2999 = vmatmul.bf16.gmra.mxu0 %v2841
    %v3000 = vpop.f32.mrf.mxu0
    %v3001 = vadd.f32 %v541, %v3000
    %v3002 = vpop.f32.mrf.mxu0
    %3003 = vdwg.mxu0
    %3004 = vmatpush.bf16.msra.mxu0 %v1923
    %3005 = vmatpush.bf16.msra.mxu0 %v1919
    %3006 = vmatpush.bf16.msra.mxu0 %v1915
    %3007 = vmatpush.bf16.msra.mxu0 %v1911
    %3008 = vmatpush.bf16.msra.mxu0 %v1907
    %3009 = vmatpush.bf16.msra.mxu0 %v1903
    %3010 = vmatpush.bf16.msra.mxu0 %v1899
    %3011 = vmatpush.bf16.msra.mxu0 %v1895
    %3012 = vmatmul.bf16.gmra.mxu0 %v2964
    %v3013 = vpop.f32.mrf.mxu0
    %v3014 = vadd.f32 %v3001, %v3013
    %v3015 = vpop.f32.mrf.mxu0
    %3016 = vdwg.mxu0
    %3017 = vmatpush.bf16.msra.mxu0 %v1892
    %3018 = vmatpush.bf16.msra.mxu0 %v1888
    %3019 = vmatpush.bf16.msra.mxu0 %v1884
    %3020 = vmatpush.bf16.msra.mxu0 %v1880
    %3021 = vmatpush.bf16.msra.mxu0 %v1876
    %3022 = vmatpush.bf16.msra.mxu0 %v1872
    %3023 = vmatpush.bf16.msra.mxu0 %v1868
    %3024 = vmatpush.bf16.msra.mxu0 %v1864
    %3025 = vmatmul.bf16.gmra.mxu0 %v2841
    %v3026 = vpop.f32.mrf.mxu0
    %v3027 = vadd.f32 %v542, %v3026
    %v3028 = vpop.f32.mrf.mxu0
    %3029 = vdwg.mxu0
    %3030 = vmatpush.bf16.msra.mxu0 %v1924
    %3031 = vmatpush.bf16.msra.mxu0 %v1920
    %3032 = vmatpush.bf16.msra.mxu0 %v1916
    %3033 = vmatpush.bf16.msra.mxu0 %v1912
    %3034 = vmatpush.bf16.msra.mxu0 %v1908
    %3035 = vmatpush.bf16.msra.mxu0 %v1904
    %3036 = vmatpush.bf16.msra.mxu0 %v1900
    %3037 = vmatpush.bf16.msra.mxu0 %v1896
    %3038 = vmatmul.bf16.gmra.mxu0 %v2964
    %v3039 = vpop.f32.mrf.mxu0
    %v3040 = vadd.f32 %v3027, %v3039
    %v3041 = vpop.f32.mrf.mxu0
    %3042 = vdwg.mxu0
    %3043 = vmatpush.bf16.msra.mxu0 %v1893
    %3044 = vmatpush.bf16.msra.mxu0 %v1889
    %3045 = vmatpush.bf16.msra.mxu0 %v1885
    %3046 = vmatpush.bf16.msra.mxu0 %v1881
    %3047 = vmatpush.bf16.msra.mxu0 %v1877
    %3048 = vmatpush.bf16.msra.mxu0 %v1873
    %3049 = vmatpush.bf16.msra.mxu0 %v1869
    %3050 = vmatpush.bf16.msra.mxu0 %v1865
    %3051 = vmatmul.bf16.gmra.mxu0 %v2841
    %v3052 = vpop.f32.mrf.mxu0
    %v3053 = vadd.f32 %v543, %v3052
    %v3054 = vpop.f32.mrf.mxu0
    %3055 = vdwg.mxu0
    %3056 = vmatpush.bf16.msra.mxu0 %v1925
    %3057 = vmatpush.bf16.msra.mxu0 %v1921
    %3058 = vmatpush.bf16.msra.mxu0 %v1917
    %3059 = vmatpush.bf16.msra.mxu0 %v1913
    %3060 = vmatpush.bf16.msra.mxu0 %v1909
    %3061 = vmatpush.bf16.msra.mxu0 %v1905
    %3062 = vmatpush.bf16.msra.mxu0 %v1901
    %3063 = vmatpush.bf16.msra.mxu0 %v1897
    %3064 = vmatmul.bf16.gmra.mxu0 %v2964
    %v3065 = vpop.f32.mrf.mxu0
    %v3066 = vadd.f32 %v3053, %v3065
    %v3067 = vpop.f32.mrf.mxu0
    %3068 = vdwg.mxu0
    %v3069 = vmul.f32 %v2988, 0.5
    %v3070 = vtanh.pop %v3069
    %v3071 = vmul.f32 %v3070, 0.5
    %v3072 = vadd.f32 %v3071, 0.5
    %v3073 = vmul.f32 %v3014, 0.5
    %v3074 = vtanh.pop %v3073
    %v3075 = vmul.f32 %v3074, 0.5
    %v3076 = vadd.f32 %v3075, 0.5
    %v3077 = vtanh.pop %v3040
    %v3078 = vmul.f32 %v3066, 0.5
    %v3079 = vtanh.pop %v3078
    %v3080 = vmul.f32 %v3079, 0.5
    %v3081 = vadd.f32 %v3080, 0.5
    %v3082 = vmul.f32 %v3076, %v2759
    %v3083 = vmul.f32 %v3072, %v3077
    %v3084 = vadd.f32 %v3082, %v3083
    %v3085 = vtanh.pop %v3084
    %v3086 = vmul.f32 %v3081, %v3085
    %v3087 = vld [vmem:[#allocation2 + $0xc0] sm:$0xff]
    %v3088 = vld [vmem:[#allocation2 + $0xc8] sm:$0xff]
    %v3089 = vld [vmem:[#allocation2 + $0xd0] sm:$0xff]
    %v3090 = vld [vmem:[#allocation2 + $0xd8] sm:$0xff]
    %v3091 = vpack.c.bf16 %v2840, %v2840
    %3092 = vmatpush.bf16.msra.mxu0 %v708
    %3093 = vmatpush.bf16.msra.mxu0 %v704
    %3094 = vmatpush.bf16.msra.mxu0 %v700
    %3095 = vmatpush.bf16.msra.mxu0 %v696
    %3096 = vmatpush.bf16.msra.mxu0 %v692
    %3097 = vmatpush.bf16.msra.mxu0 %v688
    %3098 = vmatpush.bf16.msra.mxu0 %v684
    %3099 = vmatpush.bf16.msra.mxu0 %v680
    %3100 = vmatmul.bf16.gmra.mxu0 %v3091
    %v3101 = vpop.f32.mrf.mxu0
    %v3102 = vadd.f32 0.0, %v3101
    %v3103 = vpop.f32.mrf.mxu0
    %3104 = vdwg.mxu0
    %3105 = vmatpush.bf16.msra.mxu0 %v709
    %3106 = vmatpush.bf16.msra.mxu0 %v705
    %3107 = vmatpush.bf16.msra.mxu0 %v701
    %3108 = vmatpush.bf16.msra.mxu0 %v697
    %3109 = vmatpush.bf16.msra.mxu0 %v693
    %3110 = vmatpush.bf16.msra.mxu0 %v689
    %3111 = vmatpush.bf16.msra.mxu0 %v685
    %3112 = vmatpush.bf16.msra.mxu0 %v681
    %3113 = vmatmul.bf16.gmra.mxu0 %v3091
    %v3114 = vpop.f32.mrf.mxu0
    %v3115 = vadd.f32 0.0, %v3114
    %v3116 = vpop.f32.mrf.mxu0
    %3117 = vdwg.mxu0
    %3118 = vmatpush.bf16.msra.mxu0 %v710
    %3119 = vmatpush.bf16.msra.mxu0 %v706
    %3120 = vmatpush.bf16.msra.mxu0 %v702
    %3121 = vmatpush.bf16.msra.mxu0 %v698
    %3122 = vmatpush.bf16.msra.mxu0 %v694
    %3123 = vmatpush.bf16.msra.mxu0 %v690
    %3124 = vmatpush.bf16.msra.mxu0 %v686
    %3125 = vmatpush.bf16.msra.mxu0 %v682
    %3126 = vmatmul.bf16.gmra.mxu0 %v3091
    %v3127 = vpop.f32.mrf.mxu0
    %v3128 = vadd.f32 0.0, %v3127
    %v3129 = vpop.f32.mrf.mxu0
    %3130 = vdwg.mxu0
    %3131 = vmatpush.bf16.msra.mxu0 %v711
    %3132 = vmatpush.bf16.msra.mxu0 %v707
    %3133 = vmatpush.bf16.msra.mxu0 %v703
    %3134 = vmatpush.bf16.msra.mxu0 %v699
    %3135 = vmatpush.bf16.msra.mxu0 %v695
    %3136 = vmatpush.bf16.msra.mxu0 %v691
    %3137 = vmatpush.bf16.msra.mxu0 %v687
    %3138 = vmatpush.bf16.msra.mxu0 %v683
    %3139 = vmatmul.bf16.gmra.mxu0 %v3091
    %v3140 = vpop.f32.mrf.mxu0
    %v3141 = vadd.f32 0.0, %v3140
    %v3142 = vpop.f32.mrf.mxu0
    %3143 = vdwg.mxu0
    %v3144 = vadd.f32 %v3087, %v3102
    %v3145 = vadd.f32 %v3088, %v3115
    %v3146 = vadd.f32 %v3089, %v3128
    %v3147 = vadd.f32 %v3090, %v3141
    %v3148 = vmul.f32 %v3144, 0.5
    %v3149 = vtanh.pop %v3148
    %v3150 = vmul.f32 %v3149, 0.5
    %v3151 = vadd.f32 %v3150, 0.5
    %v3152 = vmul.f32 %v3145, 0.5
    %v3153 = vtanh.pop %v3152
    %v3154 = vmul.f32 %v3153, 0.5
    %v3155 = vadd.f32 %v3154, 0.5
    %v3156 = vtanh.pop %v3146
    %v3157 = vmul.f32 %v3147, 0.5
    %v3158 = vtanh.pop %v3157
    %v3159 = vmul.f32 %v3158, 0.5
    %v3160 = vadd.f32 %v3159, 0.5
    %v3161 = vmul.f32 %v3155, %v2838
    %v3162 = vmul.f32 %v3151, %v3156
    %v3163 = vadd.f32 %v3161, %v3162
    %v3164 = vtanh.pop %v3163
    %v3165 = vmul.f32 %v3160, %v3164
    %v3166 = vpack.c.bf16 %v2963, %v2963
    %3167 = vmatpush.bf16.msra.mxu0 %v1182
    %3168 = vmatpush.bf16.msra.mxu0 %v1178
    %3169 = vmatpush.bf16.msra.mxu0 %v1174
    %3170 = vmatpush.bf16.msra.mxu0 %v1170
    %3171 = vmatpush.bf16.msra.mxu0 %v1166
    %3172 = vmatpush.bf16.msra.mxu0 %v1162
    %3173 = vmatpush.bf16.msra.mxu0 %v1158
    %3174 = vmatpush.bf16.msra.mxu0 %v1154
    %3175 = vmatmul.bf16.gmra.mxu0 %v3091
    %v3176 = vpop.f32.mrf.mxu0
    %v3177 = vadd.f32 %v530, %v3176
    %v3178 = vpop.f32.mrf.mxu0
    %3179 = vdwg.mxu0
    %3180 = vmatpush.bf16.msra.mxu0 %v1214
    %3181 = vmatpush.bf16.msra.mxu0 %v1210
    %3182 = vmatpush.bf16.msra.mxu0 %v1206
    %3183 = vmatpush.bf16.msra.mxu0 %v1202
    %3184 = vmatpush.bf16.msra.mxu0 %v1198
    %3185 = vmatpush.bf16.msra.mxu0 %v1194
    %3186 = vmatpush.bf16.msra.mxu0 %v1190
    %3187 = vmatpush.bf16.msra.mxu0 %v1186
    %3188 = vmatmul.bf16.gmra.mxu0 %v3166
    %v3189 = vpop.f32.mrf.mxu0
    %v3190 = vadd.f32 %v3177, %v3189
    %v3191 = vpop.f32.mrf.mxu0
    %3192 = vdwg.mxu0
    %3193 = vmatpush.bf16.msra.mxu0 %v1183
    %3194 = vmatpush.bf16.msra.mxu0 %v1179
    %3195 = vmatpush.bf16.msra.mxu0 %v1175
    %3196 = vmatpush.bf16.msra.mxu0 %v1171
    %3197 = vmatpush.bf16.msra.mxu0 %v1167
    %3198 = vmatpush.bf16.msra.mxu0 %v1163
    %3199 = vmatpush.bf16.msra.mxu0 %v1159
    %3200 = vmatpush.bf16.msra.mxu0 %v1155
    %3201 = vmatmul.bf16.gmra.mxu0 %v3091
    %v3202 = vpop.f32.mrf.mxu0
    %v3203 = vadd.f32 %v531, %v3202
    %v3204 = vpop.f32.mrf.mxu0
    %3205 = vdwg.mxu0
    %3206 = vmatpush.bf16.msra.mxu0 %v1215
    %3207 = vmatpush.bf16.msra.mxu0 %v1211
    %3208 = vmatpush.bf16.msra.mxu0 %v1207
    %3209 = vmatpush.bf16.msra.mxu0 %v1203
    %3210 = vmatpush.bf16.msra.mxu0 %v1199
    %3211 = vmatpush.bf16.msra.mxu0 %v1195
    %3212 = vmatpush.bf16.msra.mxu0 %v1191
    %3213 = vmatpush.bf16.msra.mxu0 %v1187
    %3214 = vmatmul.bf16.gmra.mxu0 %v3166
    %v3215 = vpop.f32.mrf.mxu0
    %v3216 = vadd.f32 %v3203, %v3215
    %v3217 = vpop.f32.mrf.mxu0
    %3218 = vdwg.mxu0
    %3219 = vmatpush.bf16.msra.mxu0 %v1184
    %3220 = vmatpush.bf16.msra.mxu0 %v1180
    %3221 = vmatpush.bf16.msra.mxu0 %v1176
    %3222 = vmatpush.bf16.msra.mxu0 %v1172
    %3223 = vmatpush.bf16.msra.mxu0 %v1168
    %3224 = vmatpush.bf16.msra.mxu0 %v1164
    %3225 = vmatpush.bf16.msra.mxu0 %v1160
    %3226 = vmatpush.bf16.msra.mxu0 %v1156
    %3227 = vmatmul.bf16.gmra.mxu0 %v3091
    %v3228 = vpop.f32.mrf.mxu0
    %v3229 = vadd.f32 %v532, %v3228
    %v3230 = vpop.f32.mrf.mxu0
    %3231 = vdwg.mxu0
    %3232 = vmatpush.bf16.msra.mxu0 %v1216
    %3233 = vmatpush.bf16.msra.mxu0 %v1212
    %3234 = vmatpush.bf16.msra.mxu0 %v1208
    %3235 = vmatpush.bf16.msra.mxu0 %v1204
    %3236 = vmatpush.bf16.msra.mxu0 %v1200
    %3237 = vmatpush.bf16.msra.mxu0 %v1196
    %3238 = vmatpush.bf16.msra.mxu0 %v1192
    %3239 = vmatpush.bf16.msra.mxu0 %v1188
    %3240 = vmatmul.bf16.gmra.mxu0 %v3166
    %v3241 = vpop.f32.mrf.mxu0
    %v3242 = vadd.f32 %v3229, %v3241
    %v3243 = vpop.f32.mrf.mxu0
    %3244 = vdwg.mxu0
    %3245 = vmatpush.bf16.msra.mxu0 %v1185
    %3246 = vmatpush.bf16.msra.mxu0 %v1181
    %3247 = vmatpush.bf16.msra.mxu0 %v1177
    %3248 = vmatpush.bf16.msra.mxu0 %v1173
    %3249 = vmatpush.bf16.msra.mxu0 %v1169
    %3250 = vmatpush.bf16.msra.mxu0 %v1165
    %3251 = vmatpush.bf16.msra.mxu0 %v1161
    %3252 = vmatpush.bf16.msra.mxu0 %v1157
    %3253 = vmatmul.bf16.gmra.mxu0 %v3091
    %v3254 = vpop.f32.mrf.mxu0
    %v3255 = vadd.f32 %v533, %v3254
    %v3256 = vpop.f32.mrf.mxu0
    %3257 = vdwg.mxu0
    %3258 = vmatpush.bf16.msra.mxu0 %v1217
    %3259 = vmatpush.bf16.msra.mxu0 %v1213
    %3260 = vmatpush.bf16.msra.mxu0 %v1209
    %3261 = vmatpush.bf16.msra.mxu0 %v1205
    %3262 = vmatpush.bf16.msra.mxu0 %v1201
    %3263 = vmatpush.bf16.msra.mxu0 %v1197
    %3264 = vmatpush.bf16.msra.mxu0 %v1193
    %3265 = vmatpush.bf16.msra.mxu0 %v1189
    %3266 = vmatmul.bf16.gmra.mxu0 %v3166
    %v3267 = vpop.f32.mrf.mxu0
    %v3268 = vadd.f32 %v3255, %v3267
    %v3269 = vpop.f32.mrf.mxu0
    %3270 = vdwg.mxu0
    %v3271 = vmul.f32 %v3190, 0.5
    %v3272 = vtanh.pop %v3271
    %v3273 = vmul.f32 %v3272, 0.5
    %v3274 = vadd.f32 %v3273, 0.5
    %v3275 = vmul.f32 %v3216, 0.5
    %v3276 = vtanh.pop %v3275
    %v3277 = vmul.f32 %v3276, 0.5
    %v3278 = vadd.f32 %v3277, 0.5
    %v3279 = vtanh.pop %v3242
    %v3280 = vmul.f32 %v3268, 0.5
    %v3281 = vtanh.pop %v3280
    %v3282 = vmul.f32 %v3281, 0.5
    %v3283 = vadd.f32 %v3282, 0.5
    %v3284 = vmul.f32 %v3278, %v2961
    %v3285 = vmul.f32 %v3274, %v3279
    %v3286 = vadd.f32 %v3284, %v3285
    %v3287 = vtanh.pop %v3286
    %v3288 = vmul.f32 %v3283, %v3287
    %v3289 = vpack.c.bf16 %v3086, %v3086
    %3290 = vmatpush.bf16.msra.mxu0 %v1890
    %3291 = vmatpush.bf16.msra.mxu0 %v1886
    %3292 = vmatpush.bf16.msra.mxu0 %v1882
    %3293 = vmatpush.bf16.msra.mxu0 %v1878
    %3294 = vmatpush.bf16.msra.mxu0 %v1874
    %3295 = vmatpush.bf16.msra.mxu0 %v1870
    %3296 = vmatpush.bf16.msra.mxu0 %v1866
    %3297 = vmatpush.bf16.msra.mxu0 %v1862
    %3298 = vmatmul.bf16.gmra.mxu0 %v3166
    %v3299 = vpop.f32.mrf.mxu0
    %v3300 = vadd.f32 %v540, %v3299
    %v3301 = vpop.f32.mrf.mxu0
    %3302 = vdwg.mxu0
    %3303 = vmatpush.bf16.msra.mxu0 %v1922
    %3304 = vmatpush.bf16.msra.mxu0 %v1918
    %3305 = vmatpush.bf16.msra.mxu0 %v1914
    %3306 = vmatpush.bf16.msra.mxu0 %v1910
    %3307 = vmatpush.bf16.msra.mxu0 %v1906
    %3308 = vmatpush.bf16.msra.mxu0 %v1902
    %3309 = vmatpush.bf16.msra.mxu0 %v1898
    %3310 = vmatpush.bf16.msra.mxu0 %v1894
    %3311 = vmatmul.bf16.gmra.mxu0 %v3289
    %v3312 = vpop.f32.mrf.mxu0
    %v3313 = vadd.f32 %v3300, %v3312
    %v3314 = vpop.f32.mrf.mxu0
    %3315 = vdwg.mxu0
    %3316 = vmatpush.bf16.msra.mxu0 %v1891
    %3317 = vmatpush.bf16.msra.mxu0 %v1887
    %3318 = vmatpush.bf16.msra.mxu0 %v1883
    %3319 = vmatpush.bf16.msra.mxu0 %v1879
    %3320 = vmatpush.bf16.msra.mxu0 %v1875
    %3321 = vmatpush.bf16.msra.mxu0 %v1871
    %3322 = vmatpush.bf16.msra.mxu0 %v1867
    %3323 = vmatpush.bf16.msra.mxu0 %v1863
    %3324 = vmatmul.bf16.gmra.mxu0 %v3166
    %v3325 = vpop.f32.mrf.mxu0
    %v3326 = vadd.f32 %v541, %v3325
    %v3327 = vpop.f32.mrf.mxu0
    %3328 = vdwg.mxu0
    %3329 = vmatpush.bf16.msra.mxu0 %v1923
    %3330 = vmatpush.bf16.msra.mxu0 %v1919
    %3331 = vmatpush.bf16.msra.mxu0 %v1915
    %3332 = vmatpush.bf16.msra.mxu0 %v1911
    %3333 = vmatpush.bf16.msra.mxu0 %v1907
    %3334 = vmatpush.bf16.msra.mxu0 %v1903
    %3335 = vmatpush.bf16.msra.mxu0 %v1899
    %3336 = vmatpush.bf16.msra.mxu0 %v1895
    %3337 = vmatmul.bf16.gmra.mxu0 %v3289
    %v3338 = vpop.f32.mrf.mxu0
    %v3339 = vadd.f32 %v3326, %v3338
    %v3340 = vpop.f32.mrf.mxu0
    %3341 = vdwg.mxu0
    %3342 = vmatpush.bf16.msra.mxu0 %v1892
    %3343 = vmatpush.bf16.msra.mxu0 %v1888
    %3344 = vmatpush.bf16.msra.mxu0 %v1884
    %3345 = vmatpush.bf16.msra.mxu0 %v1880
    %3346 = vmatpush.bf16.msra.mxu0 %v1876
    %3347 = vmatpush.bf16.msra.mxu0 %v1872
    %3348 = vmatpush.bf16.msra.mxu0 %v1868
    %3349 = vmatpush.bf16.msra.mxu0 %v1864
    %3350 = vmatmul.bf16.gmra.mxu0 %v3166
    %v3351 = vpop.f32.mrf.mxu0
    %v3352 = vadd.f32 %v542, %v3351
    %v3353 = vpop.f32.mrf.mxu0
    %3354 = vdwg.mxu0
    %3355 = vmatpush.bf16.msra.mxu0 %v1924
    %3356 = vmatpush.bf16.msra.mxu0 %v1920
    %3357 = vmatpush.bf16.msra.mxu0 %v1916
    %3358 = vmatpush.bf16.msra.mxu0 %v1912
    %3359 = vmatpush.bf16.msra.mxu0 %v1908
    %3360 = vmatpush.bf16.msra.mxu0 %v1904
    %3361 = vmatpush.bf16.msra.mxu0 %v1900
    %3362 = vmatpush.bf16.msra.mxu0 %v1896
    %3363 = vmatmul.bf16.gmra.mxu0 %v3289
    %v3364 = vpop.f32.mrf.mxu0
    %v3365 = vadd.f32 %v3352, %v3364
    %v3366 = vpop.f32.mrf.mxu0
    %3367 = vdwg.mxu0
    %3368 = vmatpush.bf16.msra.mxu0 %v1893
    %3369 = vmatpush.bf16.msra.mxu0 %v1889
    %3370 = vmatpush.bf16.msra.mxu0 %v1885
    %3371 = vmatpush.bf16.msra.mxu0 %v1881
    %3372 = vmatpush.bf16.msra.mxu0 %v1877
    %3373 = vmatpush.bf16.msra.mxu0 %v1873
    %3374 = vmatpush.bf16.msra.mxu0 %v1869
    %3375 = vmatpush.bf16.msra.mxu0 %v1865
    %3376 = vmatmul.bf16.gmra.mxu0 %v3166
    %v3377 = vpop.f32.mrf.mxu0
    %v3378 = vadd.f32 %v543, %v3377
    %v3379 = vpop.f32.mrf.mxu0
    %3380 = vdwg.mxu0
    %3381 = vmatpush.bf16.msra.mxu0 %v1925
    %3382 = vmatpush.bf16.msra.mxu0 %v1921
    %3383 = vmatpush.bf16.msra.mxu0 %v1917
    %3384 = vmatpush.bf16.msra.mxu0 %v1913
    %3385 = vmatpush.bf16.msra.mxu0 %v1909
    %3386 = vmatpush.bf16.msra.mxu0 %v1905
    %3387 = vmatpush.bf16.msra.mxu0 %v1901
    %3388 = vmatpush.bf16.msra.mxu0 %v1897
    %3389 = vmatmul.bf16.gmra.mxu0 %v3289
    %v3390 = vpop.f32.mrf.mxu0
    %v3391 = vadd.f32 %v3378, %v3390
    %v3392 = vpop.f32.mrf.mxu0
    %3393 = vdwg.mxu0
    %v3394 = vmul.f32 %v3313, 0.5
    %v3395 = vtanh.pop %v3394
    %v3396 = vmul.f32 %v3395, 0.5
    %v3397 = vadd.f32 %v3396, 0.5
    %v3398 = vmul.f32 %v3339, 0.5
    %v3399 = vtanh.pop %v3398
    %v3400 = vmul.f32 %v3399, 0.5
    %v3401 = vadd.f32 %v3400, 0.5
    %v3402 = vtanh.pop %v3365
    %v3403 = vmul.f32 %v3391, 0.5
    %v3404 = vtanh.pop %v3403
    %v3405 = vmul.f32 %v3404, 0.5
    %v3406 = vadd.f32 %v3405, 0.5
    %v3407 = vmul.f32 %v3401, %v3084
    %v3408 = vmul.f32 %v3397, %v3402
    %v3409 = vadd.f32 %v3407, %v3408
    %v3410 = vtanh.pop %v3409
    %v3411 = vmul.f32 %v3406, %v3410
    %v3412 = vld [vmem:[#allocation2 + $0xe0] sm:$0xff]
    %v3413 = vld [vmem:[#allocation2 + $0xe8] sm:$0xff]
    %v3414 = vld [vmem:[#allocation2 + $0xf0] sm:$0xff]
    %v3415 = vld [vmem:[#allocation2 + $0xf8] sm:$0xff]
    %v3416 = vpack.c.bf16 %v3165, %v3165
    %3417 = vmatpush.bf16.msra.mxu0 %v708
    %3418 = vmatpush.bf16.msra.mxu0 %v704
    %3419 = vmatpush.bf16.msra.mxu0 %v700
    %3420 = vmatpush.bf16.msra.mxu0 %v696
    %3421 = vmatpush.bf16.msra.mxu0 %v692
    %3422 = vmatpush.bf16.msra.mxu0 %v688
    %3423 = vmatpush.bf16.msra.mxu0 %v684
    %3424 = vmatpush.bf16.msra.mxu0 %v680
    %3425 = vmatmul.bf16.gmra.mxu0 %v3416
    %v3426 = vpop.f32.mrf.mxu0
    %v3427 = vadd.f32 0.0, %v3426
    %v3428 = vpop.f32.mrf.mxu0
    %3429 = vdwg.mxu0
    %3430 = vmatpush.bf16.msra.mxu0 %v709
    %3431 = vmatpush.bf16.msra.mxu0 %v705
    %3432 = vmatpush.bf16.msra.mxu0 %v701
    %3433 = vmatpush.bf16.msra.mxu0 %v697
    %3434 = vmatpush.bf16.msra.mxu0 %v693
    %3435 = vmatpush.bf16.msra.mxu0 %v689
    %3436 = vmatpush.bf16.msra.mxu0 %v685
    %3437 = vmatpush.bf16.msra.mxu0 %v681
    %3438 = vmatmul.bf16.gmra.mxu0 %v3416
    %v3439 = vpop.f32.mrf.mxu0
    %v3440 = vadd.f32 0.0, %v3439
    %v3441 = vpop.f32.mrf.mxu0
    %3442 = vdwg.mxu0
    %3443 = vmatpush.bf16.msra.mxu0 %v710
    %3444 = vmatpush.bf16.msra.mxu0 %v706
    %3445 = vmatpush.bf16.msra.mxu0 %v702
    %3446 = vmatpush.bf16.msra.mxu0 %v698
    %3447 = vmatpush.bf16.msra.mxu0 %v694
    %3448 = vmatpush.bf16.msra.mxu0 %v690
    %3449 = vmatpush.bf16.msra.mxu0 %v686
    %3450 = vmatpush.bf16.msra.mxu0 %v682
    %3451 = vmatmul.bf16.gmra.mxu0 %v3416
    %v3452 = vpop.f32.mrf.mxu0
    %v3453 = vadd.f32 0.0, %v3452
    %v3454 = vpop.f32.mrf.mxu0
    %3455 = vdwg.mxu0
    %3456 = vmatpush.bf16.msra.mxu0 %v711
    %3457 = vmatpush.bf16.msra.mxu0 %v707
    %3458 = vmatpush.bf16.msra.mxu0 %v703
    %3459 = vmatpush.bf16.msra.mxu0 %v699
    %3460 = vmatpush.bf16.msra.mxu0 %v695
    %3461 = vmatpush.bf16.msra.mxu0 %v691
    %3462 = vmatpush.bf16.msra.mxu0 %v687
    %3463 = vmatpush.bf16.msra.mxu0 %v683
    %3464 = vmatmul.bf16.gmra.mxu0 %v3416
    %v3465 = vpop.f32.mrf.mxu0
    %v3466 = vadd.f32 0.0, %v3465
    %v3467 = vpop.f32.mrf.mxu0
    %3468 = vdwg.mxu0
    %v3469 = vadd.f32 %v3412, %v3427
    %v3470 = vadd.f32 %v3413, %v3440
    %v3471 = vadd.f32 %v3414, %v3453
    %v3472 = vadd.f32 %v3415, %v3466
    %v3473 = vmul.f32 %v3469, 0.5
    %v3474 = vtanh.pop %v3473
    %v3475 = vmul.f32 %v3474, 0.5
    %v3476 = vadd.f32 %v3475, 0.5
    %v3477 = vmul.f32 %v3470, 0.5
    %v3478 = vtanh.pop %v3477
    %v3479 = vmul.f32 %v3478, 0.5
    %v3480 = vadd.f32 %v3479, 0.5
    %v3481 = vtanh.pop %v3471
    %v3482 = vmul.f32 %v3472, 0.5
    %v3483 = vtanh.pop %v3482
    %v3484 = vmul.f32 %v3483, 0.5
    %v3485 = vadd.f32 %v3484, 0.5
    %v3486 = vmul.f32 %v3480, %v3163
    %v3487 = vmul.f32 %v3476, %v3481
    %v3488 = vadd.f32 %v3486, %v3487
    %v3489 = vtanh.pop %v3488
    %v3490 = vmul.f32 %v3485, %v3489
    %v3491 = vpack.c.bf16 %v3288, %v3288
    %3492 = vmatpush.bf16.msra.mxu0 %v1182
    %3493 = vmatpush.bf16.msra.mxu0 %v1178
    %3494 = vmatpush.bf16.msra.mxu0 %v1174
    %3495 = vmatpush.bf16.msra.mxu0 %v1170
    %3496 = vmatpush.bf16.msra.mxu0 %v1166
    %3497 = vmatpush.bf16.msra.mxu0 %v1162
    %3498 = vmatpush.bf16.msra.mxu0 %v1158
    %3499 = vmatpush.bf16.msra.mxu0 %v1154
    %3500 = vmatmul.bf16.gmra.mxu0 %v3416
    %v3501 = vpop.f32.mrf.mxu0
    %v3502 = vadd.f32 %v530, %v3501
    %v3503 = vpop.f32.mrf.mxu0
    %3504 = vdwg.mxu0
    %3505 = vmatpush.bf16.msra.mxu0 %v1214
    %3506 = vmatpush.bf16.msra.mxu0 %v1210
    %3507 = vmatpush.bf16.msra.mxu0 %v1206
    %3508 = vmatpush.bf16.msra.mxu0 %v1202
    %3509 = vmatpush.bf16.msra.mxu0 %v1198
    %3510 = vmatpush.bf16.msra.mxu0 %v1194
    %3511 = vmatpush.bf16.msra.mxu0 %v1190
    %3512 = vmatpush.bf16.msra.mxu0 %v1186
    %3513 = vmatmul.bf16.gmra.mxu0 %v3491
    %v3514 = vpop.f32.mrf.mxu0
    %v3515 = vadd.f32 %v3502, %v3514
    %v3516 = vpop.f32.mrf.mxu0
    %3517 = vdwg.mxu0
    %3518 = vmatpush.bf16.msra.mxu0 %v1183
    %3519 = vmatpush.bf16.msra.mxu0 %v1179
    %3520 = vmatpush.bf16.msra.mxu0 %v1175
    %3521 = vmatpush.bf16.msra.mxu0 %v1171
    %3522 = vmatpush.bf16.msra.mxu0 %v1167
    %3523 = vmatpush.bf16.msra.mxu0 %v1163
    %3524 = vmatpush.bf16.msra.mxu0 %v1159
    %3525 = vmatpush.bf16.msra.mxu0 %v1155
    %3526 = vmatmul.bf16.gmra.mxu0 %v3416
    %v3527 = vpop.f32.mrf.mxu0
    %v3528 = vadd.f32 %v531, %v3527
    %v3529 = vpop.f32.mrf.mxu0
    %3530 = vdwg.mxu0
    %3531 = vmatpush.bf16.msra.mxu0 %v1215
    %3532 = vmatpush.bf16.msra.mxu0 %v1211
    %3533 = vmatpush.bf16.msra.mxu0 %v1207
    %3534 = vmatpush.bf16.msra.mxu0 %v1203
    %3535 = vmatpush.bf16.msra.mxu0 %v1199
    %3536 = vmatpush.bf16.msra.mxu0 %v1195
    %3537 = vmatpush.bf16.msra.mxu0 %v1191
    %3538 = vmatpush.bf16.msra.mxu0 %v1187
    %3539 = vmatmul.bf16.gmra.mxu0 %v3491
    %v3540 = vpop.f32.mrf.mxu0
    %v3541 = vadd.f32 %v3528, %v3540
    %v3542 = vpop.f32.mrf.mxu0
    %3543 = vdwg.mxu0
    %3544 = vmatpush.bf16.msra.mxu0 %v1184
    %3545 = vmatpush.bf16.msra.mxu0 %v1180
    %3546 = vmatpush.bf16.msra.mxu0 %v1176
    %3547 = vmatpush.bf16.msra.mxu0 %v1172
    %3548 = vmatpush.bf16.msra.mxu0 %v1168
    %3549 = vmatpush.bf16.msra.mxu0 %v1164
    %3550 = vmatpush.bf16.msra.mxu0 %v1160
    %3551 = vmatpush.bf16.msra.mxu0 %v1156
    %3552 = vmatmul.bf16.gmra.mxu0 %v3416
    %v3553 = vpop.f32.mrf.mxu0
    %v3554 = vadd.f32 %v532, %v3553
    %v3555 = vpop.f32.mrf.mxu0
    %3556 = vdwg.mxu0
    %3557 = vmatpush.bf16.msra.mxu0 %v1216
    %3558 = vmatpush.bf16.msra.mxu0 %v1212
    %3559 = vmatpush.bf16.msra.mxu0 %v1208
    %3560 = vmatpush.bf16.msra.mxu0 %v1204
    %3561 = vmatpush.bf16.msra.mxu0 %v1200
    %3562 = vmatpush.bf16.msra.mxu0 %v1196
    %3563 = vmatpush.bf16.msra.mxu0 %v1192
    %3564 = vmatpush.bf16.msra.mxu0 %v1188
    %3565 = vmatmul.bf16.gmra.mxu0 %v3491
    %v3566 = vpop.f32.mrf.mxu0
    %v3567 = vadd.f32 %v3554, %v3566
    %v3568 = vpop.f32.mrf.mxu0
    %3569 = vdwg.mxu0
    %3570 = vmatpush.bf16.msra.mxu0 %v1185
    %3571 = vmatpush.bf16.msra.mxu0 %v1181
    %3572 = vmatpush.bf16.msra.mxu0 %v1177
    %3573 = vmatpush.bf16.msra.mxu0 %v1173
    %3574 = vmatpush.bf16.msra.mxu0 %v1169
    %3575 = vmatpush.bf16.msra.mxu0 %v1165
    %3576 = vmatpush.bf16.msra.mxu0 %v1161
    %3577 = vmatpush.bf16.msra.mxu0 %v1157
    %3578 = vmatmul.bf16.gmra.mxu0 %v3416
    %v3579 = vpop.f32.mrf.mxu0
    %v3580 = vadd.f32 %v533, %v3579
    %v3581 = vpop.f32.mrf.mxu0
    %3582 = vdwg.mxu0
    %3583 = vmatpush.bf16.msra.mxu0 %v1217
    %3584 = vmatpush.bf16.msra.mxu0 %v1213
    %3585 = vmatpush.bf16.msra.mxu0 %v1209
    %3586 = vmatpush.bf16.msra.mxu0 %v1205
    %3587 = vmatpush.bf16.msra.mxu0 %v1201
    %3588 = vmatpush.bf16.msra.mxu0 %v1197
    %3589 = vmatpush.bf16.msra.mxu0 %v1193
    %3590 = vmatpush.bf16.msra.mxu0 %v1189
    %3591 = vmatmul.bf16.gmra.mxu0 %v3491
    %v3592 = vpop.f32.mrf.mxu0
    %v3593 = vadd.f32 %v3580, %v3592
    %v3594 = vpop.f32.mrf.mxu0
    %3595 = vdwg.mxu0
    %v3596 = vmul.f32 %v3515, 0.5
    %v3597 = vtanh.pop %v3596
    %v3598 = vmul.f32 %v3597, 0.5
    %v3599 = vadd.f32 %v3598, 0.5
    %v3600 = vmul.f32 %v3541, 0.5
    %v3601 = vtanh.pop %v3600
    %v3602 = vmul.f32 %v3601, 0.5
    %v3603 = vadd.f32 %v3602, 0.5
    %v3604 = vtanh.pop %v3567
    %v3605 = vmul.f32 %v3593, 0.5
    %v3606 = vtanh.pop %v3605
    %v3607 = vmul.f32 %v3606, 0.5
    %v3608 = vadd.f32 %v3607, 0.5
    %v3609 = vmul.f32 %v3603, %v3286
    %v3610 = vmul.f32 %v3599, %v3604
    %v3611 = vadd.f32 %v3609, %v3610
    %v3612 = vtanh.pop %v3611
    %v3613 = vmul.f32 %v3608, %v3612
    %v3614 = vpack.c.bf16 %v3411, %v3411
    %3615 = vmatpush.bf16.msra.mxu0 %v1890
    %3616 = vmatpush.bf16.msra.mxu0 %v1886
    %3617 = vmatpush.bf16.msra.mxu0 %v1882
    %3618 = vmatpush.bf16.msra.mxu0 %v1878
    %3619 = vmatpush.bf16.msra.mxu0 %v1874
    %3620 = vmatpush.bf16.msra.mxu0 %v1870
    %3621 = vmatpush.bf16.msra.mxu0 %v1866
    %3622 = vmatpush.bf16.msra.mxu0 %v1862
    %3623 = vmatmul.bf16.gmra.mxu0 %v3491
    %v3624 = vpop.f32.mrf.mxu0
    %v3625 = vadd.f32 %v540, %v3624
    %v3626 = vpop.f32.mrf.mxu0
    %3627 = vdwg.mxu0
    %3628 = vmatpush.bf16.msra.mxu0 %v1922
    %3629 = vmatpush.bf16.msra.mxu0 %v1918
    %3630 = vmatpush.bf16.msra.mxu0 %v1914
    %3631 = vmatpush.bf16.msra.mxu0 %v1910
    %3632 = vmatpush.bf16.msra.mxu0 %v1906
    %3633 = vmatpush.bf16.msra.mxu0 %v1902
    %3634 = vmatpush.bf16.msra.mxu0 %v1898
    %3635 = vmatpush.bf16.msra.mxu0 %v1894
    %3636 = vmatmul.bf16.gmra.mxu0 %v3614
    %v3637 = vpop.f32.mrf.mxu0
    %v3638 = vadd.f32 %v3625, %v3637
    %v3639 = vpop.f32.mrf.mxu0
    %3640 = vdwg.mxu0
    %3641 = vmatpush.bf16.msra.mxu0 %v1891
    %3642 = vmatpush.bf16.msra.mxu0 %v1887
    %3643 = vmatpush.bf16.msra.mxu0 %v1883
    %3644 = vmatpush.bf16.msra.mxu0 %v1879
    %3645 = vmatpush.bf16.msra.mxu0 %v1875
    %3646 = vmatpush.bf16.msra.mxu0 %v1871
    %3647 = vmatpush.bf16.msra.mxu0 %v1867
    %3648 = vmatpush.bf16.msra.mxu0 %v1863
    %3649 = vmatmul.bf16.gmra.mxu0 %v3491
    %v3650 = vpop.f32.mrf.mxu0
    %v3651 = vadd.f32 %v541, %v3650
    %v3652 = vpop.f32.mrf.mxu0
    %3653 = vdwg.mxu0
    %3654 = vmatpush.bf16.msra.mxu0 %v1923
    %3655 = vmatpush.bf16.msra.mxu0 %v1919
    %3656 = vmatpush.bf16.msra.mxu0 %v1915
    %3657 = vmatpush.bf16.msra.mxu0 %v1911
    %3658 = vmatpush.bf16.msra.mxu0 %v1907
    %3659 = vmatpush.bf16.msra.mxu0 %v1903
    %3660 = vmatpush.bf16.msra.mxu0 %v1899
    %3661 = vmatpush.bf16.msra.mxu0 %v1895
    %3662 = vmatmul.bf16.gmra.mxu0 %v3614
    %v3663 = vpop.f32.mrf.mxu0
    %v3664 = vadd.f32 %v3651, %v3663
    %v3665 = vpop.f32.mrf.mxu0
    %3666 = vdwg.mxu0
    %3667 = vmatpush.bf16.msra.mxu0 %v1892
    %3668 = vmatpush.bf16.msra.mxu0 %v1888
    %3669 = vmatpush.bf16.msra.mxu0 %v1884
    %3670 = vmatpush.bf16.msra.mxu0 %v1880
    %3671 = vmatpush.bf16.msra.mxu0 %v1876
    %3672 = vmatpush.bf16.msra.mxu0 %v1872
    %3673 = vmatpush.bf16.msra.mxu0 %v1868
    %3674 = vmatpush.bf16.msra.mxu0 %v1864
    %3675 = vmatmul.bf16.gmra.mxu0 %v3491
    %v3676 = vpop.f32.mrf.mxu0
    %v3677 = vadd.f32 %v542, %v3676
    %v3678 = vpop.f32.mrf.mxu0
    %3679 = vdwg.mxu0
    %3680 = vmatpush.bf16.msra.mxu0 %v1924
    %3681 = vmatpush.bf16.msra.mxu0 %v1920
    %3682 = vmatpush.bf16.msra.mxu0 %v1916
    %3683 = vmatpush.bf16.msra.mxu0 %v1912
    %3684 = vmatpush.bf16.msra.mxu0 %v1908
    %3685 = vmatpush.bf16.msra.mxu0 %v1904
    %3686 = vmatpush.bf16.msra.mxu0 %v1900
    %3687 = vmatpush.bf16.msra.mxu0 %v1896
    %3688 = vmatmul.bf16.gmra.mxu0 %v3614
    %v3689 = vpop.f32.mrf.mxu0
    %v3690 = vadd.f32 %v3677, %v3689
    %v3691 = vpop.f32.mrf.mxu0
    %3692 = vdwg.mxu0
    %3693 = vmatpush.bf16.msra.mxu0 %v1893
    %3694 = vmatpush.bf16.msra.mxu0 %v1889
    %3695 = vmatpush.bf16.msra.mxu0 %v1885
    %3696 = vmatpush.bf16.msra.mxu0 %v1881
    %3697 = vmatpush.bf16.msra.mxu0 %v1877
    %3698 = vmatpush.bf16.msra.mxu0 %v1873
    %3699 = vmatpush.bf16.msra.mxu0 %v1869
    %3700 = vmatpush.bf16.msra.mxu0 %v1865
    %3701 = vmatmul.bf16.gmra.mxu0 %v3491
    %v3702 = vpop.f32.mrf.mxu0
    %v3703 = vadd.f32 %v543, %v3702
    %v3704 = vpop.f32.mrf.mxu0
    %3705 = vdwg.mxu0
    %3706 = vmatpush.bf16.msra.mxu0 %v1925
    %3707 = vmatpush.bf16.msra.mxu0 %v1921
    %3708 = vmatpush.bf16.msra.mxu0 %v1917
    %3709 = vmatpush.bf16.msra.mxu0 %v1913
    %3710 = vmatpush.bf16.msra.mxu0 %v1909
    %3711 = vmatpush.bf16.msra.mxu0 %v1905
    %3712 = vmatpush.bf16.msra.mxu0 %v1901
    %3713 = vmatpush.bf16.msra.mxu0 %v1897
    %3714 = vmatmul.bf16.gmra.mxu0 %v3614
    %v3715 = vpop.f32.mrf.mxu0
    %v3716 = vadd.f32 %v3703, %v3715
    %v3717 = vpop.f32.mrf.mxu0
    %3718 = vdwg.mxu0
    %v3719 = vmul.f32 %v3638, 0.5
    %v3720 = vtanh.pop %v3719
    %v3721 = vmul.f32 %v3720, 0.5
    %v3722 = vadd.f32 %v3721, 0.5
    %v3723 = vmul.f32 %v3664, 0.5
    %v3724 = vtanh.pop %v3723
    %v3725 = vmul.f32 %v3724, 0.5
    %v3726 = vadd.f32 %v3725, 0.5
    %v3727 = vtanh.pop %v3690
    %v3728 = vmul.f32 %v3716, 0.5
    %v3729 = vtanh.pop %v3728
    %v3730 = vmul.f32 %v3729, 0.5
    %v3731 = vadd.f32 %v3730, 0.5
    %v3732 = vmul.f32 %v3726, %v3409
    %v3733 = vmul.f32 %v3722, %v3727
    %v3734 = vadd.f32 %v3732, %v3733
    %v3735 = vtanh.pop %v3734
    %v3736 = vmul.f32 %v3731, %v3735
    %v3737 = vpack.c.bf16 %v3490, %v3490
    %v3738 = vpack.c.bf16 %v3613, %v3613
    %3739 = vmatpush.bf16.msra.mxu0 %v1182
    %3740 = vmatpush.bf16.msra.mxu0 %v1178
    %3741 = vmatpush.bf16.msra.mxu0 %v1174
    %3742 = vmatpush.bf16.msra.mxu0 %v1170
    %3743 = vmatpush.bf16.msra.mxu0 %v1166
    %3744 = vmatpush.bf16.msra.mxu0 %v1162
    %3745 = vmatpush.bf16.msra.mxu0 %v1158
    %3746 = vmatpush.bf16.msra.mxu0 %v1154
    %3747 = vmatmul.bf16.gmra.mxu0 %v3737
    %v3748 = vpop.f32.mrf.mxu0
    %v3749 = vadd.f32 %v530, %v3748
    %v3750 = vpop.f32.mrf.mxu0
    %3751 = vdwg.mxu0
    %3752 = vmatpush.bf16.msra.mxu0 %v1214
    %3753 = vmatpush.bf16.msra.mxu0 %v1210
    %3754 = vmatpush.bf16.msra.mxu0 %v1206
    %3755 = vmatpush.bf16.msra.mxu0 %v1202
    %3756 = vmatpush.bf16.msra.mxu0 %v1198
    %3757 = vmatpush.bf16.msra.mxu0 %v1194
    %3758 = vmatpush.bf16.msra.mxu0 %v1190
    %3759 = vmatpush.bf16.msra.mxu0 %v1186
    %3760 = vmatmul.bf16.gmra.mxu0 %v3738
    %v3761 = vpop.f32.mrf.mxu0
    %v3762 = vadd.f32 %v3749, %v3761
    %v3763 = vpop.f32.mrf.mxu0
    %3764 = vdwg.mxu0
    %3765 = vmatpush.bf16.msra.mxu0 %v1183
    %3766 = vmatpush.bf16.msra.mxu0 %v1179
    %3767 = vmatpush.bf16.msra.mxu0 %v1175
    %3768 = vmatpush.bf16.msra.mxu0 %v1171
    %3769 = vmatpush.bf16.msra.mxu0 %v1167
    %3770 = vmatpush.bf16.msra.mxu0 %v1163
    %3771 = vmatpush.bf16.msra.mxu0 %v1159
    %3772 = vmatpush.bf16.msra.mxu0 %v1155
    %3773 = vmatmul.bf16.gmra.mxu0 %v3737
    %v3774 = vpop.f32.mrf.mxu0
    %v3775 = vadd.f32 %v531, %v3774
    %v3776 = vpop.f32.mrf.mxu0
    %3777 = vdwg.mxu0
    %3778 = vmatpush.bf16.msra.mxu0 %v1215
    %3779 = vmatpush.bf16.msra.mxu0 %v1211
    %3780 = vmatpush.bf16.msra.mxu0 %v1207
    %3781 = vmatpush.bf16.msra.mxu0 %v1203
    %3782 = vmatpush.bf16.msra.mxu0 %v1199
    %3783 = vmatpush.bf16.msra.mxu0 %v1195
    %3784 = vmatpush.bf16.msra.mxu0 %v1191
    %3785 = vmatpush.bf16.msra.mxu0 %v1187
    %3786 = vmatmul.bf16.gmra.mxu0 %v3738
    %v3787 = vpop.f32.mrf.mxu0
    %v3788 = vadd.f32 %v3775, %v3787
    %v3789 = vpop.f32.mrf.mxu0
    %3790 = vdwg.mxu0
    %3791 = vmatpush.bf16.msra.mxu0 %v1184
    %3792 = vmatpush.bf16.msra.mxu0 %v1180
    %3793 = vmatpush.bf16.msra.mxu0 %v1176
    %3794 = vmatpush.bf16.msra.mxu0 %v1172
    %3795 = vmatpush.bf16.msra.mxu0 %v1168
    %3796 = vmatpush.bf16.msra.mxu0 %v1164
    %3797 = vmatpush.bf16.msra.mxu0 %v1160
    %3798 = vmatpush.bf16.msra.mxu0 %v1156
    %3799 = vmatmul.bf16.gmra.mxu0 %v3737
    %v3800 = vpop.f32.mrf.mxu0
    %v3801 = vadd.f32 %v532, %v3800
    %v3802 = vpop.f32.mrf.mxu0
    %3803 = vdwg.mxu0
    %3804 = vmatpush.bf16.msra.mxu0 %v1216
    %3805 = vmatpush.bf16.msra.mxu0 %v1212
    %3806 = vmatpush.bf16.msra.mxu0 %v1208
    %3807 = vmatpush.bf16.msra.mxu0 %v1204
    %3808 = vmatpush.bf16.msra.mxu0 %v1200
    %3809 = vmatpush.bf16.msra.mxu0 %v1196
    %3810 = vmatpush.bf16.msra.mxu0 %v1192
    %3811 = vmatpush.bf16.msra.mxu0 %v1188
    %3812 = vmatmul.bf16.gmra.mxu0 %v3738
    %v3813 = vpop.f32.mrf.mxu0
    %v3814 = vadd.f32 %v3801, %v3813
    %v3815 = vpop.f32.mrf.mxu0
    %3816 = vdwg.mxu0
    %3817 = vmatpush.bf16.msra.mxu0 %v1185
    %3818 = vmatpush.bf16.msra.mxu0 %v1181
    %3819 = vmatpush.bf16.msra.mxu0 %v1177
    %3820 = vmatpush.bf16.msra.mxu0 %v1173
    %3821 = vmatpush.bf16.msra.mxu0 %v1169
    %3822 = vmatpush.bf16.msra.mxu0 %v1165
    %3823 = vmatpush.bf16.msra.mxu0 %v1161
    %3824 = vmatpush.bf16.msra.mxu0 %v1157
    %3825 = vmatmul.bf16.gmra.mxu0 %v3737
    %v3826 = vpop.f32.mrf.mxu0
    %v3827 = vadd.f32 %v533, %v3826
    %v3828 = vpop.f32.mrf.mxu0
    %3829 = vdwg.mxu0
    %3830 = vmatpush.bf16.msra.mxu0 %v1217
    %3831 = vmatpush.bf16.msra.mxu0 %v1213
    %3832 = vmatpush.bf16.msra.mxu0 %v1209
    %3833 = vmatpush.bf16.msra.mxu0 %v1205
    %3834 = vmatpush.bf16.msra.mxu0 %v1201
    %3835 = vmatpush.bf16.msra.mxu0 %v1197
    %3836 = vmatpush.bf16.msra.mxu0 %v1193
    %3837 = vmatpush.bf16.msra.mxu0 %v1189
    %3838 = vmatmul.bf16.gmra.mxu0 %v3738
    %v3839 = vpop.f32.mrf.mxu0
    %v3840 = vadd.f32 %v3827, %v3839
    %v3841 = vpop.f32.mrf.mxu0
    %3842 = vdwg.mxu0
    %v3843 = vmul.f32 %v3762, 0.5
    %v3844 = vtanh.pop %v3843
    %v3845 = vmul.f32 %v3844, 0.5
    %v3846 = vadd.f32 %v3845, 0.5
    %v3847 = vmul.f32 %v3788, 0.5
    %v3848 = vtanh.pop %v3847
    %v3849 = vmul.f32 %v3848, 0.5
    %v3850 = vadd.f32 %v3849, 0.5
    %v3851 = vtanh.pop %v3814
    %v3852 = vmul.f32 %v3840, 0.5
    %v3853 = vtanh.pop %v3852
    %v3854 = vmul.f32 %v3853, 0.5
    %v3855 = vadd.f32 %v3854, 0.5
    %v3856 = vmul.f32 %v3850, %v3611
    %v3857 = vmul.f32 %v3846, %v3851
    %v3858 = vadd.f32 %v3856, %v3857
    %v3859 = vtanh.pop %v3858
    %v3860 = vmul.f32 %v3855, %v3859
    %v3861 = vpack.c.bf16 %v3736, %v3736
    %3862 = vmatpush.bf16.msra.mxu0 %v1890
    %3863 = vmatpush.bf16.msra.mxu0 %v1886
    %3864 = vmatpush.bf16.msra.mxu0 %v1882
    %3865 = vmatpush.bf16.msra.mxu0 %v1878
    %3866 = vmatpush.bf16.msra.mxu0 %v1874
    %3867 = vmatpush.bf16.msra.mxu0 %v1870
    %3868 = vmatpush.bf16.msra.mxu0 %v1866
    %3869 = vmatpush.bf16.msra.mxu0 %v1862
    %3870 = vmatmul.bf16.gmra.mxu0 %v3738
    %v3871 = vpop.f32.mrf.mxu0
    %v3872 = vadd.f32 %v540, %v3871
    %v3873 = vpop.f32.mrf.mxu0
    %3874 = vdwg.mxu0
    %3875 = vmatpush.bf16.msra.mxu0 %v1922
    %3876 = vmatpush.bf16.msra.mxu0 %v1918
    %3877 = vmatpush.bf16.msra.mxu0 %v1914
    %3878 = vmatpush.bf16.msra.mxu0 %v1910
    %3879 = vmatpush.bf16.msra.mxu0 %v1906
    %3880 = vmatpush.bf16.msra.mxu0 %v1902
    %3881 = vmatpush.bf16.msra.mxu0 %v1898
    %3882 = vmatpush.bf16.msra.mxu0 %v1894
    %3883 = vmatmul.bf16.gmra.mxu0 %v3861
    %v3884 = vpop.f32.mrf.mxu0
    %v3885 = vadd.f32 %v3872, %v3884
    %v3886 = vpop.f32.mrf.mxu0
    %3887 = vdwg.mxu0
    %3888 = vmatpush.bf16.msra.mxu0 %v1891
    %3889 = vmatpush.bf16.msra.mxu0 %v1887
    %3890 = vmatpush.bf16.msra.mxu0 %v1883
    %3891 = vmatpush.bf16.msra.mxu0 %v1879
    %3892 = vmatpush.bf16.msra.mxu0 %v1875
    %3893 = vmatpush.bf16.msra.mxu0 %v1871
    %3894 = vmatpush.bf16.msra.mxu0 %v1867
    %3895 = vmatpush.bf16.msra.mxu0 %v1863
    %3896 = vmatmul.bf16.gmra.mxu0 %v3738
    %v3897 = vpop.f32.mrf.mxu0
    %v3898 = vadd.f32 %v541, %v3897
    %v3899 = vpop.f32.mrf.mxu0
    %3900 = vdwg.mxu0
    %3901 = vmatpush.bf16.msra.mxu0 %v1923
    %3902 = vmatpush.bf16.msra.mxu0 %v1919
    %3903 = vmatpush.bf16.msra.mxu0 %v1915
    %3904 = vmatpush.bf16.msra.mxu0 %v1911
    %3905 = vmatpush.bf16.msra.mxu0 %v1907
    %3906 = vmatpush.bf16.msra.mxu0 %v1903
    %3907 = vmatpush.bf16.msra.mxu0 %v1899
    %3908 = vmatpush.bf16.msra.mxu0 %v1895
    %3909 = vmatmul.bf16.gmra.mxu0 %v3861
    %v3910 = vpop.f32.mrf.mxu0
    %v3911 = vadd.f32 %v3898, %v3910
    %v3912 = vpop.f32.mrf.mxu0
    %3913 = vdwg.mxu0
    %3914 = vmatpush.bf16.msra.mxu0 %v1892
    %3915 = vmatpush.bf16.msra.mxu0 %v1888
    %3916 = vmatpush.bf16.msra.mxu0 %v1884
    %3917 = vmatpush.bf16.msra.mxu0 %v1880
    %3918 = vmatpush.bf16.msra.mxu0 %v1876
    %3919 = vmatpush.bf16.msra.mxu0 %v1872
    %3920 = vmatpush.bf16.msra.mxu0 %v1868
    %3921 = vmatpush.bf16.msra.mxu0 %v1864
    %3922 = vmatmul.bf16.gmra.mxu0 %v3738
    %v3923 = vpop.f32.mrf.mxu0
    %v3924 = vadd.f32 %v542, %v3923
    %v3925 = vpop.f32.mrf.mxu0
    %3926 = vdwg.mxu0
    %3927 = vmatpush.bf16.msra.mxu0 %v1924
    %3928 = vmatpush.bf16.msra.mxu0 %v1920
    %3929 = vmatpush.bf16.msra.mxu0 %v1916
    %3930 = vmatpush.bf16.msra.mxu0 %v1912
    %3931 = vmatpush.bf16.msra.mxu0 %v1908
    %3932 = vmatpush.bf16.msra.mxu0 %v1904
    %3933 = vmatpush.bf16.msra.mxu0 %v1900
    %3934 = vmatpush.bf16.msra.mxu0 %v1896
    %3935 = vmatmul.bf16.gmra.mxu0 %v3861
    %v3936 = vpop.f32.mrf.mxu0
    %v3937 = vadd.f32 %v3924, %v3936
    %v3938 = vpop.f32.mrf.mxu0
    %3939 = vdwg.mxu0
    %3940 = vmatpush.bf16.msra.mxu0 %v1893
    %3941 = vmatpush.bf16.msra.mxu0 %v1889
    %3942 = vmatpush.bf16.msra.mxu0 %v1885
    %3943 = vmatpush.bf16.msra.mxu0 %v1881
    %3944 = vmatpush.bf16.msra.mxu0 %v1877
    %3945 = vmatpush.bf16.msra.mxu0 %v1873
    %3946 = vmatpush.bf16.msra.mxu0 %v1869
    %3947 = vmatpush.bf16.msra.mxu0 %v1865
    %3948 = vmatmul.bf16.gmra.mxu0 %v3738
    %v3949 = vpop.f32.mrf.mxu0
    %v3950 = vadd.f32 %v543, %v3949
    %v3951 = vpop.f32.mrf.mxu0
    %3952 = vdwg.mxu0
    %3953 = vmatpush.bf16.msra.mxu0 %v1925
    %3954 = vmatpush.bf16.msra.mxu0 %v1921
    %3955 = vmatpush.bf16.msra.mxu0 %v1917
    %3956 = vmatpush.bf16.msra.mxu0 %v1913
    %3957 = vmatpush.bf16.msra.mxu0 %v1909
    %3958 = vmatpush.bf16.msra.mxu0 %v1905
    %3959 = vmatpush.bf16.msra.mxu0 %v1901
    %3960 = vmatpush.bf16.msra.mxu0 %v1897
    %3961 = vmatmul.bf16.gmra.mxu0 %v3861
    %v3962 = vpop.f32.mrf.mxu0
    %v3963 = vadd.f32 %v3950, %v3962
    %v3964 = vpop.f32.mrf.mxu0
    %3965 = vdwg.mxu0
    %v3966 = vmul.f32 %v3885, 0.5
    %v3967 = vtanh.pop %v3966
    %v3968 = vmul.f32 %v3967, 0.5
    %v3969 = vadd.f32 %v3968, 0.5
    %v3970 = vmul.f32 %v3911, 0.5
    %v3971 = vtanh.pop %v3970
    %v3972 = vmul.f32 %v3971, 0.5
    %v3973 = vadd.f32 %v3972, 0.5
    %v3974 = vtanh.pop %v3937
    %v3975 = vmul.f32 %v3963, 0.5
    %v3976 = vtanh.pop %v3975
    %v3977 = vmul.f32 %v3976, 0.5
    %v3978 = vadd.f32 %v3977, 0.5
    %v3979 = vmul.f32 %v3973, %v3734
    %v3980 = vmul.f32 %v3969, %v3974
    %v3981 = vadd.f32 %v3979, %v3980
    %v3982 = vtanh.pop %v3981
    %v3983 = vmul.f32 %v3978, %v3982
    %v3984 = vpack.c.bf16 %v3860, %v3860
    %v3985 = vpack.c.bf16 %v3983, %v3983
    %3986 = vmatpush.bf16.msra.mxu0 %v1890
    %3987 = vmatpush.bf16.msra.mxu0 %v1886
    %3988 = vmatpush.bf16.msra.mxu0 %v1882
    %3989 = vmatpush.bf16.msra.mxu0 %v1878
    %3990 = vmatpush.bf16.msra.mxu0 %v1874
    %3991 = vmatpush.bf16.msra.mxu0 %v1870
    %3992 = vmatpush.bf16.msra.mxu0 %v1866
    %3993 = vmatpush.bf16.msra.mxu0 %v1862
    %3994 = vmatmul.bf16.gmra.mxu0 %v3984
    %v3995 = vpop.f32.mrf.mxu0
    %v3996 = vadd.f32 %v540, %v3995
    %v3997 = vpop.f32.mrf.mxu0
    %3998 = vdwg.mxu0
    %3999 = vmatpush.bf16.msra.mxu0 %v1922
    %4000 = vmatpush.bf16.msra.mxu0 %v1918
    %4001 = vmatpush.bf16.msra.mxu0 %v1914
    %4002 = vmatpush.bf16.msra.mxu0 %v1910
    %4003 = vmatpush.bf16.msra.mxu0 %v1906
    %4004 = vmatpush.bf16.msra.mxu0 %v1902
    %4005 = vmatpush.bf16.msra.mxu0 %v1898
    %4006 = vmatpush.bf16.msra.mxu0 %v1894
    %4007 = vmatmul.bf16.gmra.mxu0 %v3985
    %v4008 = vpop.f32.mrf.mxu0
    %v4009 = vadd.f32 %v3996, %v4008
    %v4010 = vpop.f32.mrf.mxu0
    %4011 = vdwg.mxu0
    %4012 = vmatpush.bf16.msra.mxu0 %v1891
    %4013 = vmatpush.bf16.msra.mxu0 %v1887
    %4014 = vmatpush.bf16.msra.mxu0 %v1883
    %4015 = vmatpush.bf16.msra.mxu0 %v1879
    %4016 = vmatpush.bf16.msra.mxu0 %v1875
    %4017 = vmatpush.bf16.msra.mxu0 %v1871
    %4018 = vmatpush.bf16.msra.mxu0 %v1867
    %4019 = vmatpush.bf16.msra.mxu0 %v1863
    %4020 = vmatmul.bf16.gmra.mxu0 %v3984
    %v4021 = vpop.f32.mrf.mxu0
    %v4022 = vadd.f32 %v541, %v4021
    %v4023 = vpop.f32.mrf.mxu0
    %4024 = vdwg.mxu0
    %4025 = vmatpush.bf16.msra.mxu0 %v1923
    %4026 = vmatpush.bf16.msra.mxu0 %v1919
    %4027 = vmatpush.bf16.msra.mxu0 %v1915
    %4028 = vmatpush.bf16.msra.mxu0 %v1911
    %4029 = vmatpush.bf16.msra.mxu0 %v1907
    %4030 = vmatpush.bf16.msra.mxu0 %v1903
    %4031 = vmatpush.bf16.msra.mxu0 %v1899
    %4032 = vmatpush.bf16.msra.mxu0 %v1895
    %4033 = vmatmul.bf16.gmra.mxu0 %v3985
    %v4034 = vpop.f32.mrf.mxu0
    %v4035 = vadd.f32 %v4022, %v4034
    %v4036 = vpop.f32.mrf.mxu0
    %4037 = vdwg.mxu0
    %4038 = vmatpush.bf16.msra.mxu0 %v1892
    %4039 = vmatpush.bf16.msra.mxu0 %v1888
    %4040 = vmatpush.bf16.msra.mxu0 %v1884
    %4041 = vmatpush.bf16.msra.mxu0 %v1880
    %4042 = vmatpush.bf16.msra.mxu0 %v1876
    %4043 = vmatpush.bf16.msra.mxu0 %v1872
    %4044 = vmatpush.bf16.msra.mxu0 %v1868
    %4045 = vmatpush.bf16.msra.mxu0 %v1864
    %4046 = vmatmul.bf16.gmra.mxu0 %v3984
    %v4047 = vpop.f32.mrf.mxu0
    %v4048 = vadd.f32 %v542, %v4047
    %v4049 = vpop.f32.mrf.mxu0
    %4050 = vdwg.mxu0
    %4051 = vmatpush.bf16.msra.mxu0 %v1924
    %4052 = vmatpush.bf16.msra.mxu0 %v1920
    %4053 = vmatpush.bf16.msra.mxu0 %v1916
    %4054 = vmatpush.bf16.msra.mxu0 %v1912
    %4055 = vmatpush.bf16.msra.mxu0 %v1908
    %4056 = vmatpush.bf16.msra.mxu0 %v1904
    %4057 = vmatpush.bf16.msra.mxu0 %v1900
    %4058 = vmatpush.bf16.msra.mxu0 %v1896
    %4059 = vmatmul.bf16.gmra.mxu0 %v3985
    %v4060 = vpop.f32.mrf.mxu0
    %v4061 = vadd.f32 %v4048, %v4060
    %v4062 = vpop.f32.mrf.mxu0
    %4063 = vdwg.mxu0
    %4064 = vmatpush.bf16.msra.mxu0 %v1893
    %4065 = vmatpush.bf16.msra.mxu0 %v1889
    %4066 = vmatpush.bf16.msra.mxu0 %v1885
    %4067 = vmatpush.bf16.msra.mxu0 %v1881
    %4068 = vmatpush.bf16.msra.mxu0 %v1877
    %4069 = vmatpush.bf16.msra.mxu0 %v1873
    %4070 = vmatpush.bf16.msra.mxu0 %v1869
    %4071 = vmatpush.bf16.msra.mxu0 %v1865
    %4072 = vmatmul.bf16.gmra.mxu0 %v3984
    %v4073 = vpop.f32.mrf.mxu0
    %v4074 = vadd.f32 %v543, %v4073
    %v4075 = vpop.f32.mrf.mxu0
    %4076 = vdwg.mxu0
    %4077 = vmatpush.bf16.msra.mxu0 %v1925
    %4078 = vmatpush.bf16.msra.mxu0 %v1921
    %4079 = vmatpush.bf16.msra.mxu0 %v1917
    %4080 = vmatpush.bf16.msra.mxu0 %v1913
    %4081 = vmatpush.bf16.msra.mxu0 %v1909
    %4082 = vmatpush.bf16.msra.mxu0 %v1905
    %4083 = vmatpush.bf16.msra.mxu0 %v1901
    %4084 = vmatpush.bf16.msra.mxu0 %v1897
    %4085 = vmatmul.bf16.gmra.mxu0 %v3985
    %v4086 = vpop.f32.mrf.mxu0
    %v4087 = vadd.f32 %v4074, %v4086
    %v4088 = vpop.f32.mrf.mxu0
    %4089 = vdwg.mxu0
    %v4090 = vmul.f32 %v4009, 0.5
    %v4091 = vtanh.pop %v4090
    %v4092 = vmul.f32 %v4091, 0.5
    %v4093 = vadd.f32 %v4092, 0.5
    %v4094 = vmul.f32 %v4035, 0.5
    %v4095 = vtanh.pop %v4094
    %v4096 = vmul.f32 %v4095, 0.5
    %v4097 = vadd.f32 %v4096, 0.5
    %v4098 = vtanh.pop %v4061
    %v4099 = vmul.f32 %v4087, 0.5
    %v4100 = vtanh.pop %v4099
    %v4101 = vmul.f32 %v4100, 0.5
    %v4102 = vadd.f32 %v4101, 0.5
    %v4103 = vmul.f32 %v4097, %v3981
    %v4104 = vmul.f32 %v4093, %v4098
    %v4105 = vadd.f32 %v4103, %v4104
    %v4106 = vtanh.pop %v4105
    %v4107 = vmul.f32 %v4102, %v4106
    %4108 = vst [vmem:[#allocation11] sm:$0xff] %v3490
    %4109 = vst [vmem:[#allocation12] sm:$0xff] %v3488
    %s4110 = scalar_lea.vmem [#allocation11], 8
    %4111 = vst [vmem:[%s4110] sm:$0xff] %v3860
    %s4112 = scalar_lea.vmem [#allocation12], 8
    %4113 = vst [vmem:[%s4112] sm:$0xff] %v3858
    %s4114 = scalar_lea.vmem [#allocation11], 16
    %4115 = vst [vmem:[%s4114] sm:$0xff] %v4107
    %s4116 = scalar_lea.vmem [#allocation12], 16
    %4117 = vst [vmem:[%s4116] sm:$0xff] %v4105
    // Predicated region
    $region58: #{tpu_custom_call.1} parent=1 // pred_check
      _
    $region59: #{tpu_custom_call.1} parent=1 // pred_check_branch
      %4119 = sbr.rel (0) target = $region61
    $region60: #{tpu_custom_call.1} parent=1 // pred_region
      %4121 = vsyncadd [#allocation5], 0
      %s4122 = sshll.u32 [#allocation11], 4
      %s4123 = int_to_ptr.vmem [resolvable:$true] %s4122
      %s4124 = sshll.u32 %s10, 4
      %s4125 = int_to_ptr.hbm [resolvable:$true] %s4124
      %4130 = dma.vmem_to_hbm [thread:$0]  %s4123, 384, %s4125, [#allocation5], 128, 128, 8
    $region61: #{tpu_custom_call.1} parent=1 // pred_fallthru
      _
    // Predicated region
    $region62: #{tpu_custom_call.1} parent=1 // pred_check
      _
    $region63: #{tpu_custom_call.1} parent=1 // pred_check_branch
      %4132 = sbr.rel (0) target = $region65
    $region64: #{tpu_custom_call.1} parent=1 // pred_region
      %4134 = vsyncadd [#allocation13], 0
      %s4135 = sshll.u32 [#allocation12], 4
      %s4136 = int_to_ptr.vmem [resolvable:$true] %s4135
      %s4137 = sshll.u32 %s11, 4
      %s4138 = int_to_ptr.hbm [resolvable:$true] %s4137
      %4143 = dma.vmem_to_hbm [thread:$0]  %s4136, 384, %s4138, [#allocation13], 128, 128, 8
    $region65: #{tpu_custom_call.1} parent=1 // pred_fallthru
      _
    // Predicated region
    $region66: #{tpu_custom_call.1} parent=1 // pred_check
      _
    $region67: #{tpu_custom_call.1} parent=1 // pred_check_branch
      %4145 = sbr.rel (0) target = $region69
    $region68: #{tpu_custom_call.1} parent=1 // pred_region
      %4147 = dma.done [#allocation5], 384
    $region69: #{tpu_custom_call.1} parent=1 // pred_fallthru
      _
    // Predicated region
    $region70: #{tpu_custom_call.1} parent=1 // pred_check
      _
    $region71: #{tpu_custom_call.1} parent=1 // pred_check_branch
      %4149 = sbr.rel (0) target = $region73
    $region72: #{tpu_custom_call.1} parent=1 // pred_region
      %4151 = dma.done [#allocation13], 384
    $region73: #{tpu_custom_call.1} parent=1 // pred_fallthru
      _
    %4152 = vsyncpa [#allocation4], 1
    %4153 = vsyncpa [#allocation7], 1
    %4154 = vsyncpa [#allocation10], 1
    %4155 = vsyncpa [#allocation5], 1
    %4156 = vsyncpa [#allocation13], 1

</llo_original>
